<compile_context>
chip_gen: v7x
topology: tpu7x:2x2x1
jax: 0.10.0
libtpu: 0.0.40
codegen_flags: <defaults>
</compile_context>

<pallas_src>
import math

import jax
import jax.numpy as jnp
from jax.experimental import pallas as pl
from jax.experimental.pallas import tpu as pltpu

# ---- model dims (small, consistent with the module) ----
BATCH = 2
SEQ = 8
D_MODEL = 32
N_HEADS = 4
D_HEAD = D_MODEL // N_HEADS
D_FF = 64
N_LAYERS = 2
EPS = 1e-6


# ============================ fused Pallas kernel ============================

def _encoder_kernel(x_ref, amask_ref,
                    wqkv_ref, bqkv_ref, wo_ref, bo_ref,
                    w1_ref, b1_ref, w2_ref, b2_ref,
                    ln1g_ref, ln1b_ref, ln2g_ref, ln2b_ref,
                    ng_ref, nb_ref,
                    o_ref):
    # x: [B, S, D]; amask: [B, 1, S] additive (0 keep / -1e9 masked)
    x = x_ref[...]
    amask = amask_ref[...]
    wqkv = wqkv_ref[...]          # [D, 3D]
    bqkv = bqkv_ref[...]          # [1, 1, 3D]
    wo = wo_ref[...]              # [D, D]
    bo = bo_ref[...]              # [1, 1, D]
    w1 = w1_ref[...]              # [D, Dff]
    b1 = b1_ref[...]              # [1, 1, Dff]
    w2 = w2_ref[...]              # [Dff, D]
    b2 = b2_ref[...]              # [1, 1, D]

    scale = 1.0 / math.sqrt(D_HEAD)

    def layer_norm(v, g, b):
        mean = jnp.mean(v, axis=-1, keepdims=True)
        c = v - mean
        # torch.Tensor.std is UNBIASED (ddof=1); eps added to std (not variance).
        std = jnp.sqrt(jnp.sum(c * c, axis=-1, keepdims=True) / (v.shape[-1] - 1))
        return g * c / (std + EPS) + b

    def mm(v, w, b):
        # v: [B, S, Din] -> 2D matmul -> [B, S, Dout] + bias
        Bv, Sv, Din = v.shape
        out = jnp.dot(v.reshape(Bv * Sv, Din), w,
                      preferred_element_type=jnp.float32)
        return out.reshape(Bv, Sv, w.shape[1]) + b

    # shared weights across all N layers (the [layer]*N quirk)
    for _ in range(N_LAYERS):
        # ---- sublayer 0: x + self_attn(norm(x))  (dropout omitted) ----
        xn = layer_norm(x, ln1g_ref[...], ln1b_ref[...])
        qkv = mm(xn, wqkv, bqkv)                      # [B, S, 3D]

        heads = []
        for h in range(N_HEADS):                      # unrolled, lane slices
            lo = h * D_HEAD
            q_h = qkv[:, :, lo:lo + D_HEAD]
            k_h = qkv[:, :, D_MODEL + lo:D_MODEL + lo + D_HEAD]
            v_h = qkv[:, :, 2 * D_MODEL + lo:2 * D_MODEL + lo + D_HEAD]
            s = jnp.einsum("bqd,bkd->bqk", q_h, k_h,
                           preferred_element_type=jnp.float32) * scale + amask
            s = s - jnp.max(s, axis=-1, keepdims=True)
            e = jnp.exp(s)
            p = e * pl.reciprocal(jnp.sum(e, axis=-1, keepdims=True), approx=True)
            heads.append(jnp.einsum("bqk,bkd->bqd", p, v_h,
                                    preferred_element_type=jnp.float32))
        attn = jnp.concatenate(heads, axis=-1)        # [B, S, D]
        x = x + mm(attn, wo, bo)

        # ---- sublayer 1: x + ffn(norm(x)) ----
        xn = layer_norm(x, ln2g_ref[...], ln2b_ref[...])
        hdn = jnp.maximum(mm(xn, w1, b1), 0.0)        # ReLU
        x = x + mm(hdn, w2, b2)

    # final Encoder LayerNorm
    o_ref[...] = layer_norm(x, ng_ref[...], nb_ref[...])


def encoder_forward(x, mask, pp):
    """x: [B, S, D] fp32; mask: [B, 1, S] fp32 (1 keep / 0 masked); pp: packed params."""
    add_mask = (mask - 1.0) * 1e9       # additive mask: 0 keep / -1e9 masked
    vspec = pl.BlockSpec(memory_space=pltpu.MemorySpace.VMEM)
    args = (x, add_mask,
            pp["wqkv"], pp["bqkv"], pp["wo"], pp["bo"],
            pp["w1"], pp["b1"], pp["w2"], pp["b2"],
            pp["ln1_g"], pp["ln1_b"], pp["ln2_g"], pp["ln2_b"],
            pp["norm_g"], pp["norm_b"])
    return pl.pallas_call(
        _encoder_kernel,
        out_shape=jax.ShapeDtypeStruct(x.shape, x.dtype),
        in_specs=[vspec] * len(args),
        out_specs=vspec,
    )(*args)


# ============================ params ============================

def init_params(key):
    """PyTorch-layout params (nn.Linear weight is [Dout, Din])."""
    ks = jax.random.split(key, 6)

    def w(k, shape):
        return jax.random.normal(k, shape, jnp.float32) * 0.05

    layer = {
        "wq": w(ks[0], (D_MODEL, D_MODEL)), "bq": jnp.zeros((D_MODEL,), jnp.float32),
        "wk": w(ks[1], (D_MODEL, D_MODEL)), "bk": jnp.zeros((D_MODEL,), jnp.float32),
        "wv": w(ks[2], (D_MODEL, D_MODEL)), "bv": jnp.zeros((D_MODEL,), jnp.float32),
        "wo": w(ks[3], (D_MODEL, D_MODEL)), "bo": jnp.zeros((D_MODEL,), jnp.float32),
        "w1": w(ks[4], (D_FF, D_MODEL)),    "b1": jnp.zeros((D_FF,), jnp.float32),
        "w2": w(ks[5], (D_MODEL, D_FF)),    "b2": jnp.zeros((D_MODEL,), jnp.float32),
        "ln1_g": jnp.ones((D_MODEL,), jnp.float32),
        "ln1_b": jnp.zeros((D_MODEL,), jnp.float32),
        "ln2_g": jnp.ones((D_MODEL,), jnp.float32),
        "ln2_b": jnp.zeros((D_MODEL,), jnp.float32),
    }
    return {
        "layer": layer,
        "norm_g": jnp.ones((D_MODEL,), jnp.float32),
        "norm_b": jnp.zeros((D_MODEL,), jnp.float32),
    }


def pack_params(params):
    """One-time packing: pre-transpose weights to [Din, Dout], fuse QKV, reshape biases."""
    lp = params["layer"]

    def b3(b):
        return b.reshape(1, 1, -1)

    wqkv = jnp.concatenate([lp["wq"].T, lp["wk"].T, lp["wv"].T], axis=1)   # [D, 3D]
    bqkv = jnp.concatenate([lp["bq"], lp["bk"], lp["bv"]]).reshape(1, 1, -1)
    return {
        "wqkv": wqkv, "bqkv": bqkv,
        "wo": lp["wo"].T, "bo": b3(lp["bo"]),
        "w1": lp["w1"].T, "b1": b3(lp["b1"]),
        "w2": lp["w2"].T, "b2": b3(lp["b2"]),
        "ln1_g": b3(lp["ln1_g"]), "ln1_b": b3(lp["ln1_b"]),
        "ln2_g": b3(lp["ln2_g"]), "ln2_b": b3(lp["ln2_b"]),
        "norm_g": b3(params["norm_g"]), "norm_b": b3(params["norm_b"]),
    }


# ============================ pure-JAX reference ============================

def encoder_ref(x, mask, params):
    lp = params["layer"]

    def ln(v, g, b):
        mean = v.mean(-1, keepdims=True)
        c = v - mean
        std = jnp.sqrt((c * c).sum(-1, keepdims=True) / (v.shape[-1] - 1))
        return g * c / (std + EPS) + b

    def attn(xn):
        B, S, D = xn.shape
        x2 = xn.reshape(B * S, D)
        q = (x2 @ lp["wq"].T + lp["bq"]).reshape(B, S, N_HEADS, D_HEAD).transpose(0, 2, 1, 3)
        k = (x2 @ lp["wk"].T + lp["bk"]).reshape(B, S, N_HEADS, D_HEAD).transpose(0, 2, 1, 3)
        v = (x2 @ lp["wv"].T + lp["bv"]).reshape(B, S, N_HEADS, D_HEAD).transpose(0, 2, 1, 3)
        s = jnp.einsum("bhqd,bhkd->bhqk", q, k) / math.sqrt(D_HEAD)
        s = jnp.where(mask[:, None, :, :] == 0.0, -1e9, s)
        p = jax.nn.softmax(s, axis=-1)
        o = jnp.einsum("bhqk,bhkd->bhqd", p, v).transpose(0, 2, 1, 3).reshape(B * S, D)
        return (o @ lp["wo"].T + lp["bo"]).reshape(B, S, D)

    for _ in range(N_LAYERS):
        x = x + attn(ln(x, lp["ln1_g"], lp["ln1_b"]))
        xn = ln(x, lp["ln2_g"], lp["ln2_b"])
        h = jnp.maximum(xn.reshape(-1, D_MODEL) @ lp["w1"].T + lp["b1"], 0.0)
        x = x + (h @ lp["w2"].T + lp["b2"]).reshape(x.shape)
    return ln(x, params["norm_g"], params["norm_b"])


# ============================ main ============================

if __name__ == "__main__":
    key = jax.random.PRNGKey(0)
    k_x, k_p = jax.random.split(key)

    x = jax.random.normal(k_x, (BATCH, SEQ, D_MODEL), jnp.float32)
    # src mask [B, 1, S]: 1.0 = attendable, 0.0 = padded; pad last 2 tokens of batch 1
    mask = jnp.ones((BATCH, 1, SEQ), jnp.float32)
    mask = mask.at[1, 0, SEQ - 2:].set(0.0)

    params = init_params(k_p)
    packed = pack_params(params)   # one-time weight packing (transpose / fuse QKV)

    out = jax.jit(encoder_forward)(x, mask, packed)
    out = jax.block_until_ready(out)
    assert out.shape == (BATCH, SEQ, D_MODEL) and out.dtype == jnp.float32

    # sanity check against a pure-JAX reference (generous tol: approx reciprocal)
    ref = jax.jit(encoder_ref)(x, mask, params)
    ref = jax.block_until_ready(ref)
    assert jnp.allclose(out, ref, rtol=1e-2, atol=1e-2), \
        f"max abs diff {jnp.max(jnp.abs(out - ref))}"

    print("KERNEL_OK")
</pallas_src>

<mosaic_0001>
module attributes {stable_mosaic.version = 11 : i64} {
  func.func @_encoder_kernel(%arg0: memref<2x8x32xf32, #tpu.memory_space<vmem>>, %arg1: memref<2x1x8xf32, #tpu.memory_space<vmem>>, %arg2: memref<32x96xf32, #tpu.memory_space<vmem>>, %arg3: memref<1x1x96xf32, #tpu.memory_space<vmem>>, %arg4: memref<32x32xf32, #tpu.memory_space<vmem>>, %arg5: memref<1x1x32xf32, #tpu.memory_space<vmem>>, %arg6: memref<32x64xf32, #tpu.memory_space<vmem>>, %arg7: memref<1x1x64xf32, #tpu.memory_space<vmem>>, %arg8: memref<64x32xf32, #tpu.memory_space<vmem>>, %arg9: memref<1x1x32xf32, #tpu.memory_space<vmem>>, %arg10: memref<1x1x32xf32, #tpu.memory_space<vmem>>, %arg11: memref<1x1x32xf32, #tpu.memory_space<vmem>>, %arg12: memref<1x1x32xf32, #tpu.memory_space<vmem>>, %arg13: memref<1x1x32xf32, #tpu.memory_space<vmem>>, %arg14: memref<1x1x32xf32, #tpu.memory_space<vmem>>, %arg15: memref<1x1x32xf32, #tpu.memory_space<vmem>>, %arg16: memref<2x8x32xf32, #tpu.memory_space<vmem>>) attributes {dimension_semantics = [], scalar_prefetch = 0 : i64, scratch_operands = 0 : i64, tpu.core_type = #tpu.core_type<tc>} {
    %c0 = arith.constant 0 : index
    %c0_0 = arith.constant 0 : index
    %c0_1 = arith.constant 0 : index
    %0 = vector.load %arg0[%c0, %c0_0, %c0_1] : memref<2x8x32xf32, #tpu.memory_space<vmem>>, vector<2x8x32xf32>
    %c0_2 = arith.constant 0 : index
    %c0_3 = arith.constant 0 : index
    %c0_4 = arith.constant 0 : index
    %1 = vector.load %arg1[%c0_2, %c0_3, %c0_4] : memref<2x1x8xf32, #tpu.memory_space<vmem>>, vector<2x1x8xf32>
    %c0_5 = arith.constant 0 : index
    %c0_6 = arith.constant 0 : index
    %2 = vector.load %arg2[%c0_5, %c0_6] : memref<32x96xf32, #tpu.memory_space<vmem>>, vector<32x96xf32>
    %c0_7 = arith.constant 0 : index
    %c0_8 = arith.constant 0 : index
    %c0_9 = arith.constant 0 : index
    %3 = vector.load %arg3[%c0_7, %c0_8, %c0_9] : memref<1x1x96xf32, #tpu.memory_space<vmem>>, vector<1x1x96xf32>
    %c0_10 = arith.constant 0 : index
    %c0_11 = arith.constant 0 : index
    %4 = vector.load %arg4[%c0_10, %c0_11] : memref<32x32xf32, #tpu.memory_space<vmem>>, vector<32x32xf32>
    %c0_12 = arith.constant 0 : index
    %c0_13 = arith.constant 0 : index
    %c0_14 = arith.constant 0 : index
    %5 = vector.load %arg5[%c0_12, %c0_13, %c0_14] : memref<1x1x32xf32, #tpu.memory_space<vmem>>, vector<1x1x32xf32>
    %c0_15 = arith.constant 0 : index
    %c0_16 = arith.constant 0 : index
    %6 = vector.load %arg6[%c0_15, %c0_16] : memref<32x64xf32, #tpu.memory_space<vmem>>, vector<32x64xf32>
    %c0_17 = arith.constant 0 : index
    %c0_18 = arith.constant 0 : index
    %c0_19 = arith.constant 0 : index
    %7 = vector.load %arg7[%c0_17, %c0_18, %c0_19] : memref<1x1x64xf32, #tpu.memory_space<vmem>>, vector<1x1x64xf32>
    %c0_20 = arith.constant 0 : index
    %c0_21 = arith.constant 0 : index
    %8 = vector.load %arg8[%c0_20, %c0_21] : memref<64x32xf32, #tpu.memory_space<vmem>>, vector<64x32xf32>
    %c0_22 = arith.constant 0 : index
    %c0_23 = arith.constant 0 : index
    %c0_24 = arith.constant 0 : index
    %9 = vector.load %arg9[%c0_22, %c0_23, %c0_24] : memref<1x1x32xf32, #tpu.memory_space<vmem>>, vector<1x1x32xf32>
    %c0_25 = arith.constant 0 : index
    %c0_26 = arith.constant 0 : index
    %c0_27 = arith.constant 0 : index
    %10 = vector.load %arg10[%c0_25, %c0_26, %c0_27] : memref<1x1x32xf32, #tpu.memory_space<vmem>>, vector<1x1x32xf32>
    %c0_28 = arith.constant 0 : index
    %c0_29 = arith.constant 0 : index
    %c0_30 = arith.constant 0 : index
    %11 = vector.load %arg11[%c0_28, %c0_29, %c0_30] : memref<1x1x32xf32, #tpu.memory_space<vmem>>, vector<1x1x32xf32>
    %cst = arith.constant dense<0.000000e+00> : vector<2x8xf32>
    %12 = vector.multi_reduction <add>, %0, %cst [2] : vector<2x8x32xf32> to vector<2x8xf32>
    %13 = vector.shape_cast %12 : vector<2x8xf32> to vector<2x8x1xf32>
    %cst_31 = arith.constant 3.200000e+01 : f32
    %14 = vector.broadcast %cst_31 : f32 to vector<2x8x1xf32>
    %15 = arith.divf %13, %14 : vector<2x8x1xf32>
    %16 = vector.broadcast %15 : vector<2x8x1xf32> to vector<2x8x32xf32>
    %17 = arith.subf %0, %16 : vector<2x8x32xf32>
    %18 = arith.mulf %17, %17 : vector<2x8x32xf32>
    %cst_32 = arith.constant dense<0.000000e+00> : vector<2x8xf32>
    %19 = vector.multi_reduction <add>, %18, %cst_32 [2] : vector<2x8x32xf32> to vector<2x8xf32>
    %20 = vector.shape_cast %19 : vector<2x8xf32> to vector<2x8x1xf32>
    %cst_33 = arith.constant 3.100000e+01 : f32
    %21 = vector.broadcast %cst_33 : f32 to vector<2x8x1xf32>
    %22 = arith.divf %20, %21 : vector<2x8x1xf32>
    %23 = math.sqrt %22 : vector<2x8x1xf32>
    %24 = vector.broadcast %10 : vector<1x1x32xf32> to vector<2x8x32xf32>
    %25 = arith.mulf %24, %17 : vector<2x8x32xf32>
    %cst_34 = arith.constant 9.99999997E-7 : f32
    %26 = vector.broadcast %cst_34 : f32 to vector<2x8x1xf32>
    %27 = arith.addf %23, %26 : vector<2x8x1xf32>
    %28 = vector.broadcast %27 : vector<2x8x1xf32> to vector<2x8x32xf32>
    %29 = arith.divf %25, %28 : vector<2x8x32xf32>
    %30 = vector.broadcast %11 : vector<1x1x32xf32> to vector<2x8x32xf32>
    %31 = arith.addf %29, %30 : vector<2x8x32xf32>
    %32 = vector.shape_cast %31 : vector<2x8x32xf32> to vector<16x32xf32>
    %cst_35 = arith.constant dense<0.000000e+00> : vector<16x96xf32>
    %33 = tpu.matmul %32, %2, %cst_35 {dimension_numbers = #tpu.dot_dimension_numbers<[1], [0], [0], [1], [0, 0, 1, 1], [], []>} : vector<16x32xf32>, vector<32x96xf32>, vector<16x96xf32> -> vector<16x96xf32>
    %34 = vector.shape_cast %33 : vector<16x96xf32> to vector<2x8x96xf32>
    %35 = vector.broadcast %3 : vector<1x1x96xf32> to vector<2x8x96xf32>
    %36 = arith.addf %34, %35 : vector<2x8x96xf32>
    %37 = vector.extract_strided_slice %36 {offsets = [0, 0, 0], sizes = [2, 8, 8], strides = [1, 1, 1]} : vector<2x8x96xf32> to vector<2x8x8xf32>
    %38 = vector.extract_strided_slice %36 {offsets = [0, 0, 32], sizes = [2, 8, 8], strides = [1, 1, 1]} : vector<2x8x96xf32> to vector<2x8x8xf32>
    %39 = vector.extract_strided_slice %36 {offsets = [0, 0, 64], sizes = [2, 8, 8], strides = [1, 1, 1]} : vector<2x8x96xf32> to vector<2x8x8xf32>
    "tpu.trace_start"() <{level = 10 : i32, message = "bqd,bkd->bqk"}> : () -> ()
    %cst_36 = arith.constant dense<0.000000e+00> : vector<2x8x8xf32>
    %40 = tpu.matmul %37, %38, %cst_36 {dimension_numbers = #tpu.dot_dimension_numbers<[2], [2], [1], [1], [0, 0, 0, 1, 1, 1], [0], [0]>} : vector<2x8x8xf32>, vector<2x8x8xf32>, vector<2x8x8xf32> -> vector<2x8x8xf32>
    "tpu.trace_stop"() : () -> ()
    %cst_37 = arith.constant 0.353553385 : f32
    %41 = vector.broadcast %cst_37 : f32 to vector<2x8x8xf32>
    %42 = arith.mulf %40, %41 : vector<2x8x8xf32>
    %43 = vector.broadcast %1 : vector<2x1x8xf32> to vector<2x8x8xf32>
    %44 = arith.addf %42, %43 : vector<2x8x8xf32>
    %cst_38 = arith.constant dense<0xFF800000> : vector<2x8xf32>
    %45 = vector.multi_reduction <maximumf>, %44, %cst_38 [2] : vector<2x8x8xf32> to vector<2x8xf32>
    %46 = vector.shape_cast %45 : vector<2x8xf32> to vector<2x8x1xf32>
    %47 = vector.broadcast %46 : vector<2x8x1xf32> to vector<2x8x8xf32>
    %48 = arith.subf %44, %47 : vector<2x8x8xf32>
    %49 = math.exp %48 : vector<2x8x8xf32>
    %cst_39 = arith.constant dense<0.000000e+00> : vector<2x8xf32>
    %50 = vector.multi_reduction <add>, %49, %cst_39 [2] : vector<2x8x8xf32> to vector<2x8xf32>
    %51 = vector.shape_cast %50 : vector<2x8xf32> to vector<2x8x1xf32>
    %52 = tpu.reciprocal %51 {approx = true} : vector<2x8x1xf32> -> vector<2x8x1xf32>
    %53 = vector.broadcast %52 : vector<2x8x1xf32> to vector<2x8x8xf32>
    %54 = arith.mulf %49, %53 : vector<2x8x8xf32>
    "tpu.trace_start"() <{level = 10 : i32, message = "bqk,bkd->bqd"}> : () -> ()
    %cst_40 = arith.constant dense<0.000000e+00> : vector<2x8x8xf32>
    %55 = tpu.matmul %54, %39, %cst_40 {dimension_numbers = #tpu.dot_dimension_numbers<[2], [1], [1], [2], [0, 0, 0, 1, 1, 2], [0], [0]>} : vector<2x8x8xf32>, vector<2x8x8xf32>, vector<2x8x8xf32> -> vector<2x8x8xf32>
    "tpu.trace_stop"() : () -> ()
    %56 = vector.extract_strided_slice %36 {offsets = [0, 0, 8], sizes = [2, 8, 8], strides = [1, 1, 1]} : vector<2x8x96xf32> to vector<2x8x8xf32>
    %57 = vector.extract_strided_slice %36 {offsets = [0, 0, 40], sizes = [2, 8, 8], strides = [1, 1, 1]} : vector<2x8x96xf32> to vector<2x8x8xf32>
    %58 = vector.extract_strided_slice %36 {offsets = [0, 0, 72], sizes = [2, 8, 8], strides = [1, 1, 1]} : vector<2x8x96xf32> to vector<2x8x8xf32>
    "tpu.trace_start"() <{level = 10 : i32, message = "bqd,bkd->bqk"}> : () -> ()
    %cst_41 = arith.constant dense<0.000000e+00> : vector<2x8x8xf32>
    %59 = tpu.matmul %56, %57, %cst_41 {dimension_numbers = #tpu.dot_dimension_numbers<[2], [2], [1], [1], [0, 0, 0, 1, 1, 1], [0], [0]>} : vector<2x8x8xf32>, vector<2x8x8xf32>, vector<2x8x8xf32> -> vector<2x8x8xf32>
    "tpu.trace_stop"() : () -> ()
    %cst_42 = arith.constant 0.353553385 : f32
    %60 = vector.broadcast %cst_42 : f32 to vector<2x8x8xf32>
    %61 = arith.mulf %59, %60 : vector<2x8x8xf32>
    %62 = vector.broadcast %1 : vector<2x1x8xf32> to vector<2x8x8xf32>
    %63 = arith.addf %61, %62 : vector<2x8x8xf32>
    %cst_43 = arith.constant dense<0xFF800000> : vector<2x8xf32>
    %64 = vector.multi_reduction <maximumf>, %63, %cst_43 [2] : vector<2x8x8xf32> to vector<2x8xf32>
    %65 = vector.shape_cast %64 : vector<2x8xf32> to vector<2x8x1xf32>
    %66 = vector.broadcast %65 : vector<2x8x1xf32> to vector<2x8x8xf32>
    %67 = arith.subf %63, %66 : vector<2x8x8xf32>
    %68 = math.exp %67 : vector<2x8x8xf32>
    %cst_44 = arith.constant dense<0.000000e+00> : vector<2x8xf32>
    %69 = vector.multi_reduction <add>, %68, %cst_44 [2] : vector<2x8x8xf32> to vector<2x8xf32>
    %70 = vector.shape_cast %69 : vector<2x8xf32> to vector<2x8x1xf32>
    %71 = tpu.reciprocal %70 {approx = true} : vector<2x8x1xf32> -> vector<2x8x1xf32>
    %72 = vector.broadcast %71 : vector<2x8x1xf32> to vector<2x8x8xf32>
    %73 = arith.mulf %68, %72 : vector<2x8x8xf32>
    "tpu.trace_start"() <{level = 10 : i32, message = "bqk,bkd->bqd"}> : () -> ()
    %cst_45 = arith.constant dense<0.000000e+00> : vector<2x8x8xf32>
    %74 = tpu.matmul %73, %58, %cst_45 {dimension_numbers = #tpu.dot_dimension_numbers<[2], [1], [1], [2], [0, 0, 0, 1, 1, 2], [0], [0]>} : vector<2x8x8xf32>, vector<2x8x8xf32>, vector<2x8x8xf32> -> vector<2x8x8xf32>
    "tpu.trace_stop"() : () -> ()
    %75 = vector.extract_strided_slice %36 {offsets = [0, 0, 16], sizes = [2, 8, 8], strides = [1, 1, 1]} : vector<2x8x96xf32> to vector<2x8x8xf32>
    %76 = vector.extract_strided_slice %36 {offsets = [0, 0, 48], sizes = [2, 8, 8], strides = [1, 1, 1]} : vector<2x8x96xf32> to vector<2x8x8xf32>
    %77 = vector.extract_strided_slice %36 {offsets = [0, 0, 80], sizes = [2, 8, 8], strides = [1, 1, 1]} : vector<2x8x96xf32> to vector<2x8x8xf32>
    "tpu.trace_start"() <{level = 10 : i32, message = "bqd,bkd->bqk"}> : () -> ()
    %cst_46 = arith.constant dense<0.000000e+00> : vector<2x8x8xf32>
    %78 = tpu.matmul %75, %76, %cst_46 {dimension_numbers = #tpu.dot_dimension_numbers<[2], [2], [1], [1], [0, 0, 0, 1, 1, 1], [0], [0]>} : vector<2x8x8xf32>, vector<2x8x8xf32>, vector<2x8x8xf32> -> vector<2x8x8xf32>
    "tpu.trace_stop"() : () -> ()
    %cst_47 = arith.constant 0.353553385 : f32
    %79 = vector.broadcast %cst_47 : f32 to vector<2x8x8xf32>
    %80 = arith.mulf %78, %79 : vector<2x8x8xf32>
    %81 = vector.broadcast %1 : vector<2x1x8xf32> to vector<2x8x8xf32>
    %82 = arith.addf %80, %81 : vector<2x8x8xf32>
    %cst_48 = arith.constant dense<0xFF800000> : vector<2x8xf32>
    %83 = vector.multi_reduction <maximumf>, %82, %cst_48 [2] : vector<2x8x8xf32> to vector<2x8xf32>
    %84 = vector.shape_cast %83 : vector<2x8xf32> to vector<2x8x1xf32>
    %85 = vector.broadcast %84 : vector<2x8x1xf32> to vector<2x8x8xf32>
    %86 = arith.subf %82, %85 : vector<2x8x8xf32>
    %87 = math.exp %86 : vector<2x8x8xf32>
    %cst_49 = arith.constant dense<0.000000e+00> : vector<2x8xf32>
    %88 = vector.multi_reduction <add>, %87, %cst_49 [2] : vector<2x8x8xf32> to vector<2x8xf32>
    %89 = vector.shape_cast %88 : vector<2x8xf32> to vector<2x8x1xf32>
    %90 = tpu.reciprocal %89 {approx = true} : vector<2x8x1xf32> -> vector<2x8x1xf32>
    %91 = vector.broadcast %90 : vector<2x8x1xf32> to vector<2x8x8xf32>
    %92 = arith.mulf %87, %91 : vector<2x8x8xf32>
    "tpu.trace_start"() <{level = 10 : i32, message = "bqk,bkd->bqd"}> : () -> ()
    %cst_50 = arith.constant dense<0.000000e+00> : vector<2x8x8xf32>
    %93 = tpu.matmul %92, %77, %cst_50 {dimension_numbers = #tpu.dot_dimension_numbers<[2], [1], [1], [2], [0, 0, 0, 1, 1, 2], [0], [0]>} : vector<2x8x8xf32>, vector<2x8x8xf32>, vector<2x8x8xf32> -> vector<2x8x8xf32>
    "tpu.trace_stop"() : () -> ()
    %94 = vector.extract_strided_slice %36 {offsets = [0, 0, 24], sizes = [2, 8, 8], strides = [1, 1, 1]} : vector<2x8x96xf32> to vector<2x8x8xf32>
    %95 = vector.extract_strided_slice %36 {offsets = [0, 0, 56], sizes = [2, 8, 8], strides = [1, 1, 1]} : vector<2x8x96xf32> to vector<2x8x8xf32>
    %96 = vector.extract_strided_slice %36 {offsets = [0, 0, 88], sizes = [2, 8, 8], strides = [1, 1, 1]} : vector<2x8x96xf32> to vector<2x8x8xf32>
    "tpu.trace_start"() <{level = 10 : i32, message = "bqd,bkd->bqk"}> : () -> ()
    %cst_51 = arith.constant dense<0.000000e+00> : vector<2x8x8xf32>
    %97 = tpu.matmul %94, %95, %cst_51 {dimension_numbers = #tpu.dot_dimension_numbers<[2], [2], [1], [1], [0, 0, 0, 1, 1, 1], [0], [0]>} : vector<2x8x8xf32>, vector<2x8x8xf32>, vector<2x8x8xf32> -> vector<2x8x8xf32>
    "tpu.trace_stop"() : () -> ()
    %cst_52 = arith.constant 0.353553385 : f32
    %98 = vector.broadcast %cst_52 : f32 to vector<2x8x8xf32>
    %99 = arith.mulf %97, %98 : vector<2x8x8xf32>
    %100 = vector.broadcast %1 : vector<2x1x8xf32> to vector<2x8x8xf32>
    %101 = arith.addf %99, %100 : vector<2x8x8xf32>
    %cst_53 = arith.constant dense<0xFF800000> : vector<2x8xf32>
    %102 = vector.multi_reduction <maximumf>, %101, %cst_53 [2] : vector<2x8x8xf32> to vector<2x8xf32>
    %103 = vector.shape_cast %102 : vector<2x8xf32> to vector<2x8x1xf32>
    %104 = vector.broadcast %103 : vector<2x8x1xf32> to vector<2x8x8xf32>
    %105 = arith.subf %101, %104 : vector<2x8x8xf32>
    %106 = math.exp %105 : vector<2x8x8xf32>
    %cst_54 = arith.constant dense<0.000000e+00> : vector<2x8xf32>
    %107 = vector.multi_reduction <add>, %106, %cst_54 [2] : vector<2x8x8xf32> to vector<2x8xf32>
    %108 = vector.shape_cast %107 : vector<2x8xf32> to vector<2x8x1xf32>
    %109 = tpu.reciprocal %108 {approx = true} : vector<2x8x1xf32> -> vector<2x8x1xf32>
    %110 = vector.broadcast %109 : vector<2x8x1xf32> to vector<2x8x8xf32>
    %111 = arith.mulf %106, %110 : vector<2x8x8xf32>
    "tpu.trace_start"() <{level = 10 : i32, message = "bqk,bkd->bqd"}> : () -> ()
    %cst_55 = arith.constant dense<0.000000e+00> : vector<2x8x8xf32>
    %112 = tpu.matmul %111, %96, %cst_55 {dimension_numbers = #tpu.dot_dimension_numbers<[2], [1], [1], [2], [0, 0, 0, 1, 1, 2], [0], [0]>} : vector<2x8x8xf32>, vector<2x8x8xf32>, vector<2x8x8xf32> -> vector<2x8x8xf32>
    "tpu.trace_stop"() : () -> ()
    %113 = tpu.concatenate %55, %74, %93, %112 in 2 : vector<2x8x8xf32>, vector<2x8x8xf32>, vector<2x8x8xf32>, vector<2x8x8xf32> -> vector<2x8x32xf32>
    %114 = vector.shape_cast %113 : vector<2x8x32xf32> to vector<16x32xf32>
    %cst_56 = arith.constant dense<0.000000e+00> : vector<16x32xf32>
    %115 = tpu.matmul %114, %4, %cst_56 {dimension_numbers = #tpu.dot_dimension_numbers<[1], [0], [0], [1], [0, 0, 1, 1], [], []>} : vector<16x32xf32>, vector<32x32xf32>, vector<16x32xf32> -> vector<16x32xf32>
    %116 = vector.shape_cast %115 : vector<16x32xf32> to vector<2x8x32xf32>
    %117 = vector.broadcast %5 : vector<1x1x32xf32> to vector<2x8x32xf32>
    %118 = arith.addf %116, %117 : vector<2x8x32xf32>
    %119 = arith.addf %0, %118 : vector<2x8x32xf32>
    %c0_57 = arith.constant 0 : index
    %c0_58 = arith.constant 0 : index
    %c0_59 = arith.constant 0 : index
    %120 = vector.load %arg12[%c0_57, %c0_58, %c0_59] : memref<1x1x32xf32, #tpu.memory_space<vmem>>, vector<1x1x32xf32>
    %c0_60 = arith.constant 0 : index
    %c0_61 = arith.constant 0 : index
    %c0_62 = arith.constant 0 : index
    %121 = vector.load %arg13[%c0_60, %c0_61, %c0_62] : memref<1x1x32xf32, #tpu.memory_space<vmem>>, vector<1x1x32xf32>
    %cst_63 = arith.constant dense<0.000000e+00> : vector<2x8xf32>
    %122 = vector.multi_reduction <add>, %119, %cst_63 [2] : vector<2x8x32xf32> to vector<2x8xf32>
    %123 = vector.shape_cast %122 : vector<2x8xf32> to vector<2x8x1xf32>
    %cst_64 = arith.constant 3.200000e+01 : f32
    %124 = vector.broadcast %cst_64 : f32 to vector<2x8x1xf32>
    %125 = arith.divf %123, %124 : vector<2x8x1xf32>
    %126 = vector.broadcast %125 : vector<2x8x1xf32> to vector<2x8x32xf32>
    %127 = arith.subf %119, %126 : vector<2x8x32xf32>
    %128 = arith.mulf %127, %127 : vector<2x8x32xf32>
    %cst_65 = arith.constant dense<0.000000e+00> : vector<2x8xf32>
    %129 = vector.multi_reduction <add>, %128, %cst_65 [2] : vector<2x8x32xf32> to vector<2x8xf32>
    %130 = vector.shape_cast %129 : vector<2x8xf32> to vector<2x8x1xf32>
    %cst_66 = arith.constant 3.100000e+01 : f32
    %131 = vector.broadcast %cst_66 : f32 to vector<2x8x1xf32>
    %132 = arith.divf %130, %131 : vector<2x8x1xf32>
    %133 = math.sqrt %132 : vector<2x8x1xf32>
    %134 = vector.broadcast %120 : vector<1x1x32xf32> to vector<2x8x32xf32>
    %135 = arith.mulf %134, %127 : vector<2x8x32xf32>
    %cst_67 = arith.constant 9.99999997E-7 : f32
    %136 = vector.broadcast %cst_67 : f32 to vector<2x8x1xf32>
    %137 = arith.addf %133, %136 : vector<2x8x1xf32>
    %138 = vector.broadcast %137 : vector<2x8x1xf32> to vector<2x8x32xf32>
    %139 = arith.divf %135, %138 : vector<2x8x32xf32>
    %140 = vector.broadcast %121 : vector<1x1x32xf32> to vector<2x8x32xf32>
    %141 = arith.addf %139, %140 : vector<2x8x32xf32>
    %142 = vector.shape_cast %141 : vector<2x8x32xf32> to vector<16x32xf32>
    %cst_68 = arith.constant dense<0.000000e+00> : vector<16x64xf32>
    %143 = tpu.matmul %142, %6, %cst_68 {dimension_numbers = #tpu.dot_dimension_numbers<[1], [0], [0], [1], [0, 0, 1, 1], [], []>} : vector<16x32xf32>, vector<32x64xf32>, vector<16x64xf32> -> vector<16x64xf32>
    %144 = vector.shape_cast %143 : vector<16x64xf32> to vector<2x8x64xf32>
    %145 = vector.broadcast %7 : vector<1x1x64xf32> to vector<2x8x64xf32>
    %146 = arith.addf %144, %145 : vector<2x8x64xf32>
    %cst_69 = arith.constant 0.000000e+00 : f32
    %147 = vector.broadcast %cst_69 : f32 to vector<2x8x64xf32>
    %148 = arith.maximumf %146, %147 : vector<2x8x64xf32>
    %149 = vector.shape_cast %148 : vector<2x8x64xf32> to vector<16x64xf32>
    %cst_70 = arith.constant dense<0.000000e+00> : vector<16x32xf32>
    %150 = tpu.matmul %149, %8, %cst_70 {dimension_numbers = #tpu.dot_dimension_numbers<[1], [0], [0], [1], [0, 0, 1, 1], [], []>} : vector<16x64xf32>, vector<64x32xf32>, vector<16x32xf32> -> vector<16x32xf32>
    %151 = vector.shape_cast %150 : vector<16x32xf32> to vector<2x8x32xf32>
    %152 = vector.broadcast %9 : vector<1x1x32xf32> to vector<2x8x32xf32>
    %153 = arith.addf %151, %152 : vector<2x8x32xf32>
    %154 = arith.addf %119, %153 : vector<2x8x32xf32>
    %c0_71 = arith.constant 0 : index
    %c0_72 = arith.constant 0 : index
    %c0_73 = arith.constant 0 : index
    %155 = vector.load %arg10[%c0_71, %c0_72, %c0_73] : memref<1x1x32xf32, #tpu.memory_space<vmem>>, vector<1x1x32xf32>
    %c0_74 = arith.constant 0 : index
    %c0_75 = arith.constant 0 : index
    %c0_76 = arith.constant 0 : index
    %156 = vector.load %arg11[%c0_74, %c0_75, %c0_76] : memref<1x1x32xf32, #tpu.memory_space<vmem>>, vector<1x1x32xf32>
    %cst_77 = arith.constant dense<0.000000e+00> : vector<2x8xf32>
    %157 = vector.multi_reduction <add>, %154, %cst_77 [2] : vector<2x8x32xf32> to vector<2x8xf32>
    %158 = vector.shape_cast %157 : vector<2x8xf32> to vector<2x8x1xf32>
    %cst_78 = arith.constant 3.200000e+01 : f32
    %159 = vector.broadcast %cst_78 : f32 to vector<2x8x1xf32>
    %160 = arith.divf %158, %159 : vector<2x8x1xf32>
    %161 = vector.broadcast %160 : vector<2x8x1xf32> to vector<2x8x32xf32>
    %162 = arith.subf %154, %161 : vector<2x8x32xf32>
    %163 = arith.mulf %162, %162 : vector<2x8x32xf32>
    %cst_79 = arith.constant dense<0.000000e+00> : vector<2x8xf32>
    %164 = vector.multi_reduction <add>, %163, %cst_79 [2] : vector<2x8x32xf32> to vector<2x8xf32>
    %165 = vector.shape_cast %164 : vector<2x8xf32> to vector<2x8x1xf32>
    %cst_80 = arith.constant 3.100000e+01 : f32
    %166 = vector.broadcast %cst_80 : f32 to vector<2x8x1xf32>
    %167 = arith.divf %165, %166 : vector<2x8x1xf32>
    %168 = math.sqrt %167 : vector<2x8x1xf32>
    %169 = vector.broadcast %155 : vector<1x1x32xf32> to vector<2x8x32xf32>
    %170 = arith.mulf %169, %162 : vector<2x8x32xf32>
    %cst_81 = arith.constant 9.99999997E-7 : f32
    %171 = vector.broadcast %cst_81 : f32 to vector<2x8x1xf32>
    %172 = arith.addf %168, %171 : vector<2x8x1xf32>
    %173 = vector.broadcast %172 : vector<2x8x1xf32> to vector<2x8x32xf32>
    %174 = arith.divf %170, %173 : vector<2x8x32xf32>
    %175 = vector.broadcast %156 : vector<1x1x32xf32> to vector<2x8x32xf32>
    %176 = arith.addf %174, %175 : vector<2x8x32xf32>
    %177 = vector.shape_cast %176 : vector<2x8x32xf32> to vector<16x32xf32>
    %cst_82 = arith.constant dense<0.000000e+00> : vector<16x96xf32>
    %178 = tpu.matmul %177, %2, %cst_82 {dimension_numbers = #tpu.dot_dimension_numbers<[1], [0], [0], [1], [0, 0, 1, 1], [], []>} : vector<16x32xf32>, vector<32x96xf32>, vector<16x96xf32> -> vector<16x96xf32>
    %179 = vector.shape_cast %178 : vector<16x96xf32> to vector<2x8x96xf32>
    %180 = vector.broadcast %3 : vector<1x1x96xf32> to vector<2x8x96xf32>
    %181 = arith.addf %179, %180 : vector<2x8x96xf32>
    %182 = vector.extract_strided_slice %181 {offsets = [0, 0, 0], sizes = [2, 8, 8], strides = [1, 1, 1]} : vector<2x8x96xf32> to vector<2x8x8xf32>
    %183 = vector.extract_strided_slice %181 {offsets = [0, 0, 32], sizes = [2, 8, 8], strides = [1, 1, 1]} : vector<2x8x96xf32> to vector<2x8x8xf32>
    %184 = vector.extract_strided_slice %181 {offsets = [0, 0, 64], sizes = [2, 8, 8], strides = [1, 1, 1]} : vector<2x8x96xf32> to vector<2x8x8xf32>
    "tpu.trace_start"() <{level = 10 : i32, message = "bqd,bkd->bqk"}> : () -> ()
    %cst_83 = arith.constant dense<0.000000e+00> : vector<2x8x8xf32>
    %185 = tpu.matmul %182, %183, %cst_83 {dimension_numbers = #tpu.dot_dimension_numbers<[2], [2], [1], [1], [0, 0, 0, 1, 1, 1], [0], [0]>} : vector<2x8x8xf32>, vector<2x8x8xf32>, vector<2x8x8xf32> -> vector<2x8x8xf32>
    "tpu.trace_stop"() : () -> ()
    %cst_84 = arith.constant 0.353553385 : f32
    %186 = vector.broadcast %cst_84 : f32 to vector<2x8x8xf32>
    %187 = arith.mulf %185, %186 : vector<2x8x8xf32>
    %188 = vector.broadcast %1 : vector<2x1x8xf32> to vector<2x8x8xf32>
    %189 = arith.addf %187, %188 : vector<2x8x8xf32>
    %cst_85 = arith.constant dense<0xFF800000> : vector<2x8xf32>
    %190 = vector.multi_reduction <maximumf>, %189, %cst_85 [2] : vector<2x8x8xf32> to vector<2x8xf32>
    %191 = vector.shape_cast %190 : vector<2x8xf32> to vector<2x8x1xf32>
    %192 = vector.broadcast %191 : vector<2x8x1xf32> to vector<2x8x8xf32>
    %193 = arith.subf %189, %192 : vector<2x8x8xf32>
    %194 = math.exp %193 : vector<2x8x8xf32>
    %cst_86 = arith.constant dense<0.000000e+00> : vector<2x8xf32>
    %195 = vector.multi_reduction <add>, %194, %cst_86 [2] : vector<2x8x8xf32> to vector<2x8xf32>
    %196 = vector.shape_cast %195 : vector<2x8xf32> to vector<2x8x1xf32>
    %197 = tpu.reciprocal %196 {approx = true} : vector<2x8x1xf32> -> vector<2x8x1xf32>
    %198 = vector.broadcast %197 : vector<2x8x1xf32> to vector<2x8x8xf32>
    %199 = arith.mulf %194, %198 : vector<2x8x8xf32>
    "tpu.trace_start"() <{level = 10 : i32, message = "bqk,bkd->bqd"}> : () -> ()
    %cst_87 = arith.constant dense<0.000000e+00> : vector<2x8x8xf32>
    %200 = tpu.matmul %199, %184, %cst_87 {dimension_numbers = #tpu.dot_dimension_numbers<[2], [1], [1], [2], [0, 0, 0, 1, 1, 2], [0], [0]>} : vector<2x8x8xf32>, vector<2x8x8xf32>, vector<2x8x8xf32> -> vector<2x8x8xf32>
    "tpu.trace_stop"() : () -> ()
    %201 = vector.extract_strided_slice %181 {offsets = [0, 0, 8], sizes = [2, 8, 8], strides = [1, 1, 1]} : vector<2x8x96xf32> to vector<2x8x8xf32>
    %202 = vector.extract_strided_slice %181 {offsets = [0, 0, 40], sizes = [2, 8, 8], strides = [1, 1, 1]} : vector<2x8x96xf32> to vector<2x8x8xf32>
    %203 = vector.extract_strided_slice %181 {offsets = [0, 0, 72], sizes = [2, 8, 8], strides = [1, 1, 1]} : vector<2x8x96xf32> to vector<2x8x8xf32>
    "tpu.trace_start"() <{level = 10 : i32, message = "bqd,bkd->bqk"}> : () -> ()
    %cst_88 = arith.constant dense<0.000000e+00> : vector<2x8x8xf32>
    %204 = tpu.matmul %201, %202, %cst_88 {dimension_numbers = #tpu.dot_dimension_numbers<[2], [2], [1], [1], [0, 0, 0, 1, 1, 1], [0], [0]>} : vector<2x8x8xf32>, vector<2x8x8xf32>, vector<2x8x8xf32> -> vector<2x8x8xf32>
    "tpu.trace_stop"() : () -> ()
    %cst_89 = arith.constant 0.353553385 : f32
    %205 = vector.broadcast %cst_89 : f32 to vector<2x8x8xf32>
    %206 = arith.mulf %204, %205 : vector<2x8x8xf32>
    %207 = vector.broadcast %1 : vector<2x1x8xf32> to vector<2x8x8xf32>
    %208 = arith.addf %206, %207 : vector<2x8x8xf32>
    %cst_90 = arith.constant dense<0xFF800000> : vector<2x8xf32>
    %209 = vector.multi_reduction <maximumf>, %208, %cst_90 [2] : vector<2x8x8xf32> to vector<2x8xf32>
    %210 = vector.shape_cast %209 : vector<2x8xf32> to vector<2x8x1xf32>
    %211 = vector.broadcast %210 : vector<2x8x1xf32> to vector<2x8x8xf32>
    %212 = arith.subf %208, %211 : vector<2x8x8xf32>
    %213 = math.exp %212 : vector<2x8x8xf32>
    %cst_91 = arith.constant dense<0.000000e+00> : vector<2x8xf32>
    %214 = vector.multi_reduction <add>, %213, %cst_91 [2] : vector<2x8x8xf32> to vector<2x8xf32>
    %215 = vector.shape_cast %214 : vector<2x8xf32> to vector<2x8x1xf32>
    %216 = tpu.reciprocal %215 {approx = true} : vector<2x8x1xf32> -> vector<2x8x1xf32>
    %217 = vector.broadcast %216 : vector<2x8x1xf32> to vector<2x8x8xf32>
    %218 = arith.mulf %213, %217 : vector<2x8x8xf32>
    "tpu.trace_start"() <{level = 10 : i32, message = "bqk,bkd->bqd"}> : () -> ()
    %cst_92 = arith.constant dense<0.000000e+00> : vector<2x8x8xf32>
    %219 = tpu.matmul %218, %203, %cst_92 {dimension_numbers = #tpu.dot_dimension_numbers<[2], [1], [1], [2], [0, 0, 0, 1, 1, 2], [0], [0]>} : vector<2x8x8xf32>, vector<2x8x8xf32>, vector<2x8x8xf32> -> vector<2x8x8xf32>
    "tpu.trace_stop"() : () -> ()
    %220 = vector.extract_strided_slice %181 {offsets = [0, 0, 16], sizes = [2, 8, 8], strides = [1, 1, 1]} : vector<2x8x96xf32> to vector<2x8x8xf32>
    %221 = vector.extract_strided_slice %181 {offsets = [0, 0, 48], sizes = [2, 8, 8], strides = [1, 1, 1]} : vector<2x8x96xf32> to vector<2x8x8xf32>
    %222 = vector.extract_strided_slice %181 {offsets = [0, 0, 80], sizes = [2, 8, 8], strides = [1, 1, 1]} : vector<2x8x96xf32> to vector<2x8x8xf32>
    "tpu.trace_start"() <{level = 10 : i32, message = "bqd,bkd->bqk"}> : () -> ()
    %cst_93 = arith.constant dense<0.000000e+00> : vector<2x8x8xf32>
    %223 = tpu.matmul %220, %221, %cst_93 {dimension_numbers = #tpu.dot_dimension_numbers<[2], [2], [1], [1], [0, 0, 0, 1, 1, 1], [0], [0]>} : vector<2x8x8xf32>, vector<2x8x8xf32>, vector<2x8x8xf32> -> vector<2x8x8xf32>
    "tpu.trace_stop"() : () -> ()
    %cst_94 = arith.constant 0.353553385 : f32
    %224 = vector.broadcast %cst_94 : f32 to vector<2x8x8xf32>
    %225 = arith.mulf %223, %224 : vector<2x8x8xf32>
    %226 = vector.broadcast %1 : vector<2x1x8xf32> to vector<2x8x8xf32>
    %227 = arith.addf %225, %226 : vector<2x8x8xf32>
    %cst_95 = arith.constant dense<0xFF800000> : vector<2x8xf32>
    %228 = vector.multi_reduction <maximumf>, %227, %cst_95 [2] : vector<2x8x8xf32> to vector<2x8xf32>
    %229 = vector.shape_cast %228 : vector<2x8xf32> to vector<2x8x1xf32>
    %230 = vector.broadcast %229 : vector<2x8x1xf32> to vector<2x8x8xf32>
    %231 = arith.subf %227, %230 : vector<2x8x8xf32>
    %232 = math.exp %231 : vector<2x8x8xf32>
    %cst_96 = arith.constant dense<0.000000e+00> : vector<2x8xf32>
    %233 = vector.multi_reduction <add>, %232, %cst_96 [2] : vector<2x8x8xf32> to vector<2x8xf32>
    %234 = vector.shape_cast %233 : vector<2x8xf32> to vector<2x8x1xf32>
    %235 = tpu.reciprocal %234 {approx = true} : vector<2x8x1xf32> -> vector<2x8x1xf32>
    %236 = vector.broadcast %235 : vector<2x8x1xf32> to vector<2x8x8xf32>
    %237 = arith.mulf %232, %236 : vector<2x8x8xf32>
    "tpu.trace_start"() <{level = 10 : i32, message = "bqk,bkd->bqd"}> : () -> ()
    %cst_97 = arith.constant dense<0.000000e+00> : vector<2x8x8xf32>
    %238 = tpu.matmul %237, %222, %cst_97 {dimension_numbers = #tpu.dot_dimension_numbers<[2], [1], [1], [2], [0, 0, 0, 1, 1, 2], [0], [0]>} : vector<2x8x8xf32>, vector<2x8x8xf32>, vector<2x8x8xf32> -> vector<2x8x8xf32>
    "tpu.trace_stop"() : () -> ()
    %239 = vector.extract_strided_slice %181 {offsets = [0, 0, 24], sizes = [2, 8, 8], strides = [1, 1, 1]} : vector<2x8x96xf32> to vector<2x8x8xf32>
    %240 = vector.extract_strided_slice %181 {offsets = [0, 0, 56], sizes = [2, 8, 8], strides = [1, 1, 1]} : vector<2x8x96xf32> to vector<2x8x8xf32>
    %241 = vector.extract_strided_slice %181 {offsets = [0, 0, 88], sizes = [2, 8, 8], strides = [1, 1, 1]} : vector<2x8x96xf32> to vector<2x8x8xf32>
    "tpu.trace_start"() <{level = 10 : i32, message = "bqd,bkd->bqk"}> : () -> ()
    %cst_98 = arith.constant dense<0.000000e+00> : vector<2x8x8xf32>
    %242 = tpu.matmul %239, %240, %cst_98 {dimension_numbers = #tpu.dot_dimension_numbers<[2], [2], [1], [1], [0, 0, 0, 1, 1, 1], [0], [0]>} : vector<2x8x8xf32>, vector<2x8x8xf32>, vector<2x8x8xf32> -> vector<2x8x8xf32>
    "tpu.trace_stop"() : () -> ()
    %cst_99 = arith.constant 0.353553385 : f32
    %243 = vector.broadcast %cst_99 : f32 to vector<2x8x8xf32>
    %244 = arith.mulf %242, %243 : vector<2x8x8xf32>
    %245 = vector.broadcast %1 : vector<2x1x8xf32> to vector<2x8x8xf32>
    %246 = arith.addf %244, %245 : vector<2x8x8xf32>
    %cst_100 = arith.constant dense<0xFF800000> : vector<2x8xf32>
    %247 = vector.multi_reduction <maximumf>, %246, %cst_100 [2] : vector<2x8x8xf32> to vector<2x8xf32>
    %248 = vector.shape_cast %247 : vector<2x8xf32> to vector<2x8x1xf32>
    %249 = vector.broadcast %248 : vector<2x8x1xf32> to vector<2x8x8xf32>
    %250 = arith.subf %246, %249 : vector<2x8x8xf32>
    %251 = math.exp %250 : vector<2x8x8xf32>
    %cst_101 = arith.constant dense<0.000000e+00> : vector<2x8xf32>
    %252 = vector.multi_reduction <add>, %251, %cst_101 [2] : vector<2x8x8xf32> to vector<2x8xf32>
    %253 = vector.shape_cast %252 : vector<2x8xf32> to vector<2x8x1xf32>
    %254 = tpu.reciprocal %253 {approx = true} : vector<2x8x1xf32> -> vector<2x8x1xf32>
    %255 = vector.broadcast %254 : vector<2x8x1xf32> to vector<2x8x8xf32>
    %256 = arith.mulf %251, %255 : vector<2x8x8xf32>
    "tpu.trace_start"() <{level = 10 : i32, message = "bqk,bkd->bqd"}> : () -> ()
    %cst_102 = arith.constant dense<0.000000e+00> : vector<2x8x8xf32>
    %257 = tpu.matmul %256, %241, %cst_102 {dimension_numbers = #tpu.dot_dimension_numbers<[2], [1], [1], [2], [0, 0, 0, 1, 1, 2], [0], [0]>} : vector<2x8x8xf32>, vector<2x8x8xf32>, vector<2x8x8xf32> -> vector<2x8x8xf32>
    "tpu.trace_stop"() : () -> ()
    %258 = tpu.concatenate %200, %219, %238, %257 in 2 : vector<2x8x8xf32>, vector<2x8x8xf32>, vector<2x8x8xf32>, vector<2x8x8xf32> -> vector<2x8x32xf32>
    %259 = vector.shape_cast %258 : vector<2x8x32xf32> to vector<16x32xf32>
    %cst_103 = arith.constant dense<0.000000e+00> : vector<16x32xf32>
    %260 = tpu.matmul %259, %4, %cst_103 {dimension_numbers = #tpu.dot_dimension_numbers<[1], [0], [0], [1], [0, 0, 1, 1], [], []>} : vector<16x32xf32>, vector<32x32xf32>, vector<16x32xf32> -> vector<16x32xf32>
    %261 = vector.shape_cast %260 : vector<16x32xf32> to vector<2x8x32xf32>
    %262 = vector.broadcast %5 : vector<1x1x32xf32> to vector<2x8x32xf32>
    %263 = arith.addf %261, %262 : vector<2x8x32xf32>
    %264 = arith.addf %154, %263 : vector<2x8x32xf32>
    %c0_104 = arith.constant 0 : index
    %c0_105 = arith.constant 0 : index
    %c0_106 = arith.constant 0 : index
    %265 = vector.load %arg12[%c0_104, %c0_105, %c0_106] : memref<1x1x32xf32, #tpu.memory_space<vmem>>, vector<1x1x32xf32>
    %c0_107 = arith.constant 0 : index
    %c0_108 = arith.constant 0 : index
    %c0_109 = arith.constant 0 : index
    %266 = vector.load %arg13[%c0_107, %c0_108, %c0_109] : memref<1x1x32xf32, #tpu.memory_space<vmem>>, vector<1x1x32xf32>
    %cst_110 = arith.constant dense<0.000000e+00> : vector<2x8xf32>
    %267 = vector.multi_reduction <add>, %264, %cst_110 [2] : vector<2x8x32xf32> to vector<2x8xf32>
    %268 = vector.shape_cast %267 : vector<2x8xf32> to vector<2x8x1xf32>
    %cst_111 = arith.constant 3.200000e+01 : f32
    %269 = vector.broadcast %cst_111 : f32 to vector<2x8x1xf32>
    %270 = arith.divf %268, %269 : vector<2x8x1xf32>
    %271 = vector.broadcast %270 : vector<2x8x1xf32> to vector<2x8x32xf32>
    %272 = arith.subf %264, %271 : vector<2x8x32xf32>
    %273 = arith.mulf %272, %272 : vector<2x8x32xf32>
    %cst_112 = arith.constant dense<0.000000e+00> : vector<2x8xf32>
    %274 = vector.multi_reduction <add>, %273, %cst_112 [2] : vector<2x8x32xf32> to vector<2x8xf32>
    %275 = vector.shape_cast %274 : vector<2x8xf32> to vector<2x8x1xf32>
    %cst_113 = arith.constant 3.100000e+01 : f32
    %276 = vector.broadcast %cst_113 : f32 to vector<2x8x1xf32>
    %277 = arith.divf %275, %276 : vector<2x8x1xf32>
    %278 = math.sqrt %277 : vector<2x8x1xf32>
    %279 = vector.broadcast %265 : vector<1x1x32xf32> to vector<2x8x32xf32>
    %280 = arith.mulf %279, %272 : vector<2x8x32xf32>
    %cst_114 = arith.constant 9.99999997E-7 : f32
    %281 = vector.broadcast %cst_114 : f32 to vector<2x8x1xf32>
    %282 = arith.addf %278, %281 : vector<2x8x1xf32>
    %283 = vector.broadcast %282 : vector<2x8x1xf32> to vector<2x8x32xf32>
    %284 = arith.divf %280, %283 : vector<2x8x32xf32>
    %285 = vector.broadcast %266 : vector<1x1x32xf32> to vector<2x8x32xf32>
    %286 = arith.addf %284, %285 : vector<2x8x32xf32>
    %287 = vector.shape_cast %286 : vector<2x8x32xf32> to vector<16x32xf32>
    %cst_115 = arith.constant dense<0.000000e+00> : vector<16x64xf32>
    %288 = tpu.matmul %287, %6, %cst_115 {dimension_numbers = #tpu.dot_dimension_numbers<[1], [0], [0], [1], [0, 0, 1, 1], [], []>} : vector<16x32xf32>, vector<32x64xf32>, vector<16x64xf32> -> vector<16x64xf32>
    %289 = vector.shape_cast %288 : vector<16x64xf32> to vector<2x8x64xf32>
    %290 = vector.broadcast %7 : vector<1x1x64xf32> to vector<2x8x64xf32>
    %291 = arith.addf %289, %290 : vector<2x8x64xf32>
    %cst_116 = arith.constant 0.000000e+00 : f32
    %292 = vector.broadcast %cst_116 : f32 to vector<2x8x64xf32>
    %293 = arith.maximumf %291, %292 : vector<2x8x64xf32>
    %294 = vector.shape_cast %293 : vector<2x8x64xf32> to vector<16x64xf32>
    %cst_117 = arith.constant dense<0.000000e+00> : vector<16x32xf32>
    %295 = tpu.matmul %294, %8, %cst_117 {dimension_numbers = #tpu.dot_dimension_numbers<[1], [0], [0], [1], [0, 0, 1, 1], [], []>} : vector<16x64xf32>, vector<64x32xf32>, vector<16x32xf32> -> vector<16x32xf32>
    %296 = vector.shape_cast %295 : vector<16x32xf32> to vector<2x8x32xf32>
    %297 = vector.broadcast %9 : vector<1x1x32xf32> to vector<2x8x32xf32>
    %298 = arith.addf %296, %297 : vector<2x8x32xf32>
    %299 = arith.addf %264, %298 : vector<2x8x32xf32>
    %c0_118 = arith.constant 0 : index
    %c0_119 = arith.constant 0 : index
    %c0_120 = arith.constant 0 : index
    %300 = vector.load %arg14[%c0_118, %c0_119, %c0_120] : memref<1x1x32xf32, #tpu.memory_space<vmem>>, vector<1x1x32xf32>
    %c0_121 = arith.constant 0 : index
    %c0_122 = arith.constant 0 : index
    %c0_123 = arith.constant 0 : index
    %301 = vector.load %arg15[%c0_121, %c0_122, %c0_123] : memref<1x1x32xf32, #tpu.memory_space<vmem>>, vector<1x1x32xf32>
    %cst_124 = arith.constant dense<0.000000e+00> : vector<2x8xf32>
    %302 = vector.multi_reduction <add>, %299, %cst_124 [2] : vector<2x8x32xf32> to vector<2x8xf32>
    %303 = vector.shape_cast %302 : vector<2x8xf32> to vector<2x8x1xf32>
    %cst_125 = arith.constant 3.200000e+01 : f32
    %304 = vector.broadcast %cst_125 : f32 to vector<2x8x1xf32>
    %305 = arith.divf %303, %304 : vector<2x8x1xf32>
    %306 = vector.broadcast %305 : vector<2x8x1xf32> to vector<2x8x32xf32>
    %307 = arith.subf %299, %306 : vector<2x8x32xf32>
    %308 = arith.mulf %307, %307 : vector<2x8x32xf32>
    %cst_126 = arith.constant dense<0.000000e+00> : vector<2x8xf32>
    %309 = vector.multi_reduction <add>, %308, %cst_126 [2] : vector<2x8x32xf32> to vector<2x8xf32>
    %310 = vector.shape_cast %309 : vector<2x8xf32> to vector<2x8x1xf32>
    %cst_127 = arith.constant 3.100000e+01 : f32
    %311 = vector.broadcast %cst_127 : f32 to vector<2x8x1xf32>
    %312 = arith.divf %310, %311 : vector<2x8x1xf32>
    %313 = math.sqrt %312 : vector<2x8x1xf32>
    %314 = vector.broadcast %300 : vector<1x1x32xf32> to vector<2x8x32xf32>
    %315 = arith.mulf %314, %307 : vector<2x8x32xf32>
    %cst_128 = arith.constant 9.99999997E-7 : f32
    %316 = vector.broadcast %cst_128 : f32 to vector<2x8x1xf32>
    %317 = arith.addf %313, %316 : vector<2x8x1xf32>
    %318 = vector.broadcast %317 : vector<2x8x1xf32> to vector<2x8x32xf32>
    %319 = arith.divf %315, %318 : vector<2x8x32xf32>
    %320 = vector.broadcast %301 : vector<1x1x32xf32> to vector<2x8x32xf32>
    %321 = arith.addf %319, %320 : vector<2x8x32xf32>
    %c0_129 = arith.constant 0 : index
    %c0_130 = arith.constant 0 : index
    %c0_131 = arith.constant 0 : index
    %322 = vector.load %arg16[%c0_129, %c0_130, %c0_131] : memref<2x8x32xf32, #tpu.memory_space<vmem>>, vector<2x8x32xf32>
    tpu.vector_store %arg16[%c0_129, %c0_130, %c0_131], %321 {strides = array<i32>} : memref<2x8x32xf32, #tpu.memory_space<vmem>>, vector<2x8x32xf32>,
    return
  }
}

</mosaic_0001>

<llo_original>
// kernel: encoder_forward.1
$region0: #{encoder_forward.1}
  #allocation0 [shape = 'u32[]', space=smem, size = 0x4, offset = 0x4, fixed_abs, tag = 'smem constant byte address 0x4 - core index']
  #allocation1 [shape = 'u32[144,128]{1,0:T(1,128)}', space=vmem, size = 0x12000, scoped, tag = 'internal scratch']
  %s0 = inlined_call_operand.hbm [shape: f32[2,8,32], index: 0, kind: input, shape index: {}]
  %s1 = inlined_call_operand.vmem [shape: f32[2,1,8], index: 1, kind: input, shape index: {}]
  %s2 = inlined_call_operand.vmem [shape: f32[32,96], index: 2, kind: input, shape index: {}]
  %s3 = inlined_call_operand.vmem [shape: f32[1,1,96], index: 3, kind: input, shape index: {}]
  %s4 = inlined_call_operand.vmem [shape: f32[32,32], index: 4, kind: input, shape index: {}]
  %s5 = inlined_call_operand.vmem [shape: f32[1,1,32], index: 5, kind: input, shape index: {}]
  %s6 = inlined_call_operand.vmem [shape: f32[32,64], index: 6, kind: input, shape index: {}]
  %s7 = inlined_call_operand.vmem [shape: f32[1,1,64], index: 7, kind: input, shape index: {}]
  %s8 = inlined_call_operand.vmem [shape: f32[64,32], index: 8, kind: input, shape index: {}]
  %s9 = inlined_call_operand.vmem [shape: f32[1,1,32], index: 9, kind: input, shape index: {}]
  %s10 = inlined_call_operand.vmem [shape: f32[1,1,32], index: 10, kind: input, shape index: {}]
  %s11 = inlined_call_operand.vmem [shape: f32[1,1,32], index: 11, kind: input, shape index: {}]
  %s12 = inlined_call_operand.vmem [shape: f32[1,1,32], index: 12, kind: input, shape index: {}]
  %s13 = inlined_call_operand.vmem [shape: f32[1,1,32], index: 13, kind: input, shape index: {}]
  %s14 = inlined_call_operand.vmem [shape: f32[1,1,32], index: 14, kind: input, shape index: {}]
  %s15 = inlined_call_operand.vmem [shape: f32[1,1,32], index: 15, kind: input, shape index: {}]
  %s16 = inlined_call_operand.hbm [shape: f32[2,8,32], index: 16, kind: output, shape index: {}]
  %s17 = sld [smem:[#allocation0]]
  $region78: #{encoder_forward.1} parent=0
    _
  %s19 = ssub.s32 1, %s17
  %s20 = scalar_select 0, %s19, %s17
  $region1: #{encoder_forward.1} parent=0
    #allocation2 [shape = 'u8[8192]{0}', space=vmem, size = 0x2000, scoped, tag = 'input window, operand 0, single buffered']
    #allocation3 [shape = 's32[1]{0}', space=sflag, size = 0x4, scoped, tag = 'scoped memory for encoder_forward.1']
    #allocation4 [shape = 's32[1]{0}', space=sflag, size = 0x4, scoped, tag = 'scoped memory for encoder_forward.1']
    #allocation5 [shape = 'u8[8192]{0}', space=vmem, size = 0x2000, scoped, tag = 'output window, operand 0, single buffered']
    %21 = vsyncpa [#allocation3], 0
    %22 = vsyncpa [#allocation4], 0
    // Predicated region
    $region2: #{encoder_forward.1} parent=1 // pred_check
      _
    $region3: #{encoder_forward.1} parent=1 // pred_check_branch
      %24 = sbr.rel (0) target = $region5
    $region4: #{encoder_forward.1} parent=1 // pred_region
      %s26 = ssub.s32 256, 256
      %27 = vsyncadd [#allocation3], %s26
      %s28 = sshll.u32 [#allocation2], 4
      %s29 = int_to_ptr.vmem [resolvable:$true] %s28
      %34 = dma.hbm_to_vmem [thread:$0]  %s0, 256, %s29, [#allocation3], 128, 128, 8
    $region5: #{encoder_forward.1} parent=1 // pred_fallthru
      _
    // Predicated region
    $region6: #{encoder_forward.1} parent=1 // pred_check
      _
    $region7: #{encoder_forward.1} parent=1 // pred_check_branch
      %36 = sbr.rel (0) target = $region9
    $region8: #{encoder_forward.1} parent=1 // pred_region
      _
    $region9: #{encoder_forward.1} parent=1 // pred_fallthru
      _
    // Predicated region
    $region10: #{encoder_forward.1} parent=1 // pred_check
      _
    $region11: #{encoder_forward.1} parent=1 // pred_check_branch
      %38 = sbr.rel (0) target = $region13
    $region12: #{encoder_forward.1} parent=1 // pred_region
      _
    $region13: #{encoder_forward.1} parent=1 // pred_fallthru
      _
    // Predicated region
    $region14: #{encoder_forward.1} parent=1 // pred_check
      _
    $region15: #{encoder_forward.1} parent=1 // pred_check_branch
      %40 = sbr.rel (0) target = $region17
    $region16: #{encoder_forward.1} parent=1 // pred_region
      _
    $region17: #{encoder_forward.1} parent=1 // pred_fallthru
      _
    // Predicated region
    $region18: #{encoder_forward.1} parent=1 // pred_check
      _
    $region19: #{encoder_forward.1} parent=1 // pred_check_branch
      %42 = sbr.rel (0) target = $region21
    $region20: #{encoder_forward.1} parent=1 // pred_region
      _
    $region21: #{encoder_forward.1} parent=1 // pred_fallthru
      _
    // Predicated region
    $region22: #{encoder_forward.1} parent=1 // pred_check
      _
    $region23: #{encoder_forward.1} parent=1 // pred_check_branch
      %44 = sbr.rel (0) target = $region25
    $region24: #{encoder_forward.1} parent=1 // pred_region
      _
    $region25: #{encoder_forward.1} parent=1 // pred_fallthru
      _
    // Predicated region
    $region26: #{encoder_forward.1} parent=1 // pred_check
      _
    $region27: #{encoder_forward.1} parent=1 // pred_check_branch
      %46 = sbr.rel (0) target = $region29
    $region28: #{encoder_forward.1} parent=1 // pred_region
      _
    $region29: #{encoder_forward.1} parent=1 // pred_fallthru
      _
    // Predicated region
    $region30: #{encoder_forward.1} parent=1 // pred_check
      _
    $region31: #{encoder_forward.1} parent=1 // pred_check_branch
      %48 = sbr.rel (0) target = $region33
    $region32: #{encoder_forward.1} parent=1 // pred_region
      _
    $region33: #{encoder_forward.1} parent=1 // pred_fallthru
      _
    // Predicated region
    $region34: #{encoder_forward.1} parent=1 // pred_check
      _
    $region35: #{encoder_forward.1} parent=1 // pred_check_branch
      %50 = sbr.rel (0) target = $region37
    $region36: #{encoder_forward.1} parent=1 // pred_region
      _
    $region37: #{encoder_forward.1} parent=1 // pred_fallthru
      _
    // Predicated region
    $region38: #{encoder_forward.1} parent=1 // pred_check
      _
    $region39: #{encoder_forward.1} parent=1 // pred_check_branch
      %52 = sbr.rel (0) target = $region41
    $region40: #{encoder_forward.1} parent=1 // pred_region
      _
    $region41: #{encoder_forward.1} parent=1 // pred_fallthru
      _
    // Predicated region
    $region42: #{encoder_forward.1} parent=1 // pred_check
      _
    $region43: #{encoder_forward.1} parent=1 // pred_check_branch
      %54 = sbr.rel (0) target = $region45
    $region44: #{encoder_forward.1} parent=1 // pred_region
      _
    $region45: #{encoder_forward.1} parent=1 // pred_fallthru
      _
    // Predicated region
    $region46: #{encoder_forward.1} parent=1 // pred_check
      _
    $region47: #{encoder_forward.1} parent=1 // pred_check_branch
      %56 = sbr.rel (0) target = $region49
    $region48: #{encoder_forward.1} parent=1 // pred_region
      _
    $region49: #{encoder_forward.1} parent=1 // pred_fallthru
      _
    // Predicated region
    $region50: #{encoder_forward.1} parent=1 // pred_check
      _
    $region51: #{encoder_forward.1} parent=1 // pred_check_branch
      %58 = sbr.rel (0) target = $region53
    $region52: #{encoder_forward.1} parent=1 // pred_region
      _
    $region53: #{encoder_forward.1} parent=1 // pred_fallthru
      _
    // Predicated region
    $region54: #{encoder_forward.1} parent=1 // pred_check
      _
    $region55: #{encoder_forward.1} parent=1 // pred_check_branch
      %60 = sbr.rel (0) target = $region57
    $region56: #{encoder_forward.1} parent=1 // pred_region
      _
    $region57: #{encoder_forward.1} parent=1 // pred_fallthru
      _
    // Predicated region
    $region58: #{encoder_forward.1} parent=1 // pred_check
      _
    $region59: #{encoder_forward.1} parent=1 // pred_check_branch
      %62 = sbr.rel (0) target = $region61
    $region60: #{encoder_forward.1} parent=1 // pred_region
      _
    $region61: #{encoder_forward.1} parent=1 // pred_fallthru
      _
    // Predicated region
    $region62: #{encoder_forward.1} parent=1 // pred_check
      _
    $region63: #{encoder_forward.1} parent=1 // pred_check_branch
      %64 = sbr.rel (0) target = $region65
    $region64: #{encoder_forward.1} parent=1 // pred_region
      _
    $region65: #{encoder_forward.1} parent=1 // pred_fallthru
      _
    // Predicated region
    $region66: #{encoder_forward.1} parent=1 // pred_check
      _
    $region67: #{encoder_forward.1} parent=1 // pred_check_branch
      %66 = sbr.rel (0) target = $region69
    $region68: #{encoder_forward.1} parent=1 // pred_region
      %67 = dma.done [#allocation3], 256
    $region69: #{encoder_forward.1} parent=1 // pred_fallthru
      _
    %v68 = vld [vmem:[#allocation2] sm:$0xff]
    %v69 = vld [vmem:[#allocation2 + $0x8] sm:$0xff]
    %v70 = vld [vmem:[%s1] sm:$0x1]
    %v71 = vld [vmem:[%s1 + $0x1] sm:$0x1]
    %v72 = vld [vmem:[%s2] sm:$0xff]
    %v73 = vld [vmem:[%s2 + $0x8] sm:$0xff]
    %v74 = vld [vmem:[%s2 + $0x10] sm:$0xff]
    %v75 = vld [vmem:[%s2 + $0x18] sm:$0xff]
    %v76 = vld [vmem:[%s3] sm:$0x1]
    %v77 = vld [vmem:[%s4] sm:$0xff]
    %v78 = vld [vmem:[%s4 + $0x8] sm:$0xff]
    %v79 = vld [vmem:[%s4 + $0x10] sm:$0xff]
    %v80 = vld [vmem:[%s4 + $0x18] sm:$0xff]
    %v81 = vld [vmem:[%s5] sm:$0x1]
    %v82 = vld [vmem:[%s6] sm:$0xff]
    %v83 = vld [vmem:[%s6 + $0x8] sm:$0xff]
    %v84 = vld [vmem:[%s6 + $0x10] sm:$0xff]
    %v85 = vld [vmem:[%s6 + $0x18] sm:$0xff]
    %v86 = vld [vmem:[%s7] sm:$0x1]
    %v87 = vld [vmem:[%s8] sm:$0xff]
    %v88 = vld [vmem:[%s8 + $0x8] sm:$0xff]
    %v89 = vld [vmem:[%s8 + $0x10] sm:$0xff]
    %v90 = vld [vmem:[%s8 + $0x18] sm:$0xff]
    %v91 = vld [vmem:[%s8 + $0x20] sm:$0xff]
    %v92 = vld [vmem:[%s8 + $0x28] sm:$0xff]
    %v93 = vld [vmem:[%s8 + $0x30] sm:$0xff]
    %v94 = vld [vmem:[%s8 + $0x38] sm:$0xff]
    %v95 = vld [vmem:[%s9] sm:$0x1]
    %v96 = vld [vmem:[%s10] sm:$0x1]
    %v97 = vld [vmem:[%s11] sm:$0x1]
    %vm98 = vcmask 261120
    %v99 = vsel %vm98, %v68, 0.0
    %100 = vadd.xlane.f32.xlu0 %v99
    %v101 = vpop.xlane.xlu0 %100
    %v102 = vsel %vm98, %v69, 0.0
    %103 = vadd.xlane.f32.xlu0 %v102
    %v104 = vpop.xlane.xlu0 %103
    %v105 = vrcp.pop 32.0
    %v106 = vmul.f32 %v101, %v105
    %v107 = vmul.f32 %v104, %v105
    %v108 = vsub.f32 %v68, %v106
    %v109 = vsub.f32 %v69, %v107
    %v110 = vmul.f32 %v108, %v108
    %v111 = vmul.f32 %v109, %v109
    %v112 = vsel %vm98, %v110, 0.0
    %113 = vadd.xlane.f32.xlu0 %v112
    %v114 = vpop.xlane.xlu0 %113
    %v115 = vsel %vm98, %v111, 0.0
    %116 = vadd.xlane.f32.xlu0 %v115
    %v117 = vpop.xlane.xlu0 %116
    %v118 = vrcp.pop 31.0
    %v119 = vmul.f32 %v114, %v118
    %v120 = vmul.f32 %v117, %v118
    %v121 = vrsqrt.pop %v119
    %v122 = vmul.f32 %v119, %v121
    %vm123 = vcmp.eq.f32.partialorder %v119, inf
    %v124 = vsel %vm123, %v119, %v122
    %vm125 = vcmp.eq.f32.partialorder %v119, 0.0
    %v126 = vand.u32 %v119, 2147483648
    %v127 = vsel %vm125, %v126, %v124
    %v128 = vrsqrt.pop %v120
    %v129 = vmul.f32 %v120, %v128
    %vm130 = vcmp.eq.f32.partialorder %v120, inf
    %v131 = vsel %vm130, %v120, %v129
    %vm132 = vcmp.eq.f32.partialorder %v120, 0.0
    %v133 = vand.u32 %v120, 2147483648
    %v134 = vsel %vm132, %v133, %v131
    %v136 = vlaneseq
    %v137 = vshrl.u32 %v136, 7
    %v138 = vsub.s32 0, %v137
    %v139 = vrot.slane %v96, %v138
    %v141 = vmul.f32 %v139, %v108
    %v142 = vmul.f32 %v139, %v109
    %v143 = vadd.f32 %v127, 1e-06
    %v144 = vadd.f32 %v134, 1e-06
    %v145 = vrcp.pop %v143
    %v146 = vmul.f32 %v141, %v145
    %v147 = vrcp.pop %v144
    %v148 = vmul.f32 %v142, %v147
    %v150 = vlaneseq
    %v151 = vshrl.u32 %v150, 7
    %v152 = vsub.s32 0, %v151
    %v153 = vrot.slane %v97, %v152
    %v155 = vadd.f32 %v146, %v153
    %v156 = vadd.f32 %v148, %v153
    %v158 = vsel %vm98, %v155, 0
    %v161 = vsel %vm98, %v156, 0
    %163 = vmatprep.subr.mxu0 0.0
    %164 = vmatpush1.msra.mxu0 %v72
    %165 = vmatprep.subr.mxu0 0.0
    %166 = vmatpush1.msra.mxu0 %v73
    %167 = vmatprep.subr.mxu0 0.0
    %168 = vmatpush1.msra.mxu0 %v74
    %169 = vmatprep.subr.mxu0 0.0
    %170 = vmatpush1.msra.mxu0 %v75
    %171 = vmatprep.subr.mxu0 0.0
    %172 = vmatpush1.msra.mxu0 0.0
    %173 = vmatprep.subr.mxu0 0.0
    %174 = vmatpush1.msra.mxu0 0.0
    %175 = vmatprep.subr.mxu0 0.0
    %176 = vmatpush1.msra.mxu0 0.0
    %177 = vmatprep.subr.mxu0 0.0
    %178 = vmatpush1.msra.mxu0 0.0
    %179 = vmatprep.subr.mxu0 0.0
    %180 = vmatpush1.msra.mxu0 0.0
    %181 = vmatprep.subr.mxu0 0.0
    %182 = vmatpush1.msra.mxu0 0.0
    %183 = vmatprep.subr.mxu0 0.0
    %184 = vmatpush1.msra.mxu0 0.0
    %185 = vmatprep.subr.mxu0 0.0
    %186 = vmatpush1.msra.mxu0 0.0
    %187 = vmatprep.subr.mxu0 0.0
    %188 = vmatpush1.msra.mxu0 0.0
    %189 = vmatprep.subr.mxu0 0.0
    %190 = vmatpush1.msra.mxu0 0.0
    %191 = vmatprep.subr.mxu0 0.0
    %192 = vmatpush1.msra.mxu0 0.0
    %193 = vmatprep.subr.mxu0 0.0
    %194 = vmatpush1.msra.mxu0 0.0
    %195 = vmatprep.subr.mxu0 0.0
    %196 = vmatpush1.msra.mxu0 0.0
    %197 = vmatprep.subr.mxu0 0.0
    %198 = vmatpush1.msra.mxu0 0.0
    %199 = vmatprep.subr.mxu0 0.0
    %200 = vmatpush1.msra.mxu0 0.0
    %201 = vmatprep.subr.mxu0 0.0
    %202 = vmatpush1.msra.mxu0 0.0
    %203 = vmatprep.subr.mxu0 0.0
    %204 = vmatpush1.msra.mxu0 0.0
    %205 = vmatprep.subr.mxu0 0.0
    %206 = vmatpush1.msra.mxu0 0.0
    %207 = vmatprep.subr.mxu0 0.0
    %208 = vmatpush1.msra.mxu0 0.0
    %209 = vmatprep.subr.mxu0 0.0
    %210 = vmatpush1.msra.mxu0 0.0
    %211 = vmatprep.subr.mxu0 0.0
    %212 = vmatpush1.msra.mxu0 0.0
    %213 = vmatprep.subr.mxu0 0.0
    %214 = vmatpush1.msra.mxu0 0.0
    %215 = vmatprep.subr.mxu0 0.0
    %216 = vmatpush1.msra.mxu0 0.0
    %217 = vmatprep.subr.mxu0 0.0
    %218 = vmatpush1.msra.mxu0 0.0
    %219 = vmatprep.subr.mxu0 0.0
    %220 = vmatpush1.msra.mxu0 0.0
    %221 = vmatprep.subr.mxu0 0.0
    %222 = vmatpush1.msra.mxu0 0.0
    %223 = vmatprep.subr.mxu0 0.0
    %224 = vmatpush1.msra.mxu0 0.0
    %225 = vmatprep.subr.mxu0 0.0
    %226 = vmatpush1.msra.mxu0 0.0
    %227 = vmatprep.mubr.f32.mxu0 0.0
    %228 = vmatmul.mubr.f32.gmra.mrb[0].mxu0 %v158
    %v229 = vpop.f32.mrb[0].mxu0
    %v230 = vadd.f32 0.0, %v229
    %v231 = vpop.f32.mrb[0].mxu0
    %232 = vmatprep.mubr.f32.mxu0 0.0
    %233 = vmatmul.mubr.f32.gmra.mrb[0].mxu0 %v161
    %v234 = vpop.f32.mrb[0].mxu0
    %v235 = vadd.f32 0.0, %v234
    %v236 = vpop.f32.mrb[0].mxu0
    %237 = vdwg.mxu0
    %v239 = vlaneseq
    %v240 = vshrl.u32 %v239, 7
    %v241 = vsub.s32 0, %v240
    %v242 = vrot.slane %v76, %v241
    %v244 = vadd.f32 %v230, %v242
    %v245 = vadd.f32 %v235, %v242
    %247 = vrot.lane.b32.xlu0 %v244, 96
    %v248 = vpop.permute.xlu0 %247
    %vm249 = vcmask 64512
    %v250 = vsel %vm249, %v244, 0
    %v252 = vsel %vm249, %v248, 0
    %254 = vmatprep.subr.mxu0 0.0
    %255 = vmatpush1.xpose.msra.mxu0 %v252
    %256 = vmatprep.subr.mxu0 0.0
    %257 = vmatpush1.xpose.msra.mxu0 0.0
    %258 = vmatprep.subr.mxu0 0.0
    %259 = vmatpush1.xpose.msra.mxu0 0.0
    %260 = vmatprep.subr.mxu0 0.0
    %261 = vmatpush1.xpose.msra.mxu0 0.0
    %262 = vmatprep.subr.mxu0 0.0
    %263 = vmatpush1.xpose.msra.mxu0 0.0
    %264 = vmatprep.subr.mxu0 0.0
    %265 = vmatpush1.xpose.msra.mxu0 0.0
    %266 = vmatprep.subr.mxu0 0.0
    %267 = vmatpush1.xpose.msra.mxu0 0.0
    %268 = vmatprep.subr.mxu0 0.0
    %269 = vmatpush1.xpose.msra.mxu0 0.0
    %270 = vmatprep.subr.mxu0 0.0
    %271 = vmatpush1.xpose.msra.mxu0 0.0
    %272 = vmatprep.subr.mxu0 0.0
    %273 = vmatpush1.xpose.msra.mxu0 0.0
    %274 = vmatprep.subr.mxu0 0.0
    %275 = vmatpush1.xpose.msra.mxu0 0.0
    %276 = vmatprep.subr.mxu0 0.0
    %277 = vmatpush1.xpose.msra.mxu0 0.0
    %278 = vmatprep.subr.mxu0 0.0
    %279 = vmatpush1.xpose.msra.mxu0 0.0
    %280 = vmatprep.subr.mxu0 0.0
    %281 = vmatpush1.xpose.msra.mxu0 0.0
    %282 = vmatprep.subr.mxu0 0.0
    %283 = vmatpush1.xpose.msra.mxu0 0.0
    %284 = vmatprep.subr.mxu0 0.0
    %285 = vmatpush1.xpose.msra.mxu0 0.0
    %286 = vmatprep.subr.mxu0 0.0
    %287 = vmatpush1.xpose.msra.mxu0 0.0
    %288 = vmatprep.subr.mxu0 0.0
    %289 = vmatpush1.xpose.msra.mxu0 0.0
    %290 = vmatprep.subr.mxu0 0.0
    %291 = vmatpush1.xpose.msra.mxu0 0.0
    %292 = vmatprep.subr.mxu0 0.0
    %293 = vmatpush1.xpose.msra.mxu0 0.0
    %294 = vmatprep.subr.mxu0 0.0
    %295 = vmatpush1.xpose.msra.mxu0 0.0
    %296 = vmatprep.subr.mxu0 0.0
    %297 = vmatpush1.xpose.msra.mxu0 0.0
    %298 = vmatprep.subr.mxu0 0.0
    %299 = vmatpush1.xpose.msra.mxu0 0.0
    %300 = vmatprep.subr.mxu0 0.0
    %301 = vmatpush1.xpose.msra.mxu0 0.0
    %302 = vmatprep.subr.mxu0 0.0
    %303 = vmatpush1.xpose.msra.mxu0 0.0
    %304 = vmatprep.subr.mxu0 0.0
    %305 = vmatpush1.xpose.msra.mxu0 0.0
    %306 = vmatprep.subr.mxu0 0.0
    %307 = vmatpush1.xpose.msra.mxu0 0.0
    %308 = vmatprep.subr.mxu0 0.0
    %309 = vmatpush1.xpose.msra.mxu0 0.0
    %310 = vmatprep.subr.mxu0 0.0
    %311 = vmatpush1.xpose.msra.mxu0 0.0
    %312 = vmatprep.subr.mxu0 0.0
    %313 = vmatpush1.xpose.msra.mxu0 0.0
    %314 = vmatprep.subr.mxu0 0.0
    %315 = vmatpush1.xpose.msra.mxu0 0.0
    %316 = vmatprep.subr.mxu0 0.0
    %317 = vmatpush1.xpose.msra.mxu0 0.0
    %318 = vmatprep.mubr.f32.mxu0 0.0
    %319 = vmatmul.mubr.f32.gmra.mrb[0].mxu0 %v250
    %v320 = vpop.f32.mrb[0].mxu0
    %v321 = vadd.f32 0.0, %v320
    %v322 = vpop.f32.mrb[0].mxu0
    %323 = vdwg.mxu0
    %325 = vrot.lane.b32.xlu0 %v245, 96
    %v326 = vpop.permute.xlu0 %325
    %v327 = vsel %vm249, %v245, 0
    %v329 = vsel %vm249, %v326, 0
    %331 = vmatprep.subr.mxu0 0.0
    %332 = vmatpush1.xpose.msra.mxu0 %v329
    %333 = vmatprep.subr.mxu0 0.0
    %334 = vmatpush1.xpose.msra.mxu0 0.0
    %335 = vmatprep.subr.mxu0 0.0
    %336 = vmatpush1.xpose.msra.mxu0 0.0
    %337 = vmatprep.subr.mxu0 0.0
    %338 = vmatpush1.xpose.msra.mxu0 0.0
    %339 = vmatprep.subr.mxu0 0.0
    %340 = vmatpush1.xpose.msra.mxu0 0.0
    %341 = vmatprep.subr.mxu0 0.0
    %342 = vmatpush1.xpose.msra.mxu0 0.0
    %343 = vmatprep.subr.mxu0 0.0
    %344 = vmatpush1.xpose.msra.mxu0 0.0
    %345 = vmatprep.subr.mxu0 0.0
    %346 = vmatpush1.xpose.msra.mxu0 0.0
    %347 = vmatprep.subr.mxu0 0.0
    %348 = vmatpush1.xpose.msra.mxu0 0.0
    %349 = vmatprep.subr.mxu0 0.0
    %350 = vmatpush1.xpose.msra.mxu0 0.0
    %351 = vmatprep.subr.mxu0 0.0
    %352 = vmatpush1.xpose.msra.mxu0 0.0
    %353 = vmatprep.subr.mxu0 0.0
    %354 = vmatpush1.xpose.msra.mxu0 0.0
    %355 = vmatprep.subr.mxu0 0.0
    %356 = vmatpush1.xpose.msra.mxu0 0.0
    %357 = vmatprep.subr.mxu0 0.0
    %358 = vmatpush1.xpose.msra.mxu0 0.0
    %359 = vmatprep.subr.mxu0 0.0
    %360 = vmatpush1.xpose.msra.mxu0 0.0
    %361 = vmatprep.subr.mxu0 0.0
    %362 = vmatpush1.xpose.msra.mxu0 0.0
    %363 = vmatprep.subr.mxu0 0.0
    %364 = vmatpush1.xpose.msra.mxu0 0.0
    %365 = vmatprep.subr.mxu0 0.0
    %366 = vmatpush1.xpose.msra.mxu0 0.0
    %367 = vmatprep.subr.mxu0 0.0
    %368 = vmatpush1.xpose.msra.mxu0 0.0
    %369 = vmatprep.subr.mxu0 0.0
    %370 = vmatpush1.xpose.msra.mxu0 0.0
    %371 = vmatprep.subr.mxu0 0.0
    %372 = vmatpush1.xpose.msra.mxu0 0.0
    %373 = vmatprep.subr.mxu0 0.0
    %374 = vmatpush1.xpose.msra.mxu0 0.0
    %375 = vmatprep.subr.mxu0 0.0
    %376 = vmatpush1.xpose.msra.mxu0 0.0
    %377 = vmatprep.subr.mxu0 0.0
    %378 = vmatpush1.xpose.msra.mxu0 0.0
    %379 = vmatprep.subr.mxu0 0.0
    %380 = vmatpush1.xpose.msra.mxu0 0.0
    %381 = vmatprep.subr.mxu0 0.0
    %382 = vmatpush1.xpose.msra.mxu0 0.0
    %383 = vmatprep.subr.mxu0 0.0
    %384 = vmatpush1.xpose.msra.mxu0 0.0
    %385 = vmatprep.subr.mxu0 0.0
    %386 = vmatpush1.xpose.msra.mxu0 0.0
    %387 = vmatprep.subr.mxu0 0.0
    %388 = vmatpush1.xpose.msra.mxu0 0.0
    %389 = vmatprep.subr.mxu0 0.0
    %390 = vmatpush1.xpose.msra.mxu0 0.0
    %391 = vmatprep.subr.mxu0 0.0
    %392 = vmatpush1.xpose.msra.mxu0 0.0
    %393 = vmatprep.subr.mxu0 0.0
    %394 = vmatpush1.xpose.msra.mxu0 0.0
    %395 = vmatprep.mubr.f32.mxu0 0.0
    %396 = vmatmul.mubr.f32.gmra.mrb[0].mxu0 %v327
    %v397 = vpop.f32.mrb[0].mxu0
    %v398 = vadd.f32 0.0, %v397
    %v399 = vpop.f32.mrb[0].mxu0
    %400 = vdwg.mxu0
    %v401 = vmul.f32 %v321, 0.35355338
    %v402 = vmul.f32 %v398, 0.35355338
    %v405 = vlaneseq
    %v406 = vshrl.u32 %v405, 7
    %v407 = vsub.s32 0, %v406
    %v408 = vrot.slane %v70, %v407
    %v409 = vlaneseq
    %v410 = vshrl.u32 %v409, 7
    %v411 = vsub.s32 0, %v410
    %v412 = vrot.slane %v71, %v411
    %v415 = vadd.f32 %v401, %v408
    %v416 = vadd.f32 %v402, %v412
    %v417 = vsel %vm249, %v415, -inf
    %418 = vmax.xlane.f32.xlu0 %v417
    %v419 = vpop.xlane.xlu0 %418
    %v420 = vsel %vm249, %v416, -inf
    %421 = vmax.xlane.f32.xlu0 %v420
    %v422 = vpop.xlane.xlu0 %421
    %v423 = vsub.f32 %v415, %v419
    %v424 = vsub.f32 %v416, %v422
    %v425 = vmul.f32 %v423, 1.442695
    %v426 = vpow.pop %v425
    %v427 = vmul.f32 %v424, 1.442695
    %v428 = vpow.pop %v427
    %v429 = vsel %vm249, %v426, 0.0
    %430 = vadd.xlane.f32.xlu0 %v429
    %v431 = vpop.xlane.xlu0 %430
    %v432 = vsel %vm249, %v428, 0.0
    %433 = vadd.xlane.f32.xlu0 %v432
    %v434 = vpop.xlane.xlu0 %433
    %v435 = vrcp.pop %v431
    %v436 = vrcp.pop %v434
    %v437 = vmul.f32 %v426, %v435
    %v438 = vmul.f32 %v428, %v436
    %439 = vrot.lane.b32.xlu0 %v244, 64
    %v440 = vpop.permute.xlu0 %439
    %v443 = vsel %vm249, %v437, 0
    %445 = vmatprep.subr.mxu0 0.0
    %446 = vmatpush1.msra.mxu0 %v440
    %447 = vmatprep.subr.mxu0 0.0
    %448 = vmatpush1.msra.mxu0 0.0
    %449 = vmatprep.subr.mxu0 0.0
    %450 = vmatpush1.msra.mxu0 0.0
    %451 = vmatprep.subr.mxu0 0.0
    %452 = vmatpush1.msra.mxu0 0.0
    %453 = vmatprep.subr.mxu0 0.0
    %454 = vmatpush1.msra.mxu0 0.0
    %455 = vmatprep.subr.mxu0 0.0
    %456 = vmatpush1.msra.mxu0 0.0
    %457 = vmatprep.subr.mxu0 0.0
    %458 = vmatpush1.msra.mxu0 0.0
    %459 = vmatprep.subr.mxu0 0.0
    %460 = vmatpush1.msra.mxu0 0.0
    %461 = vmatprep.subr.mxu0 0.0
    %462 = vmatpush1.msra.mxu0 0.0
    %463 = vmatprep.subr.mxu0 0.0
    %464 = vmatpush1.msra.mxu0 0.0
    %465 = vmatprep.subr.mxu0 0.0
    %466 = vmatpush1.msra.mxu0 0.0
    %467 = vmatprep.subr.mxu0 0.0
    %468 = vmatpush1.msra.mxu0 0.0
    %469 = vmatprep.subr.mxu0 0.0
    %470 = vmatpush1.msra.mxu0 0.0
    %471 = vmatprep.subr.mxu0 0.0
    %472 = vmatpush1.msra.mxu0 0.0
    %473 = vmatprep.subr.mxu0 0.0
    %474 = vmatpush1.msra.mxu0 0.0
    %475 = vmatprep.subr.mxu0 0.0
    %476 = vmatpush1.msra.mxu0 0.0
    %477 = vmatprep.subr.mxu0 0.0
    %478 = vmatpush1.msra.mxu0 0.0
    %479 = vmatprep.subr.mxu0 0.0
    %480 = vmatpush1.msra.mxu0 0.0
    %481 = vmatprep.subr.mxu0 0.0
    %482 = vmatpush1.msra.mxu0 0.0
    %483 = vmatprep.subr.mxu0 0.0
    %484 = vmatpush1.msra.mxu0 0.0
    %485 = vmatprep.subr.mxu0 0.0
    %486 = vmatpush1.msra.mxu0 0.0
    %487 = vmatprep.subr.mxu0 0.0
    %488 = vmatpush1.msra.mxu0 0.0
    %489 = vmatprep.subr.mxu0 0.0
    %490 = vmatpush1.msra.mxu0 0.0
    %491 = vmatprep.subr.mxu0 0.0
    %492 = vmatpush1.msra.mxu0 0.0
    %493 = vmatprep.subr.mxu0 0.0
    %494 = vmatpush1.msra.mxu0 0.0
    %495 = vmatprep.subr.mxu0 0.0
    %496 = vmatpush1.msra.mxu0 0.0
    %497 = vmatprep.subr.mxu0 0.0
    %498 = vmatpush1.msra.mxu0 0.0
    %499 = vmatprep.subr.mxu0 0.0
    %500 = vmatpush1.msra.mxu0 0.0
    %501 = vmatprep.subr.mxu0 0.0
    %502 = vmatpush1.msra.mxu0 0.0
    %503 = vmatprep.subr.mxu0 0.0
    %504 = vmatpush1.msra.mxu0 0.0
    %505 = vmatprep.subr.mxu0 0.0
    %506 = vmatpush1.msra.mxu0 0.0
    %507 = vmatprep.subr.mxu0 0.0
    %508 = vmatpush1.msra.mxu0 0.0
    %509 = vmatprep.mubr.f32.mxu0 0.0
    %510 = vmatmul.mubr.f32.gmra.mrb[0].mxu0 %v443
    %v511 = vpop.f32.mrb[0].mxu0
    %v512 = vadd.f32 0.0, %v511
    %v513 = vpop.f32.mrb[0].mxu0
    %514 = vdwg.mxu0
    %515 = vrot.lane.b32.xlu0 %v245, 64
    %v516 = vpop.permute.xlu0 %515
    %v519 = vsel %vm249, %v438, 0
    %521 = vmatprep.subr.mxu0 0.0
    %522 = vmatpush1.msra.mxu0 %v516
    %523 = vmatprep.subr.mxu0 0.0
    %524 = vmatpush1.msra.mxu0 0.0
    %525 = vmatprep.subr.mxu0 0.0
    %526 = vmatpush1.msra.mxu0 0.0
    %527 = vmatprep.subr.mxu0 0.0
    %528 = vmatpush1.msra.mxu0 0.0
    %529 = vmatprep.subr.mxu0 0.0
    %530 = vmatpush1.msra.mxu0 0.0
    %531 = vmatprep.subr.mxu0 0.0
    %532 = vmatpush1.msra.mxu0 0.0
    %533 = vmatprep.subr.mxu0 0.0
    %534 = vmatpush1.msra.mxu0 0.0
    %535 = vmatprep.subr.mxu0 0.0
    %536 = vmatpush1.msra.mxu0 0.0
    %537 = vmatprep.subr.mxu0 0.0
    %538 = vmatpush1.msra.mxu0 0.0
    %539 = vmatprep.subr.mxu0 0.0
    %540 = vmatpush1.msra.mxu0 0.0
    %541 = vmatprep.subr.mxu0 0.0
    %542 = vmatpush1.msra.mxu0 0.0
    %543 = vmatprep.subr.mxu0 0.0
    %544 = vmatpush1.msra.mxu0 0.0
    %545 = vmatprep.subr.mxu0 0.0
    %546 = vmatpush1.msra.mxu0 0.0
    %547 = vmatprep.subr.mxu0 0.0
    %548 = vmatpush1.msra.mxu0 0.0
    %549 = vmatprep.subr.mxu0 0.0
    %550 = vmatpush1.msra.mxu0 0.0
    %551 = vmatprep.subr.mxu0 0.0
    %552 = vmatpush1.msra.mxu0 0.0
    %553 = vmatprep.subr.mxu0 0.0
    %554 = vmatpush1.msra.mxu0 0.0
    %555 = vmatprep.subr.mxu0 0.0
    %556 = vmatpush1.msra.mxu0 0.0
    %557 = vmatprep.subr.mxu0 0.0
    %558 = vmatpush1.msra.mxu0 0.0
    %559 = vmatprep.subr.mxu0 0.0
    %560 = vmatpush1.msra.mxu0 0.0
    %561 = vmatprep.subr.mxu0 0.0
    %562 = vmatpush1.msra.mxu0 0.0
    %563 = vmatprep.subr.mxu0 0.0
    %564 = vmatpush1.msra.mxu0 0.0
    %565 = vmatprep.subr.mxu0 0.0
    %566 = vmatpush1.msra.mxu0 0.0
    %567 = vmatprep.subr.mxu0 0.0
    %568 = vmatpush1.msra.mxu0 0.0
    %569 = vmatprep.subr.mxu0 0.0
    %570 = vmatpush1.msra.mxu0 0.0
    %571 = vmatprep.subr.mxu0 0.0
    %572 = vmatpush1.msra.mxu0 0.0
    %573 = vmatprep.subr.mxu0 0.0
    %574 = vmatpush1.msra.mxu0 0.0
    %575 = vmatprep.subr.mxu0 0.0
    %576 = vmatpush1.msra.mxu0 0.0
    %577 = vmatprep.subr.mxu0 0.0
    %578 = vmatpush1.msra.mxu0 0.0
    %579 = vmatprep.subr.mxu0 0.0
    %580 = vmatpush1.msra.mxu0 0.0
    %581 = vmatprep.subr.mxu0 0.0
    %582 = vmatpush1.msra.mxu0 0.0
    %583 = vmatprep.subr.mxu0 0.0
    %584 = vmatpush1.msra.mxu0 0.0
    %585 = vmatprep.mubr.f32.mxu0 0.0
    %586 = vmatmul.mubr.f32.gmra.mrb[0].mxu0 %v519
    %v587 = vpop.f32.mrb[0].mxu0
    %v588 = vadd.f32 0.0, %v587
    %v589 = vpop.f32.mrb[0].mxu0
    %590 = vdwg.mxu0
    %591 = vrot.lane.b32.xlu0 %v244, 120
    %v592 = vpop.permute.xlu0 %591
    %593 = vrot.lane.b32.xlu0 %v244, 88
    %v594 = vpop.permute.xlu0 %593
    %v595 = vsel %vm249, %v592, 0
    %v597 = vsel %vm249, %v594, 0
    %599 = vmatprep.subr.mxu0 0.0
    %600 = vmatpush1.xpose.msra.mxu0 %v597
    %601 = vmatprep.subr.mxu0 0.0
    %602 = vmatpush1.xpose.msra.mxu0 0.0
    %603 = vmatprep.subr.mxu0 0.0
    %604 = vmatpush1.xpose.msra.mxu0 0.0
    %605 = vmatprep.subr.mxu0 0.0
    %606 = vmatpush1.xpose.msra.mxu0 0.0
    %607 = vmatprep.subr.mxu0 0.0
    %608 = vmatpush1.xpose.msra.mxu0 0.0
    %609 = vmatprep.subr.mxu0 0.0
    %610 = vmatpush1.xpose.msra.mxu0 0.0
    %611 = vmatprep.subr.mxu0 0.0
    %612 = vmatpush1.xpose.msra.mxu0 0.0
    %613 = vmatprep.subr.mxu0 0.0
    %614 = vmatpush1.xpose.msra.mxu0 0.0
    %615 = vmatprep.subr.mxu0 0.0
    %616 = vmatpush1.xpose.msra.mxu0 0.0
    %617 = vmatprep.subr.mxu0 0.0
    %618 = vmatpush1.xpose.msra.mxu0 0.0
    %619 = vmatprep.subr.mxu0 0.0
    %620 = vmatpush1.xpose.msra.mxu0 0.0
    %621 = vmatprep.subr.mxu0 0.0
    %622 = vmatpush1.xpose.msra.mxu0 0.0
    %623 = vmatprep.subr.mxu0 0.0
    %624 = vmatpush1.xpose.msra.mxu0 0.0
    %625 = vmatprep.subr.mxu0 0.0
    %626 = vmatpush1.xpose.msra.mxu0 0.0
    %627 = vmatprep.subr.mxu0 0.0
    %628 = vmatpush1.xpose.msra.mxu0 0.0
    %629 = vmatprep.subr.mxu0 0.0
    %630 = vmatpush1.xpose.msra.mxu0 0.0
    %631 = vmatprep.subr.mxu0 0.0
    %632 = vmatpush1.xpose.msra.mxu0 0.0
    %633 = vmatprep.subr.mxu0 0.0
    %634 = vmatpush1.xpose.msra.mxu0 0.0
    %635 = vmatprep.subr.mxu0 0.0
    %636 = vmatpush1.xpose.msra.mxu0 0.0
    %637 = vmatprep.subr.mxu0 0.0
    %638 = vmatpush1.xpose.msra.mxu0 0.0
    %639 = vmatprep.subr.mxu0 0.0
    %640 = vmatpush1.xpose.msra.mxu0 0.0
    %641 = vmatprep.subr.mxu0 0.0
    %642 = vmatpush1.xpose.msra.mxu0 0.0
    %643 = vmatprep.subr.mxu0 0.0
    %644 = vmatpush1.xpose.msra.mxu0 0.0
    %645 = vmatprep.subr.mxu0 0.0
    %646 = vmatpush1.xpose.msra.mxu0 0.0
    %647 = vmatprep.subr.mxu0 0.0
    %648 = vmatpush1.xpose.msra.mxu0 0.0
    %649 = vmatprep.subr.mxu0 0.0
    %650 = vmatpush1.xpose.msra.mxu0 0.0
    %651 = vmatprep.subr.mxu0 0.0
    %652 = vmatpush1.xpose.msra.mxu0 0.0
    %653 = vmatprep.subr.mxu0 0.0
    %654 = vmatpush1.xpose.msra.mxu0 0.0
    %655 = vmatprep.subr.mxu0 0.0
    %656 = vmatpush1.xpose.msra.mxu0 0.0
    %657 = vmatprep.subr.mxu0 0.0
    %658 = vmatpush1.xpose.msra.mxu0 0.0
    %659 = vmatprep.subr.mxu0 0.0
    %660 = vmatpush1.xpose.msra.mxu0 0.0
    %661 = vmatprep.subr.mxu0 0.0
    %662 = vmatpush1.xpose.msra.mxu0 0.0
    %663 = vmatprep.mubr.f32.mxu0 0.0
    %664 = vmatmul.mubr.f32.gmra.mrb[0].mxu0 %v595
    %v665 = vpop.f32.mrb[0].mxu0
    %v666 = vadd.f32 0.0, %v665
    %v667 = vpop.f32.mrb[0].mxu0
    %668 = vdwg.mxu0
    %669 = vrot.lane.b32.xlu0 %v245, 120
    %v670 = vpop.permute.xlu0 %669
    %671 = vrot.lane.b32.xlu0 %v245, 88
    %v672 = vpop.permute.xlu0 %671
    %v673 = vsel %vm249, %v670, 0
    %v675 = vsel %vm249, %v672, 0
    %677 = vmatprep.subr.mxu0 0.0
    %678 = vmatpush1.xpose.msra.mxu0 %v675
    %679 = vmatprep.subr.mxu0 0.0
    %680 = vmatpush1.xpose.msra.mxu0 0.0
    %681 = vmatprep.subr.mxu0 0.0
    %682 = vmatpush1.xpose.msra.mxu0 0.0
    %683 = vmatprep.subr.mxu0 0.0
    %684 = vmatpush1.xpose.msra.mxu0 0.0
    %685 = vmatprep.subr.mxu0 0.0
    %686 = vmatpush1.xpose.msra.mxu0 0.0
    %687 = vmatprep.subr.mxu0 0.0
    %688 = vmatpush1.xpose.msra.mxu0 0.0
    %689 = vmatprep.subr.mxu0 0.0
    %690 = vmatpush1.xpose.msra.mxu0 0.0
    %691 = vmatprep.subr.mxu0 0.0
    %692 = vmatpush1.xpose.msra.mxu0 0.0
    %693 = vmatprep.subr.mxu0 0.0
    %694 = vmatpush1.xpose.msra.mxu0 0.0
    %695 = vmatprep.subr.mxu0 0.0
    %696 = vmatpush1.xpose.msra.mxu0 0.0
    %697 = vmatprep.subr.mxu0 0.0
    %698 = vmatpush1.xpose.msra.mxu0 0.0
    %699 = vmatprep.subr.mxu0 0.0
    %700 = vmatpush1.xpose.msra.mxu0 0.0
    %701 = vmatprep.subr.mxu0 0.0
    %702 = vmatpush1.xpose.msra.mxu0 0.0
    %703 = vmatprep.subr.mxu0 0.0
    %704 = vmatpush1.xpose.msra.mxu0 0.0
    %705 = vmatprep.subr.mxu0 0.0
    %706 = vmatpush1.xpose.msra.mxu0 0.0
    %707 = vmatprep.subr.mxu0 0.0
    %708 = vmatpush1.xpose.msra.mxu0 0.0
    %709 = vmatprep.subr.mxu0 0.0
    %710 = vmatpush1.xpose.msra.mxu0 0.0
    %711 = vmatprep.subr.mxu0 0.0
    %712 = vmatpush1.xpose.msra.mxu0 0.0
    %713 = vmatprep.subr.mxu0 0.0
    %714 = vmatpush1.xpose.msra.mxu0 0.0
    %715 = vmatprep.subr.mxu0 0.0
    %716 = vmatpush1.xpose.msra.mxu0 0.0
    %717 = vmatprep.subr.mxu0 0.0
    %718 = vmatpush1.xpose.msra.mxu0 0.0
    %719 = vmatprep.subr.mxu0 0.0
    %720 = vmatpush1.xpose.msra.mxu0 0.0
    %721 = vmatprep.subr.mxu0 0.0
    %722 = vmatpush1.xpose.msra.mxu0 0.0
    %723 = vmatprep.subr.mxu0 0.0
    %724 = vmatpush1.xpose.msra.mxu0 0.0
    %725 = vmatprep.subr.mxu0 0.0
    %726 = vmatpush1.xpose.msra.mxu0 0.0
    %727 = vmatprep.subr.mxu0 0.0
    %728 = vmatpush1.xpose.msra.mxu0 0.0
    %729 = vmatprep.subr.mxu0 0.0
    %730 = vmatpush1.xpose.msra.mxu0 0.0
    %731 = vmatprep.subr.mxu0 0.0
    %732 = vmatpush1.xpose.msra.mxu0 0.0
    %733 = vmatprep.subr.mxu0 0.0
    %734 = vmatpush1.xpose.msra.mxu0 0.0
    %735 = vmatprep.subr.mxu0 0.0
    %736 = vmatpush1.xpose.msra.mxu0 0.0
    %737 = vmatprep.subr.mxu0 0.0
    %738 = vmatpush1.xpose.msra.mxu0 0.0
    %739 = vmatprep.subr.mxu0 0.0
    %740 = vmatpush1.xpose.msra.mxu0 0.0
    %741 = vmatprep.mubr.f32.mxu0 0.0
    %742 = vmatmul.mubr.f32.gmra.mrb[0].mxu0 %v673
    %v743 = vpop.f32.mrb[0].mxu0
    %v744 = vadd.f32 0.0, %v743
    %v745 = vpop.f32.mrb[0].mxu0
    %746 = vdwg.mxu0
    %v747 = vmul.f32 %v666, 0.35355338
    %v748 = vmul.f32 %v744, 0.35355338
    %v749 = vadd.f32 %v747, %v408
    %v750 = vadd.f32 %v748, %v412
    %v751 = vsel %vm249, %v749, -inf
    %752 = vmax.xlane.f32.xlu0 %v751
    %v753 = vpop.xlane.xlu0 %752
    %v754 = vsel %vm249, %v750, -inf
    %755 = vmax.xlane.f32.xlu0 %v754
    %v756 = vpop.xlane.xlu0 %755
    %v757 = vsub.f32 %v749, %v753
    %v758 = vsub.f32 %v750, %v756
    %v759 = vmul.f32 %v757, 1.442695
    %v760 = vpow.pop %v759
    %v761 = vmul.f32 %v758, 1.442695
    %v762 = vpow.pop %v761
    %v763 = vsel %vm249, %v760, 0.0
    %764 = vadd.xlane.f32.xlu0 %v763
    %v765 = vpop.xlane.xlu0 %764
    %v766 = vsel %vm249, %v762, 0.0
    %767 = vadd.xlane.f32.xlu0 %v766
    %v768 = vpop.xlane.xlu0 %767
    %v769 = vrcp.pop %v765
    %v770 = vrcp.pop %v768
    %v771 = vmul.f32 %v760, %v769
    %v772 = vmul.f32 %v762, %v770
    %773 = vrot.lane.b32.xlu0 %v244, 56
    %v774 = vpop.permute.xlu0 %773
    %v777 = vsel %vm249, %v771, 0
    %779 = vmatprep.subr.mxu0 0.0
    %780 = vmatpush1.msra.mxu0 %v774
    %781 = vmatprep.subr.mxu0 0.0
    %782 = vmatpush1.msra.mxu0 0.0
    %783 = vmatprep.subr.mxu0 0.0
    %784 = vmatpush1.msra.mxu0 0.0
    %785 = vmatprep.subr.mxu0 0.0
    %786 = vmatpush1.msra.mxu0 0.0
    %787 = vmatprep.subr.mxu0 0.0
    %788 = vmatpush1.msra.mxu0 0.0
    %789 = vmatprep.subr.mxu0 0.0
    %790 = vmatpush1.msra.mxu0 0.0
    %791 = vmatprep.subr.mxu0 0.0
    %792 = vmatpush1.msra.mxu0 0.0
    %793 = vmatprep.subr.mxu0 0.0
    %794 = vmatpush1.msra.mxu0 0.0
    %795 = vmatprep.subr.mxu0 0.0
    %796 = vmatpush1.msra.mxu0 0.0
    %797 = vmatprep.subr.mxu0 0.0
    %798 = vmatpush1.msra.mxu0 0.0
    %799 = vmatprep.subr.mxu0 0.0
    %800 = vmatpush1.msra.mxu0 0.0
    %801 = vmatprep.subr.mxu0 0.0
    %802 = vmatpush1.msra.mxu0 0.0
    %803 = vmatprep.subr.mxu0 0.0
    %804 = vmatpush1.msra.mxu0 0.0
    %805 = vmatprep.subr.mxu0 0.0
    %806 = vmatpush1.msra.mxu0 0.0
    %807 = vmatprep.subr.mxu0 0.0
    %808 = vmatpush1.msra.mxu0 0.0
    %809 = vmatprep.subr.mxu0 0.0
    %810 = vmatpush1.msra.mxu0 0.0
    %811 = vmatprep.subr.mxu0 0.0
    %812 = vmatpush1.msra.mxu0 0.0
    %813 = vmatprep.subr.mxu0 0.0
    %814 = vmatpush1.msra.mxu0 0.0
    %815 = vmatprep.subr.mxu0 0.0
    %816 = vmatpush1.msra.mxu0 0.0
    %817 = vmatprep.subr.mxu0 0.0
    %818 = vmatpush1.msra.mxu0 0.0
    %819 = vmatprep.subr.mxu0 0.0
    %820 = vmatpush1.msra.mxu0 0.0
    %821 = vmatprep.subr.mxu0 0.0
    %822 = vmatpush1.msra.mxu0 0.0
    %823 = vmatprep.subr.mxu0 0.0
    %824 = vmatpush1.msra.mxu0 0.0
    %825 = vmatprep.subr.mxu0 0.0
    %826 = vmatpush1.msra.mxu0 0.0
    %827 = vmatprep.subr.mxu0 0.0
    %828 = vmatpush1.msra.mxu0 0.0
    %829 = vmatprep.subr.mxu0 0.0
    %830 = vmatpush1.msra.mxu0 0.0
    %831 = vmatprep.subr.mxu0 0.0
    %832 = vmatpush1.msra.mxu0 0.0
    %833 = vmatprep.subr.mxu0 0.0
    %834 = vmatpush1.msra.mxu0 0.0
    %835 = vmatprep.subr.mxu0 0.0
    %836 = vmatpush1.msra.mxu0 0.0
    %837 = vmatprep.subr.mxu0 0.0
    %838 = vmatpush1.msra.mxu0 0.0
    %839 = vmatprep.subr.mxu0 0.0
    %840 = vmatpush1.msra.mxu0 0.0
    %841 = vmatprep.subr.mxu0 0.0
    %842 = vmatpush1.msra.mxu0 0.0
    %843 = vmatprep.mubr.f32.mxu0 0.0
    %844 = vmatmul.mubr.f32.gmra.mrb[0].mxu0 %v777
    %v845 = vpop.f32.mrb[0].mxu0
    %v846 = vadd.f32 0.0, %v845
    %v847 = vpop.f32.mrb[0].mxu0
    %848 = vdwg.mxu0
    %849 = vrot.lane.b32.xlu0 %v245, 56
    %v850 = vpop.permute.xlu0 %849
    %v853 = vsel %vm249, %v772, 0
    %855 = vmatprep.subr.mxu0 0.0
    %856 = vmatpush1.msra.mxu0 %v850
    %857 = vmatprep.subr.mxu0 0.0
    %858 = vmatpush1.msra.mxu0 0.0
    %859 = vmatprep.subr.mxu0 0.0
    %860 = vmatpush1.msra.mxu0 0.0
    %861 = vmatprep.subr.mxu0 0.0
    %862 = vmatpush1.msra.mxu0 0.0
    %863 = vmatprep.subr.mxu0 0.0
    %864 = vmatpush1.msra.mxu0 0.0
    %865 = vmatprep.subr.mxu0 0.0
    %866 = vmatpush1.msra.mxu0 0.0
    %867 = vmatprep.subr.mxu0 0.0
    %868 = vmatpush1.msra.mxu0 0.0
    %869 = vmatprep.subr.mxu0 0.0
    %870 = vmatpush1.msra.mxu0 0.0
    %871 = vmatprep.subr.mxu0 0.0
    %872 = vmatpush1.msra.mxu0 0.0
    %873 = vmatprep.subr.mxu0 0.0
    %874 = vmatpush1.msra.mxu0 0.0
    %875 = vmatprep.subr.mxu0 0.0
    %876 = vmatpush1.msra.mxu0 0.0
    %877 = vmatprep.subr.mxu0 0.0
    %878 = vmatpush1.msra.mxu0 0.0
    %879 = vmatprep.subr.mxu0 0.0
    %880 = vmatpush1.msra.mxu0 0.0
    %881 = vmatprep.subr.mxu0 0.0
    %882 = vmatpush1.msra.mxu0 0.0
    %883 = vmatprep.subr.mxu0 0.0
    %884 = vmatpush1.msra.mxu0 0.0
    %885 = vmatprep.subr.mxu0 0.0
    %886 = vmatpush1.msra.mxu0 0.0
    %887 = vmatprep.subr.mxu0 0.0
    %888 = vmatpush1.msra.mxu0 0.0
    %889 = vmatprep.subr.mxu0 0.0
    %890 = vmatpush1.msra.mxu0 0.0
    %891 = vmatprep.subr.mxu0 0.0
    %892 = vmatpush1.msra.mxu0 0.0
    %893 = vmatprep.subr.mxu0 0.0
    %894 = vmatpush1.msra.mxu0 0.0
    %895 = vmatprep.subr.mxu0 0.0
    %896 = vmatpush1.msra.mxu0 0.0
    %897 = vmatprep.subr.mxu0 0.0
    %898 = vmatpush1.msra.mxu0 0.0
    %899 = vmatprep.subr.mxu0 0.0
    %900 = vmatpush1.msra.mxu0 0.0
    %901 = vmatprep.subr.mxu0 0.0
    %902 = vmatpush1.msra.mxu0 0.0
    %903 = vmatprep.subr.mxu0 0.0
    %904 = vmatpush1.msra.mxu0 0.0
    %905 = vmatprep.subr.mxu0 0.0
    %906 = vmatpush1.msra.mxu0 0.0
    %907 = vmatprep.subr.mxu0 0.0
    %908 = vmatpush1.msra.mxu0 0.0
    %909 = vmatprep.subr.mxu0 0.0
    %910 = vmatpush1.msra.mxu0 0.0
    %911 = vmatprep.subr.mxu0 0.0
    %912 = vmatpush1.msra.mxu0 0.0
    %913 = vmatprep.subr.mxu0 0.0
    %914 = vmatpush1.msra.mxu0 0.0
    %915 = vmatprep.subr.mxu0 0.0
    %916 = vmatpush1.msra.mxu0 0.0
    %917 = vmatprep.subr.mxu0 0.0
    %918 = vmatpush1.msra.mxu0 0.0
    %919 = vmatprep.mubr.f32.mxu0 0.0
    %920 = vmatmul.mubr.f32.gmra.mrb[0].mxu0 %v853
    %v921 = vpop.f32.mrb[0].mxu0
    %v922 = vadd.f32 0.0, %v921
    %v923 = vpop.f32.mrb[0].mxu0
    %924 = vdwg.mxu0
    %925 = vrot.lane.b32.xlu0 %v244, 112
    %v926 = vpop.permute.xlu0 %925
    %927 = vrot.lane.b32.xlu0 %v244, 80
    %v928 = vpop.permute.xlu0 %927
    %v929 = vsel %vm249, %v926, 0
    %v931 = vsel %vm249, %v928, 0
    %933 = vmatprep.subr.mxu0 0.0
    %934 = vmatpush1.xpose.msra.mxu0 %v931
    %935 = vmatprep.subr.mxu0 0.0
    %936 = vmatpush1.xpose.msra.mxu0 0.0
    %937 = vmatprep.subr.mxu0 0.0
    %938 = vmatpush1.xpose.msra.mxu0 0.0
    %939 = vmatprep.subr.mxu0 0.0
    %940 = vmatpush1.xpose.msra.mxu0 0.0
    %941 = vmatprep.subr.mxu0 0.0
    %942 = vmatpush1.xpose.msra.mxu0 0.0
    %943 = vmatprep.subr.mxu0 0.0
    %944 = vmatpush1.xpose.msra.mxu0 0.0
    %945 = vmatprep.subr.mxu0 0.0
    %946 = vmatpush1.xpose.msra.mxu0 0.0
    %947 = vmatprep.subr.mxu0 0.0
    %948 = vmatpush1.xpose.msra.mxu0 0.0
    %949 = vmatprep.subr.mxu0 0.0
    %950 = vmatpush1.xpose.msra.mxu0 0.0
    %951 = vmatprep.subr.mxu0 0.0
    %952 = vmatpush1.xpose.msra.mxu0 0.0
    %953 = vmatprep.subr.mxu0 0.0
    %954 = vmatpush1.xpose.msra.mxu0 0.0
    %955 = vmatprep.subr.mxu0 0.0
    %956 = vmatpush1.xpose.msra.mxu0 0.0
    %957 = vmatprep.subr.mxu0 0.0
    %958 = vmatpush1.xpose.msra.mxu0 0.0
    %959 = vmatprep.subr.mxu0 0.0
    %960 = vmatpush1.xpose.msra.mxu0 0.0
    %961 = vmatprep.subr.mxu0 0.0
    %962 = vmatpush1.xpose.msra.mxu0 0.0
    %963 = vmatprep.subr.mxu0 0.0
    %964 = vmatpush1.xpose.msra.mxu0 0.0
    %965 = vmatprep.subr.mxu0 0.0
    %966 = vmatpush1.xpose.msra.mxu0 0.0
    %967 = vmatprep.subr.mxu0 0.0
    %968 = vmatpush1.xpose.msra.mxu0 0.0
    %969 = vmatprep.subr.mxu0 0.0
    %970 = vmatpush1.xpose.msra.mxu0 0.0
    %971 = vmatprep.subr.mxu0 0.0
    %972 = vmatpush1.xpose.msra.mxu0 0.0
    %973 = vmatprep.subr.mxu0 0.0
    %974 = vmatpush1.xpose.msra.mxu0 0.0
    %975 = vmatprep.subr.mxu0 0.0
    %976 = vmatpush1.xpose.msra.mxu0 0.0
    %977 = vmatprep.subr.mxu0 0.0
    %978 = vmatpush1.xpose.msra.mxu0 0.0
    %979 = vmatprep.subr.mxu0 0.0
    %980 = vmatpush1.xpose.msra.mxu0 0.0
    %981 = vmatprep.subr.mxu0 0.0
    %982 = vmatpush1.xpose.msra.mxu0 0.0
    %983 = vmatprep.subr.mxu0 0.0
    %984 = vmatpush1.xpose.msra.mxu0 0.0
    %985 = vmatprep.subr.mxu0 0.0
    %986 = vmatpush1.xpose.msra.mxu0 0.0
    %987 = vmatprep.subr.mxu0 0.0
    %988 = vmatpush1.xpose.msra.mxu0 0.0
    %989 = vmatprep.subr.mxu0 0.0
    %990 = vmatpush1.xpose.msra.mxu0 0.0
    %991 = vmatprep.subr.mxu0 0.0
    %992 = vmatpush1.xpose.msra.mxu0 0.0
    %993 = vmatprep.subr.mxu0 0.0
    %994 = vmatpush1.xpose.msra.mxu0 0.0
    %995 = vmatprep.subr.mxu0 0.0
    %996 = vmatpush1.xpose.msra.mxu0 0.0
    %997 = vmatprep.mubr.f32.mxu0 0.0
    %998 = vmatmul.mubr.f32.gmra.mrb[0].mxu0 %v929
    %v999 = vpop.f32.mrb[0].mxu0
    %v1000 = vadd.f32 0.0, %v999
    %v1001 = vpop.f32.mrb[0].mxu0
    %1002 = vdwg.mxu0
    %1003 = vrot.lane.b32.xlu0 %v245, 112
    %v1004 = vpop.permute.xlu0 %1003
    %1005 = vrot.lane.b32.xlu0 %v245, 80
    %v1006 = vpop.permute.xlu0 %1005
    %v1007 = vsel %vm249, %v1004, 0
    %v1009 = vsel %vm249, %v1006, 0
    %1011 = vmatprep.subr.mxu0 0.0
    %1012 = vmatpush1.xpose.msra.mxu0 %v1009
    %1013 = vmatprep.subr.mxu0 0.0
    %1014 = vmatpush1.xpose.msra.mxu0 0.0
    %1015 = vmatprep.subr.mxu0 0.0
    %1016 = vmatpush1.xpose.msra.mxu0 0.0
    %1017 = vmatprep.subr.mxu0 0.0
    %1018 = vmatpush1.xpose.msra.mxu0 0.0
    %1019 = vmatprep.subr.mxu0 0.0
    %1020 = vmatpush1.xpose.msra.mxu0 0.0
    %1021 = vmatprep.subr.mxu0 0.0
    %1022 = vmatpush1.xpose.msra.mxu0 0.0
    %1023 = vmatprep.subr.mxu0 0.0
    %1024 = vmatpush1.xpose.msra.mxu0 0.0
    %1025 = vmatprep.subr.mxu0 0.0
    %1026 = vmatpush1.xpose.msra.mxu0 0.0
    %1027 = vmatprep.subr.mxu0 0.0
    %1028 = vmatpush1.xpose.msra.mxu0 0.0
    %1029 = vmatprep.subr.mxu0 0.0
    %1030 = vmatpush1.xpose.msra.mxu0 0.0
    %1031 = vmatprep.subr.mxu0 0.0
    %1032 = vmatpush1.xpose.msra.mxu0 0.0
    %1033 = vmatprep.subr.mxu0 0.0
    %1034 = vmatpush1.xpose.msra.mxu0 0.0
    %1035 = vmatprep.subr.mxu0 0.0
    %1036 = vmatpush1.xpose.msra.mxu0 0.0
    %1037 = vmatprep.subr.mxu0 0.0
    %1038 = vmatpush1.xpose.msra.mxu0 0.0
    %1039 = vmatprep.subr.mxu0 0.0
    %1040 = vmatpush1.xpose.msra.mxu0 0.0
    %1041 = vmatprep.subr.mxu0 0.0
    %1042 = vmatpush1.xpose.msra.mxu0 0.0
    %1043 = vmatprep.subr.mxu0 0.0
    %1044 = vmatpush1.xpose.msra.mxu0 0.0
    %1045 = vmatprep.subr.mxu0 0.0
    %1046 = vmatpush1.xpose.msra.mxu0 0.0
    %1047 = vmatprep.subr.mxu0 0.0
    %1048 = vmatpush1.xpose.msra.mxu0 0.0
    %1049 = vmatprep.subr.mxu0 0.0
    %1050 = vmatpush1.xpose.msra.mxu0 0.0
    %1051 = vmatprep.subr.mxu0 0.0
    %1052 = vmatpush1.xpose.msra.mxu0 0.0
    %1053 = vmatprep.subr.mxu0 0.0
    %1054 = vmatpush1.xpose.msra.mxu0 0.0
    %1055 = vmatprep.subr.mxu0 0.0
    %1056 = vmatpush1.xpose.msra.mxu0 0.0
    %1057 = vmatprep.subr.mxu0 0.0
    %1058 = vmatpush1.xpose.msra.mxu0 0.0
    %1059 = vmatprep.subr.mxu0 0.0
    %1060 = vmatpush1.xpose.msra.mxu0 0.0
    %1061 = vmatprep.subr.mxu0 0.0
    %1062 = vmatpush1.xpose.msra.mxu0 0.0
    %1063 = vmatprep.subr.mxu0 0.0
    %1064 = vmatpush1.xpose.msra.mxu0 0.0
    %1065 = vmatprep.subr.mxu0 0.0
    %1066 = vmatpush1.xpose.msra.mxu0 0.0
    %1067 = vmatprep.subr.mxu0 0.0
    %1068 = vmatpush1.xpose.msra.mxu0 0.0
    %1069 = vmatprep.subr.mxu0 0.0
    %1070 = vmatpush1.xpose.msra.mxu0 0.0
    %1071 = vmatprep.subr.mxu0 0.0
    %1072 = vmatpush1.xpose.msra.mxu0 0.0
    %1073 = vmatprep.subr.mxu0 0.0
    %1074 = vmatpush1.xpose.msra.mxu0 0.0
    %1075 = vmatprep.mubr.f32.mxu0 0.0
    %1076 = vmatmul.mubr.f32.gmra.mrb[0].mxu0 %v1007
    %v1077 = vpop.f32.mrb[0].mxu0
    %v1078 = vadd.f32 0.0, %v1077
    %v1079 = vpop.f32.mrb[0].mxu0
    %1080 = vdwg.mxu0
    %v1081 = vmul.f32 %v1000, 0.35355338
    %v1082 = vmul.f32 %v1078, 0.35355338
    %v1083 = vadd.f32 %v1081, %v408
    %v1084 = vadd.f32 %v1082, %v412
    %v1085 = vsel %vm249, %v1083, -inf
    %1086 = vmax.xlane.f32.xlu0 %v1085
    %v1087 = vpop.xlane.xlu0 %1086
    %v1088 = vsel %vm249, %v1084, -inf
    %1089 = vmax.xlane.f32.xlu0 %v1088
    %v1090 = vpop.xlane.xlu0 %1089
    %v1091 = vsub.f32 %v1083, %v1087
    %v1092 = vsub.f32 %v1084, %v1090
    %v1093 = vmul.f32 %v1091, 1.442695
    %v1094 = vpow.pop %v1093
    %v1095 = vmul.f32 %v1092, 1.442695
    %v1096 = vpow.pop %v1095
    %v1097 = vsel %vm249, %v1094, 0.0
    %1098 = vadd.xlane.f32.xlu0 %v1097
    %v1099 = vpop.xlane.xlu0 %1098
    %v1100 = vsel %vm249, %v1096, 0.0
    %1101 = vadd.xlane.f32.xlu0 %v1100
    %v1102 = vpop.xlane.xlu0 %1101
    %v1103 = vrcp.pop %v1099
    %v1104 = vrcp.pop %v1102
    %v1105 = vmul.f32 %v1094, %v1103
    %v1106 = vmul.f32 %v1096, %v1104
    %1107 = vrot.lane.b32.xlu0 %v244, 48
    %v1108 = vpop.permute.xlu0 %1107
    %v1111 = vsel %vm249, %v1105, 0
    %1113 = vmatprep.subr.mxu0 0.0
    %1114 = vmatpush1.msra.mxu0 %v1108
    %1115 = vmatprep.subr.mxu0 0.0
    %1116 = vmatpush1.msra.mxu0 0.0
    %1117 = vmatprep.subr.mxu0 0.0
    %1118 = vmatpush1.msra.mxu0 0.0
    %1119 = vmatprep.subr.mxu0 0.0
    %1120 = vmatpush1.msra.mxu0 0.0
    %1121 = vmatprep.subr.mxu0 0.0
    %1122 = vmatpush1.msra.mxu0 0.0
    %1123 = vmatprep.subr.mxu0 0.0
    %1124 = vmatpush1.msra.mxu0 0.0
    %1125 = vmatprep.subr.mxu0 0.0
    %1126 = vmatpush1.msra.mxu0 0.0
    %1127 = vmatprep.subr.mxu0 0.0
    %1128 = vmatpush1.msra.mxu0 0.0
    %1129 = vmatprep.subr.mxu0 0.0
    %1130 = vmatpush1.msra.mxu0 0.0
    %1131 = vmatprep.subr.mxu0 0.0
    %1132 = vmatpush1.msra.mxu0 0.0
    %1133 = vmatprep.subr.mxu0 0.0
    %1134 = vmatpush1.msra.mxu0 0.0
    %1135 = vmatprep.subr.mxu0 0.0
    %1136 = vmatpush1.msra.mxu0 0.0
    %1137 = vmatprep.subr.mxu0 0.0
    %1138 = vmatpush1.msra.mxu0 0.0
    %1139 = vmatprep.subr.mxu0 0.0
    %1140 = vmatpush1.msra.mxu0 0.0
    %1141 = vmatprep.subr.mxu0 0.0
    %1142 = vmatpush1.msra.mxu0 0.0
    %1143 = vmatprep.subr.mxu0 0.0
    %1144 = vmatpush1.msra.mxu0 0.0
    %1145 = vmatprep.subr.mxu0 0.0
    %1146 = vmatpush1.msra.mxu0 0.0
    %1147 = vmatprep.subr.mxu0 0.0
    %1148 = vmatpush1.msra.mxu0 0.0
    %1149 = vmatprep.subr.mxu0 0.0
    %1150 = vmatpush1.msra.mxu0 0.0
    %1151 = vmatprep.subr.mxu0 0.0
    %1152 = vmatpush1.msra.mxu0 0.0
    %1153 = vmatprep.subr.mxu0 0.0
    %1154 = vmatpush1.msra.mxu0 0.0
    %1155 = vmatprep.subr.mxu0 0.0
    %1156 = vmatpush1.msra.mxu0 0.0
    %1157 = vmatprep.subr.mxu0 0.0
    %1158 = vmatpush1.msra.mxu0 0.0
    %1159 = vmatprep.subr.mxu0 0.0
    %1160 = vmatpush1.msra.mxu0 0.0
    %1161 = vmatprep.subr.mxu0 0.0
    %1162 = vmatpush1.msra.mxu0 0.0
    %1163 = vmatprep.subr.mxu0 0.0
    %1164 = vmatpush1.msra.mxu0 0.0
    %1165 = vmatprep.subr.mxu0 0.0
    %1166 = vmatpush1.msra.mxu0 0.0
    %1167 = vmatprep.subr.mxu0 0.0
    %1168 = vmatpush1.msra.mxu0 0.0
    %1169 = vmatprep.subr.mxu0 0.0
    %1170 = vmatpush1.msra.mxu0 0.0
    %1171 = vmatprep.subr.mxu0 0.0
    %1172 = vmatpush1.msra.mxu0 0.0
    %1173 = vmatprep.subr.mxu0 0.0
    %1174 = vmatpush1.msra.mxu0 0.0
    %1175 = vmatprep.subr.mxu0 0.0
    %1176 = vmatpush1.msra.mxu0 0.0
    %1177 = vmatprep.mubr.f32.mxu0 0.0
    %1178 = vmatmul.mubr.f32.gmra.mrb[0].mxu0 %v1111
    %v1179 = vpop.f32.mrb[0].mxu0
    %v1180 = vadd.f32 0.0, %v1179
    %v1181 = vpop.f32.mrb[0].mxu0
    %1182 = vdwg.mxu0
    %1183 = vrot.lane.b32.xlu0 %v245, 48
    %v1184 = vpop.permute.xlu0 %1183
    %v1187 = vsel %vm249, %v1106, 0
    %1189 = vmatprep.subr.mxu0 0.0
    %1190 = vmatpush1.msra.mxu0 %v1184
    %1191 = vmatprep.subr.mxu0 0.0
    %1192 = vmatpush1.msra.mxu0 0.0
    %1193 = vmatprep.subr.mxu0 0.0
    %1194 = vmatpush1.msra.mxu0 0.0
    %1195 = vmatprep.subr.mxu0 0.0
    %1196 = vmatpush1.msra.mxu0 0.0
    %1197 = vmatprep.subr.mxu0 0.0
    %1198 = vmatpush1.msra.mxu0 0.0
    %1199 = vmatprep.subr.mxu0 0.0
    %1200 = vmatpush1.msra.mxu0 0.0
    %1201 = vmatprep.subr.mxu0 0.0
    %1202 = vmatpush1.msra.mxu0 0.0
    %1203 = vmatprep.subr.mxu0 0.0
    %1204 = vmatpush1.msra.mxu0 0.0
    %1205 = vmatprep.subr.mxu0 0.0
    %1206 = vmatpush1.msra.mxu0 0.0
    %1207 = vmatprep.subr.mxu0 0.0
    %1208 = vmatpush1.msra.mxu0 0.0
    %1209 = vmatprep.subr.mxu0 0.0
    %1210 = vmatpush1.msra.mxu0 0.0
    %1211 = vmatprep.subr.mxu0 0.0
    %1212 = vmatpush1.msra.mxu0 0.0
    %1213 = vmatprep.subr.mxu0 0.0
    %1214 = vmatpush1.msra.mxu0 0.0
    %1215 = vmatprep.subr.mxu0 0.0
    %1216 = vmatpush1.msra.mxu0 0.0
    %1217 = vmatprep.subr.mxu0 0.0
    %1218 = vmatpush1.msra.mxu0 0.0
    %1219 = vmatprep.subr.mxu0 0.0
    %1220 = vmatpush1.msra.mxu0 0.0
    %1221 = vmatprep.subr.mxu0 0.0
    %1222 = vmatpush1.msra.mxu0 0.0
    %1223 = vmatprep.subr.mxu0 0.0
    %1224 = vmatpush1.msra.mxu0 0.0
    %1225 = vmatprep.subr.mxu0 0.0
    %1226 = vmatpush1.msra.mxu0 0.0
    %1227 = vmatprep.subr.mxu0 0.0
    %1228 = vmatpush1.msra.mxu0 0.0
    %1229 = vmatprep.subr.mxu0 0.0
    %1230 = vmatpush1.msra.mxu0 0.0
    %1231 = vmatprep.subr.mxu0 0.0
    %1232 = vmatpush1.msra.mxu0 0.0
    %1233 = vmatprep.subr.mxu0 0.0
    %1234 = vmatpush1.msra.mxu0 0.0
    %1235 = vmatprep.subr.mxu0 0.0
    %1236 = vmatpush1.msra.mxu0 0.0
    %1237 = vmatprep.subr.mxu0 0.0
    %1238 = vmatpush1.msra.mxu0 0.0
    %1239 = vmatprep.subr.mxu0 0.0
    %1240 = vmatpush1.msra.mxu0 0.0
    %1241 = vmatprep.subr.mxu0 0.0
    %1242 = vmatpush1.msra.mxu0 0.0
    %1243 = vmatprep.subr.mxu0 0.0
    %1244 = vmatpush1.msra.mxu0 0.0
    %1245 = vmatprep.subr.mxu0 0.0
    %1246 = vmatpush1.msra.mxu0 0.0
    %1247 = vmatprep.subr.mxu0 0.0
    %1248 = vmatpush1.msra.mxu0 0.0
    %1249 = vmatprep.subr.mxu0 0.0
    %1250 = vmatpush1.msra.mxu0 0.0
    %1251 = vmatprep.subr.mxu0 0.0
    %1252 = vmatpush1.msra.mxu0 0.0
    %1253 = vmatprep.mubr.f32.mxu0 0.0
    %1254 = vmatmul.mubr.f32.gmra.mrb[0].mxu0 %v1187
    %v1255 = vpop.f32.mrb[0].mxu0
    %v1256 = vadd.f32 0.0, %v1255
    %v1257 = vpop.f32.mrb[0].mxu0
    %1258 = vdwg.mxu0
    %1259 = vrot.lane.b32.xlu0 %v244, 104
    %v1260 = vpop.permute.xlu0 %1259
    %1261 = vrot.lane.b32.xlu0 %v244, 72
    %v1262 = vpop.permute.xlu0 %1261
    %v1263 = vsel %vm249, %v1260, 0
    %v1265 = vsel %vm249, %v1262, 0
    %1267 = vmatprep.subr.mxu0 0.0
    %1268 = vmatpush1.xpose.msra.mxu0 %v1265
    %1269 = vmatprep.subr.mxu0 0.0
    %1270 = vmatpush1.xpose.msra.mxu0 0.0
    %1271 = vmatprep.subr.mxu0 0.0
    %1272 = vmatpush1.xpose.msra.mxu0 0.0
    %1273 = vmatprep.subr.mxu0 0.0
    %1274 = vmatpush1.xpose.msra.mxu0 0.0
    %1275 = vmatprep.subr.mxu0 0.0
    %1276 = vmatpush1.xpose.msra.mxu0 0.0
    %1277 = vmatprep.subr.mxu0 0.0
    %1278 = vmatpush1.xpose.msra.mxu0 0.0
    %1279 = vmatprep.subr.mxu0 0.0
    %1280 = vmatpush1.xpose.msra.mxu0 0.0
    %1281 = vmatprep.subr.mxu0 0.0
    %1282 = vmatpush1.xpose.msra.mxu0 0.0
    %1283 = vmatprep.subr.mxu0 0.0
    %1284 = vmatpush1.xpose.msra.mxu0 0.0
    %1285 = vmatprep.subr.mxu0 0.0
    %1286 = vmatpush1.xpose.msra.mxu0 0.0
    %1287 = vmatprep.subr.mxu0 0.0
    %1288 = vmatpush1.xpose.msra.mxu0 0.0
    %1289 = vmatprep.subr.mxu0 0.0
    %1290 = vmatpush1.xpose.msra.mxu0 0.0
    %1291 = vmatprep.subr.mxu0 0.0
    %1292 = vmatpush1.xpose.msra.mxu0 0.0
    %1293 = vmatprep.subr.mxu0 0.0
    %1294 = vmatpush1.xpose.msra.mxu0 0.0
    %1295 = vmatprep.subr.mxu0 0.0
    %1296 = vmatpush1.xpose.msra.mxu0 0.0
    %1297 = vmatprep.subr.mxu0 0.0
    %1298 = vmatpush1.xpose.msra.mxu0 0.0
    %1299 = vmatprep.subr.mxu0 0.0
    %1300 = vmatpush1.xpose.msra.mxu0 0.0
    %1301 = vmatprep.subr.mxu0 0.0
    %1302 = vmatpush1.xpose.msra.mxu0 0.0
    %1303 = vmatprep.subr.mxu0 0.0
    %1304 = vmatpush1.xpose.msra.mxu0 0.0
    %1305 = vmatprep.subr.mxu0 0.0
    %1306 = vmatpush1.xpose.msra.mxu0 0.0
    %1307 = vmatprep.subr.mxu0 0.0
    %1308 = vmatpush1.xpose.msra.mxu0 0.0
    %1309 = vmatprep.subr.mxu0 0.0
    %1310 = vmatpush1.xpose.msra.mxu0 0.0
    %1311 = vmatprep.subr.mxu0 0.0
    %1312 = vmatpush1.xpose.msra.mxu0 0.0
    %1313 = vmatprep.subr.mxu0 0.0
    %1314 = vmatpush1.xpose.msra.mxu0 0.0
    %1315 = vmatprep.subr.mxu0 0.0
    %1316 = vmatpush1.xpose.msra.mxu0 0.0
    %1317 = vmatprep.subr.mxu0 0.0
    %1318 = vmatpush1.xpose.msra.mxu0 0.0
    %1319 = vmatprep.subr.mxu0 0.0
    %1320 = vmatpush1.xpose.msra.mxu0 0.0
    %1321 = vmatprep.subr.mxu0 0.0
    %1322 = vmatpush1.xpose.msra.mxu0 0.0
    %1323 = vmatprep.subr.mxu0 0.0
    %1324 = vmatpush1.xpose.msra.mxu0 0.0
    %1325 = vmatprep.subr.mxu0 0.0
    %1326 = vmatpush1.xpose.msra.mxu0 0.0
    %1327 = vmatprep.subr.mxu0 0.0
    %1328 = vmatpush1.xpose.msra.mxu0 0.0
    %1329 = vmatprep.subr.mxu0 0.0
    %1330 = vmatpush1.xpose.msra.mxu0 0.0
    %1331 = vmatprep.mubr.f32.mxu0 0.0
    %1332 = vmatmul.mubr.f32.gmra.mrb[0].mxu0 %v1263
    %v1333 = vpop.f32.mrb[0].mxu0
    %v1334 = vadd.f32 0.0, %v1333
    %v1335 = vpop.f32.mrb[0].mxu0
    %1336 = vdwg.mxu0
    %1337 = vrot.lane.b32.xlu0 %v245, 104
    %v1338 = vpop.permute.xlu0 %1337
    %1339 = vrot.lane.b32.xlu0 %v245, 72
    %v1340 = vpop.permute.xlu0 %1339
    %v1341 = vsel %vm249, %v1338, 0
    %v1343 = vsel %vm249, %v1340, 0
    %1345 = vmatprep.subr.mxu0 0.0
    %1346 = vmatpush1.xpose.msra.mxu0 %v1343
    %1347 = vmatprep.subr.mxu0 0.0
    %1348 = vmatpush1.xpose.msra.mxu0 0.0
    %1349 = vmatprep.subr.mxu0 0.0
    %1350 = vmatpush1.xpose.msra.mxu0 0.0
    %1351 = vmatprep.subr.mxu0 0.0
    %1352 = vmatpush1.xpose.msra.mxu0 0.0
    %1353 = vmatprep.subr.mxu0 0.0
    %1354 = vmatpush1.xpose.msra.mxu0 0.0
    %1355 = vmatprep.subr.mxu0 0.0
    %1356 = vmatpush1.xpose.msra.mxu0 0.0
    %1357 = vmatprep.subr.mxu0 0.0
    %1358 = vmatpush1.xpose.msra.mxu0 0.0
    %1359 = vmatprep.subr.mxu0 0.0
    %1360 = vmatpush1.xpose.msra.mxu0 0.0
    %1361 = vmatprep.subr.mxu0 0.0
    %1362 = vmatpush1.xpose.msra.mxu0 0.0
    %1363 = vmatprep.subr.mxu0 0.0
    %1364 = vmatpush1.xpose.msra.mxu0 0.0
    %1365 = vmatprep.subr.mxu0 0.0
    %1366 = vmatpush1.xpose.msra.mxu0 0.0
    %1367 = vmatprep.subr.mxu0 0.0
    %1368 = vmatpush1.xpose.msra.mxu0 0.0
    %1369 = vmatprep.subr.mxu0 0.0
    %1370 = vmatpush1.xpose.msra.mxu0 0.0
    %1371 = vmatprep.subr.mxu0 0.0
    %1372 = vmatpush1.xpose.msra.mxu0 0.0
    %1373 = vmatprep.subr.mxu0 0.0
    %1374 = vmatpush1.xpose.msra.mxu0 0.0
    %1375 = vmatprep.subr.mxu0 0.0
    %1376 = vmatpush1.xpose.msra.mxu0 0.0
    %1377 = vmatprep.subr.mxu0 0.0
    %1378 = vmatpush1.xpose.msra.mxu0 0.0
    %1379 = vmatprep.subr.mxu0 0.0
    %1380 = vmatpush1.xpose.msra.mxu0 0.0
    %1381 = vmatprep.subr.mxu0 0.0
    %1382 = vmatpush1.xpose.msra.mxu0 0.0
    %1383 = vmatprep.subr.mxu0 0.0
    %1384 = vmatpush1.xpose.msra.mxu0 0.0
    %1385 = vmatprep.subr.mxu0 0.0
    %1386 = vmatpush1.xpose.msra.mxu0 0.0
    %1387 = vmatprep.subr.mxu0 0.0
    %1388 = vmatpush1.xpose.msra.mxu0 0.0
    %1389 = vmatprep.subr.mxu0 0.0
    %1390 = vmatpush1.xpose.msra.mxu0 0.0
    %1391 = vmatprep.subr.mxu0 0.0
    %1392 = vmatpush1.xpose.msra.mxu0 0.0
    %1393 = vmatprep.subr.mxu0 0.0
    %1394 = vmatpush1.xpose.msra.mxu0 0.0
    %1395 = vmatprep.subr.mxu0 0.0
    %1396 = vmatpush1.xpose.msra.mxu0 0.0
    %1397 = vmatprep.subr.mxu0 0.0
    %1398 = vmatpush1.xpose.msra.mxu0 0.0
    %1399 = vmatprep.subr.mxu0 0.0
    %1400 = vmatpush1.xpose.msra.mxu0 0.0
    %1401 = vmatprep.subr.mxu0 0.0
    %1402 = vmatpush1.xpose.msra.mxu0 0.0
    %1403 = vmatprep.subr.mxu0 0.0
    %1404 = vmatpush1.xpose.msra.mxu0 0.0
    %1405 = vmatprep.subr.mxu0 0.0
    %1406 = vmatpush1.xpose.msra.mxu0 0.0
    %1407 = vmatprep.subr.mxu0 0.0
    %1408 = vmatpush1.xpose.msra.mxu0 0.0
    %1409 = vmatprep.mubr.f32.mxu0 0.0
    %1410 = vmatmul.mubr.f32.gmra.mrb[0].mxu0 %v1341
    %v1411 = vpop.f32.mrb[0].mxu0
    %v1412 = vadd.f32 0.0, %v1411
    %v1413 = vpop.f32.mrb[0].mxu0
    %1414 = vdwg.mxu0
    %v1415 = vmul.f32 %v1334, 0.35355338
    %v1416 = vmul.f32 %v1412, 0.35355338
    %v1417 = vadd.f32 %v1415, %v408
    %v1418 = vadd.f32 %v1416, %v412
    %v1419 = vsel %vm249, %v1417, -inf
    %1420 = vmax.xlane.f32.xlu0 %v1419
    %v1421 = vpop.xlane.xlu0 %1420
    %v1422 = vsel %vm249, %v1418, -inf
    %1423 = vmax.xlane.f32.xlu0 %v1422
    %v1424 = vpop.xlane.xlu0 %1423
    %v1425 = vsub.f32 %v1417, %v1421
    %v1426 = vsub.f32 %v1418, %v1424
    %v1427 = vmul.f32 %v1425, 1.442695
    %v1428 = vpow.pop %v1427
    %v1429 = vmul.f32 %v1426, 1.442695
    %v1430 = vpow.pop %v1429
    %v1431 = vsel %vm249, %v1428, 0.0
    %1432 = vadd.xlane.f32.xlu0 %v1431
    %v1433 = vpop.xlane.xlu0 %1432
    %v1434 = vsel %vm249, %v1430, 0.0
    %1435 = vadd.xlane.f32.xlu0 %v1434
    %v1436 = vpop.xlane.xlu0 %1435
    %v1437 = vrcp.pop %v1433
    %v1438 = vrcp.pop %v1436
    %v1439 = vmul.f32 %v1428, %v1437
    %v1440 = vmul.f32 %v1430, %v1438
    %1441 = vrot.lane.b32.xlu0 %v244, 40
    %v1442 = vpop.permute.xlu0 %1441
    %v1445 = vsel %vm249, %v1439, 0
    %1447 = vmatprep.subr.mxu0 0.0
    %1448 = vmatpush1.msra.mxu0 %v1442
    %1449 = vmatprep.subr.mxu0 0.0
    %1450 = vmatpush1.msra.mxu0 0.0
    %1451 = vmatprep.subr.mxu0 0.0
    %1452 = vmatpush1.msra.mxu0 0.0
    %1453 = vmatprep.subr.mxu0 0.0
    %1454 = vmatpush1.msra.mxu0 0.0
    %1455 = vmatprep.subr.mxu0 0.0
    %1456 = vmatpush1.msra.mxu0 0.0
    %1457 = vmatprep.subr.mxu0 0.0
    %1458 = vmatpush1.msra.mxu0 0.0
    %1459 = vmatprep.subr.mxu0 0.0
    %1460 = vmatpush1.msra.mxu0 0.0
    %1461 = vmatprep.subr.mxu0 0.0
    %1462 = vmatpush1.msra.mxu0 0.0
    %1463 = vmatprep.subr.mxu0 0.0
    %1464 = vmatpush1.msra.mxu0 0.0
    %1465 = vmatprep.subr.mxu0 0.0
    %1466 = vmatpush1.msra.mxu0 0.0
    %1467 = vmatprep.subr.mxu0 0.0
    %1468 = vmatpush1.msra.mxu0 0.0
    %1469 = vmatprep.subr.mxu0 0.0
    %1470 = vmatpush1.msra.mxu0 0.0
    %1471 = vmatprep.subr.mxu0 0.0
    %1472 = vmatpush1.msra.mxu0 0.0
    %1473 = vmatprep.subr.mxu0 0.0
    %1474 = vmatpush1.msra.mxu0 0.0
    %1475 = vmatprep.subr.mxu0 0.0
    %1476 = vmatpush1.msra.mxu0 0.0
    %1477 = vmatprep.subr.mxu0 0.0
    %1478 = vmatpush1.msra.mxu0 0.0
    %1479 = vmatprep.subr.mxu0 0.0
    %1480 = vmatpush1.msra.mxu0 0.0
    %1481 = vmatprep.subr.mxu0 0.0
    %1482 = vmatpush1.msra.mxu0 0.0
    %1483 = vmatprep.subr.mxu0 0.0
    %1484 = vmatpush1.msra.mxu0 0.0
    %1485 = vmatprep.subr.mxu0 0.0
    %1486 = vmatpush1.msra.mxu0 0.0
    %1487 = vmatprep.subr.mxu0 0.0
    %1488 = vmatpush1.msra.mxu0 0.0
    %1489 = vmatprep.subr.mxu0 0.0
    %1490 = vmatpush1.msra.mxu0 0.0
    %1491 = vmatprep.subr.mxu0 0.0
    %1492 = vmatpush1.msra.mxu0 0.0
    %1493 = vmatprep.subr.mxu0 0.0
    %1494 = vmatpush1.msra.mxu0 0.0
    %1495 = vmatprep.subr.mxu0 0.0
    %1496 = vmatpush1.msra.mxu0 0.0
    %1497 = vmatprep.subr.mxu0 0.0
    %1498 = vmatpush1.msra.mxu0 0.0
    %1499 = vmatprep.subr.mxu0 0.0
    %1500 = vmatpush1.msra.mxu0 0.0
    %1501 = vmatprep.subr.mxu0 0.0
    %1502 = vmatpush1.msra.mxu0 0.0
    %1503 = vmatprep.subr.mxu0 0.0
    %1504 = vmatpush1.msra.mxu0 0.0
    %1505 = vmatprep.subr.mxu0 0.0
    %1506 = vmatpush1.msra.mxu0 0.0
    %1507 = vmatprep.subr.mxu0 0.0
    %1508 = vmatpush1.msra.mxu0 0.0
    %1509 = vmatprep.subr.mxu0 0.0
    %1510 = vmatpush1.msra.mxu0 0.0
    %1511 = vmatprep.mubr.f32.mxu0 0.0
    %1512 = vmatmul.mubr.f32.gmra.mrb[0].mxu0 %v1445
    %v1513 = vpop.f32.mrb[0].mxu0
    %v1514 = vadd.f32 0.0, %v1513
    %v1515 = vpop.f32.mrb[0].mxu0
    %1516 = vdwg.mxu0
    %1517 = vrot.lane.b32.xlu0 %v245, 40
    %v1518 = vpop.permute.xlu0 %1517
    %v1521 = vsel %vm249, %v1440, 0
    %1523 = vmatprep.subr.mxu0 0.0
    %1524 = vmatpush1.msra.mxu0 %v1518
    %1525 = vmatprep.subr.mxu0 0.0
    %1526 = vmatpush1.msra.mxu0 0.0
    %1527 = vmatprep.subr.mxu0 0.0
    %1528 = vmatpush1.msra.mxu0 0.0
    %1529 = vmatprep.subr.mxu0 0.0
    %1530 = vmatpush1.msra.mxu0 0.0
    %1531 = vmatprep.subr.mxu0 0.0
    %1532 = vmatpush1.msra.mxu0 0.0
    %1533 = vmatprep.subr.mxu0 0.0
    %1534 = vmatpush1.msra.mxu0 0.0
    %1535 = vmatprep.subr.mxu0 0.0
    %1536 = vmatpush1.msra.mxu0 0.0
    %1537 = vmatprep.subr.mxu0 0.0
    %1538 = vmatpush1.msra.mxu0 0.0
    %1539 = vmatprep.subr.mxu0 0.0
    %1540 = vmatpush1.msra.mxu0 0.0
    %1541 = vmatprep.subr.mxu0 0.0
    %1542 = vmatpush1.msra.mxu0 0.0
    %1543 = vmatprep.subr.mxu0 0.0
    %1544 = vmatpush1.msra.mxu0 0.0
    %1545 = vmatprep.subr.mxu0 0.0
    %1546 = vmatpush1.msra.mxu0 0.0
    %1547 = vmatprep.subr.mxu0 0.0
    %1548 = vmatpush1.msra.mxu0 0.0
    %1549 = vmatprep.subr.mxu0 0.0
    %1550 = vmatpush1.msra.mxu0 0.0
    %1551 = vmatprep.subr.mxu0 0.0
    %1552 = vmatpush1.msra.mxu0 0.0
    %1553 = vmatprep.subr.mxu0 0.0
    %1554 = vmatpush1.msra.mxu0 0.0
    %1555 = vmatprep.subr.mxu0 0.0
    %1556 = vmatpush1.msra.mxu0 0.0
    %1557 = vmatprep.subr.mxu0 0.0
    %1558 = vmatpush1.msra.mxu0 0.0
    %1559 = vmatprep.subr.mxu0 0.0
    %1560 = vmatpush1.msra.mxu0 0.0
    %1561 = vmatprep.subr.mxu0 0.0
    %1562 = vmatpush1.msra.mxu0 0.0
    %1563 = vmatprep.subr.mxu0 0.0
    %1564 = vmatpush1.msra.mxu0 0.0
    %1565 = vmatprep.subr.mxu0 0.0
    %1566 = vmatpush1.msra.mxu0 0.0
    %1567 = vmatprep.subr.mxu0 0.0
    %1568 = vmatpush1.msra.mxu0 0.0
    %1569 = vmatprep.subr.mxu0 0.0
    %1570 = vmatpush1.msra.mxu0 0.0
    %1571 = vmatprep.subr.mxu0 0.0
    %1572 = vmatpush1.msra.mxu0 0.0
    %1573 = vmatprep.subr.mxu0 0.0
    %1574 = vmatpush1.msra.mxu0 0.0
    %1575 = vmatprep.subr.mxu0 0.0
    %1576 = vmatpush1.msra.mxu0 0.0
    %1577 = vmatprep.subr.mxu0 0.0
    %1578 = vmatpush1.msra.mxu0 0.0
    %1579 = vmatprep.subr.mxu0 0.0
    %1580 = vmatpush1.msra.mxu0 0.0
    %1581 = vmatprep.subr.mxu0 0.0
    %1582 = vmatpush1.msra.mxu0 0.0
    %1583 = vmatprep.subr.mxu0 0.0
    %1584 = vmatpush1.msra.mxu0 0.0
    %1585 = vmatprep.subr.mxu0 0.0
    %1586 = vmatpush1.msra.mxu0 0.0
    %1587 = vmatprep.mubr.f32.mxu0 0.0
    %1588 = vmatmul.mubr.f32.gmra.mrb[0].mxu0 %v1521
    %v1589 = vpop.f32.mrb[0].mxu0
    %v1590 = vadd.f32 0.0, %v1589
    %v1591 = vpop.f32.mrb[0].mxu0
    %1592 = vdwg.mxu0
    %1595 = vrot.lane.b32.xlu0 %v846, 8
    %v1596 = vpop.permute.xlu0 %1595
    %1597 = vrot.lane.b32.xlu0 %v922, 8
    %v1598 = vpop.permute.xlu0 %1597
    %1603 = vrot.lane.b32.xlu0 %v1180, 16
    %v1604 = vpop.permute.xlu0 %1603
    %1605 = vrot.lane.b32.xlu0 %v1256, 16
    %v1606 = vpop.permute.xlu0 %1605
    %1611 = vrot.lane.b32.xlu0 %v1514, 24
    %v1612 = vpop.permute.xlu0 %1611
    %1613 = vrot.lane.b32.xlu0 %v1590, 24
    %v1614 = vpop.permute.xlu0 %1613
    %v1617 = vsel %vm249, %v512, %v1596
    %v1618 = vsel %vm249, %v588, %v1598
    %vm1619 = vcmask 130048
    %v1620 = vsel %vm1619, %v1617, %v1604
    %v1621 = vsel %vm1619, %v1618, %v1606
    %vm1622 = vcmask 195584
    %v1623 = vsel %vm1622, %v1620, %v1612
    %v1624 = vsel %vm1622, %v1621, %v1614
    %v1626 = vsel %vm98, %v1623, 0
    %v1629 = vsel %vm98, %v1624, 0
    %1631 = vmatprep.subr.mxu0 0.0
    %1632 = vmatpush1.msra.mxu0 %v77
    %1633 = vmatprep.subr.mxu0 0.0
    %1634 = vmatpush1.msra.mxu0 %v78
    %1635 = vmatprep.subr.mxu0 0.0
    %1636 = vmatpush1.msra.mxu0 %v79
    %1637 = vmatprep.subr.mxu0 0.0
    %1638 = vmatpush1.msra.mxu0 %v80
    %1639 = vmatprep.subr.mxu0 0.0
    %1640 = vmatpush1.msra.mxu0 0.0
    %1641 = vmatprep.subr.mxu0 0.0
    %1642 = vmatpush1.msra.mxu0 0.0
    %1643 = vmatprep.subr.mxu0 0.0
    %1644 = vmatpush1.msra.mxu0 0.0
    %1645 = vmatprep.subr.mxu0 0.0
    %1646 = vmatpush1.msra.mxu0 0.0
    %1647 = vmatprep.subr.mxu0 0.0
    %1648 = vmatpush1.msra.mxu0 0.0
    %1649 = vmatprep.subr.mxu0 0.0
    %1650 = vmatpush1.msra.mxu0 0.0
    %1651 = vmatprep.subr.mxu0 0.0
    %1652 = vmatpush1.msra.mxu0 0.0
    %1653 = vmatprep.subr.mxu0 0.0
    %1654 = vmatpush1.msra.mxu0 0.0
    %1655 = vmatprep.subr.mxu0 0.0
    %1656 = vmatpush1.msra.mxu0 0.0
    %1657 = vmatprep.subr.mxu0 0.0
    %1658 = vmatpush1.msra.mxu0 0.0
    %1659 = vmatprep.subr.mxu0 0.0
    %1660 = vmatpush1.msra.mxu0 0.0
    %1661 = vmatprep.subr.mxu0 0.0
    %1662 = vmatpush1.msra.mxu0 0.0
    %1663 = vmatprep.subr.mxu0 0.0
    %1664 = vmatpush1.msra.mxu0 0.0
    %1665 = vmatprep.subr.mxu0 0.0
    %1666 = vmatpush1.msra.mxu0 0.0
    %1667 = vmatprep.subr.mxu0 0.0
    %1668 = vmatpush1.msra.mxu0 0.0
    %1669 = vmatprep.subr.mxu0 0.0
    %1670 = vmatpush1.msra.mxu0 0.0
    %1671 = vmatprep.subr.mxu0 0.0
    %1672 = vmatpush1.msra.mxu0 0.0
    %1673 = vmatprep.subr.mxu0 0.0
    %1674 = vmatpush1.msra.mxu0 0.0
    %1675 = vmatprep.subr.mxu0 0.0
    %1676 = vmatpush1.msra.mxu0 0.0
    %1677 = vmatprep.subr.mxu0 0.0
    %1678 = vmatpush1.msra.mxu0 0.0
    %1679 = vmatprep.subr.mxu0 0.0
    %1680 = vmatpush1.msra.mxu0 0.0
    %1681 = vmatprep.subr.mxu0 0.0
    %1682 = vmatpush1.msra.mxu0 0.0
    %1683 = vmatprep.subr.mxu0 0.0
    %1684 = vmatpush1.msra.mxu0 0.0
    %1685 = vmatprep.subr.mxu0 0.0
    %1686 = vmatpush1.msra.mxu0 0.0
    %1687 = vmatprep.subr.mxu0 0.0
    %1688 = vmatpush1.msra.mxu0 0.0
    %1689 = vmatprep.subr.mxu0 0.0
    %1690 = vmatpush1.msra.mxu0 0.0
    %1691 = vmatprep.subr.mxu0 0.0
    %1692 = vmatpush1.msra.mxu0 0.0
    %1693 = vmatprep.subr.mxu0 0.0
    %1694 = vmatpush1.msra.mxu0 0.0
    %1695 = vmatprep.mubr.f32.mxu0 0.0
    %1696 = vmatmul.mubr.f32.gmra.mrb[0].mxu0 %v1626
    %v1697 = vpop.f32.mrb[0].mxu0
    %v1698 = vadd.f32 0.0, %v1697
    %v1699 = vpop.f32.mrb[0].mxu0
    %1700 = vmatprep.mubr.f32.mxu0 0.0
    %1701 = vmatmul.mubr.f32.gmra.mrb[0].mxu0 %v1629
    %v1702 = vpop.f32.mrb[0].mxu0
    %v1703 = vadd.f32 0.0, %v1702
    %v1704 = vpop.f32.mrb[0].mxu0
    %1705 = vdwg.mxu0
    %v1707 = vlaneseq
    %v1708 = vshrl.u32 %v1707, 7
    %v1709 = vsub.s32 0, %v1708
    %v1710 = vrot.slane %v81, %v1709
    %v1712 = vadd.f32 %v1698, %v1710
    %v1713 = vadd.f32 %v1703, %v1710
    %v1714 = vadd.f32 %v68, %v1712
    %v1715 = vadd.f32 %v69, %v1713
    %v1716 = vld [vmem:[%s12] sm:$0x1]
    %v1717 = vld [vmem:[%s13] sm:$0x1]
    %v1718 = vsel %vm98, %v1714, 0.0
    %1719 = vadd.xlane.f32.xlu0 %v1718
    %v1720 = vpop.xlane.xlu0 %1719
    %v1721 = vsel %vm98, %v1715, 0.0
    %1722 = vadd.xlane.f32.xlu0 %v1721
    %v1723 = vpop.xlane.xlu0 %1722
    %v1724 = vmul.f32 %v1720, %v105
    %v1725 = vmul.f32 %v1723, %v105
    %v1726 = vsub.f32 %v1714, %v1724
    %v1727 = vsub.f32 %v1715, %v1725
    %v1728 = vmul.f32 %v1726, %v1726
    %v1729 = vmul.f32 %v1727, %v1727
    %v1730 = vsel %vm98, %v1728, 0.0
    %1731 = vadd.xlane.f32.xlu0 %v1730
    %v1732 = vpop.xlane.xlu0 %1731
    %v1733 = vsel %vm98, %v1729, 0.0
    %1734 = vadd.xlane.f32.xlu0 %v1733
    %v1735 = vpop.xlane.xlu0 %1734
    %v1736 = vmul.f32 %v1732, %v118
    %v1737 = vmul.f32 %v1735, %v118
    %v1738 = vrsqrt.pop %v1736
    %v1739 = vmul.f32 %v1736, %v1738
    %vm1740 = vcmp.eq.f32.partialorder %v1736, inf
    %v1741 = vsel %vm1740, %v1736, %v1739
    %vm1742 = vcmp.eq.f32.partialorder %v1736, 0.0
    %v1743 = vand.u32 %v1736, 2147483648
    %v1744 = vsel %vm1742, %v1743, %v1741
    %v1745 = vrsqrt.pop %v1737
    %v1746 = vmul.f32 %v1737, %v1745
    %vm1747 = vcmp.eq.f32.partialorder %v1737, inf
    %v1748 = vsel %vm1747, %v1737, %v1746
    %vm1749 = vcmp.eq.f32.partialorder %v1737, 0.0
    %v1750 = vand.u32 %v1737, 2147483648
    %v1751 = vsel %vm1749, %v1750, %v1748
    %v1753 = vlaneseq
    %v1754 = vshrl.u32 %v1753, 7
    %v1755 = vsub.s32 0, %v1754
    %v1756 = vrot.slane %v1716, %v1755
    %v1758 = vmul.f32 %v1756, %v1726
    %v1759 = vmul.f32 %v1756, %v1727
    %v1760 = vadd.f32 %v1744, 1e-06
    %v1761 = vadd.f32 %v1751, 1e-06
    %v1762 = vrcp.pop %v1760
    %v1763 = vmul.f32 %v1758, %v1762
    %v1764 = vrcp.pop %v1761
    %v1765 = vmul.f32 %v1759, %v1764
    %v1767 = vlaneseq
    %v1768 = vshrl.u32 %v1767, 7
    %v1769 = vsub.s32 0, %v1768
    %v1770 = vrot.slane %v1717, %v1769
    %v1772 = vadd.f32 %v1763, %v1770
    %v1773 = vadd.f32 %v1765, %v1770
    %v1775 = vsel %vm98, %v1772, 0
    %v1778 = vsel %vm98, %v1773, 0
    %1780 = vmatprep.subr.mxu0 0.0
    %1781 = vmatpush1.msra.mxu0 %v82
    %1782 = vmatprep.subr.mxu0 0.0
    %1783 = vmatpush1.msra.mxu0 %v83
    %1784 = vmatprep.subr.mxu0 0.0
    %1785 = vmatpush1.msra.mxu0 %v84
    %1786 = vmatprep.subr.mxu0 0.0
    %1787 = vmatpush1.msra.mxu0 %v85
    %1788 = vmatprep.subr.mxu0 0.0
    %1789 = vmatpush1.msra.mxu0 0.0
    %1790 = vmatprep.subr.mxu0 0.0
    %1791 = vmatpush1.msra.mxu0 0.0
    %1792 = vmatprep.subr.mxu0 0.0
    %1793 = vmatpush1.msra.mxu0 0.0
    %1794 = vmatprep.subr.mxu0 0.0
    %1795 = vmatpush1.msra.mxu0 0.0
    %1796 = vmatprep.subr.mxu0 0.0
    %1797 = vmatpush1.msra.mxu0 0.0
    %1798 = vmatprep.subr.mxu0 0.0
    %1799 = vmatpush1.msra.mxu0 0.0
    %1800 = vmatprep.subr.mxu0 0.0
    %1801 = vmatpush1.msra.mxu0 0.0
    %1802 = vmatprep.subr.mxu0 0.0
    %1803 = vmatpush1.msra.mxu0 0.0
    %1804 = vmatprep.subr.mxu0 0.0
    %1805 = vmatpush1.msra.mxu0 0.0
    %1806 = vmatprep.subr.mxu0 0.0
    %1807 = vmatpush1.msra.mxu0 0.0
    %1808 = vmatprep.subr.mxu0 0.0
    %1809 = vmatpush1.msra.mxu0 0.0
    %1810 = vmatprep.subr.mxu0 0.0
    %1811 = vmatpush1.msra.mxu0 0.0
    %1812 = vmatprep.subr.mxu0 0.0
    %1813 = vmatpush1.msra.mxu0 0.0
    %1814 = vmatprep.subr.mxu0 0.0
    %1815 = vmatpush1.msra.mxu0 0.0
    %1816 = vmatprep.subr.mxu0 0.0
    %1817 = vmatpush1.msra.mxu0 0.0
    %1818 = vmatprep.subr.mxu0 0.0
    %1819 = vmatpush1.msra.mxu0 0.0
    %1820 = vmatprep.subr.mxu0 0.0
    %1821 = vmatpush1.msra.mxu0 0.0
    %1822 = vmatprep.subr.mxu0 0.0
    %1823 = vmatpush1.msra.mxu0 0.0
    %1824 = vmatprep.subr.mxu0 0.0
    %1825 = vmatpush1.msra.mxu0 0.0
    %1826 = vmatprep.subr.mxu0 0.0
    %1827 = vmatpush1.msra.mxu0 0.0
    %1828 = vmatprep.subr.mxu0 0.0
    %1829 = vmatpush1.msra.mxu0 0.0
    %1830 = vmatprep.subr.mxu0 0.0
    %1831 = vmatpush1.msra.mxu0 0.0
    %1832 = vmatprep.subr.mxu0 0.0
    %1833 = vmatpush1.msra.mxu0 0.0
    %1834 = vmatprep.subr.mxu0 0.0
    %1835 = vmatpush1.msra.mxu0 0.0
    %1836 = vmatprep.subr.mxu0 0.0
    %1837 = vmatpush1.msra.mxu0 0.0
    %1838 = vmatprep.subr.mxu0 0.0
    %1839 = vmatpush1.msra.mxu0 0.0
    %1840 = vmatprep.subr.mxu0 0.0
    %1841 = vmatpush1.msra.mxu0 0.0
    %1842 = vmatprep.subr.mxu0 0.0
    %1843 = vmatpush1.msra.mxu0 0.0
    %1844 = vmatprep.mubr.f32.mxu0 0.0
    %1845 = vmatmul.mubr.f32.gmra.mrb[0].mxu0 %v1775
    %v1846 = vpop.f32.mrb[0].mxu0
    %v1847 = vadd.f32 0.0, %v1846
    %v1848 = vpop.f32.mrb[0].mxu0
    %1849 = vmatprep.mubr.f32.mxu0 0.0
    %1850 = vmatmul.mubr.f32.gmra.mrb[0].mxu0 %v1778
    %v1851 = vpop.f32.mrb[0].mxu0
    %v1852 = vadd.f32 0.0, %v1851
    %v1853 = vpop.f32.mrb[0].mxu0
    %1854 = vdwg.mxu0
    %v1856 = vlaneseq
    %v1857 = vshrl.u32 %v1856, 7
    %v1858 = vsub.s32 0, %v1857
    %v1859 = vrot.slane %v86, %v1858
    %v1861 = vadd.f32 %v1847, %v1859
    %v1862 = vadd.f32 %v1852, %v1859
    %v1863 = vmax.f32 %v1861, 0.0
    %v1864 = vmax.f32 %v1862, 0.0
    %vm1865 = vcmask 523264
    %v1867 = vsel %vm1865, %v1863, 0
    %v1870 = vsel %vm1865, %v1864, 0
    %1872 = vmatprep.subr.mxu0 0.0
    %1873 = vmatpush1.msra.mxu0 %v87
    %1874 = vmatprep.subr.mxu0 0.0
    %1875 = vmatpush1.msra.mxu0 %v88
    %1876 = vmatprep.subr.mxu0 0.0
    %1877 = vmatpush1.msra.mxu0 %v89
    %1878 = vmatprep.subr.mxu0 0.0
    %1879 = vmatpush1.msra.mxu0 %v90
    %1880 = vmatprep.subr.mxu0 0.0
    %1881 = vmatpush1.msra.mxu0 %v91
    %1882 = vmatprep.subr.mxu0 0.0
    %1883 = vmatpush1.msra.mxu0 %v92
    %1884 = vmatprep.subr.mxu0 0.0
    %1885 = vmatpush1.msra.mxu0 %v93
    %1886 = vmatprep.subr.mxu0 0.0
    %1887 = vmatpush1.msra.mxu0 %v94
    %1888 = vmatprep.subr.mxu0 0.0
    %1889 = vmatpush1.msra.mxu0 0.0
    %1890 = vmatprep.subr.mxu0 0.0
    %1891 = vmatpush1.msra.mxu0 0.0
    %1892 = vmatprep.subr.mxu0 0.0
    %1893 = vmatpush1.msra.mxu0 0.0
    %1894 = vmatprep.subr.mxu0 0.0
    %1895 = vmatpush1.msra.mxu0 0.0
    %1896 = vmatprep.subr.mxu0 0.0
    %1897 = vmatpush1.msra.mxu0 0.0
    %1898 = vmatprep.subr.mxu0 0.0
    %1899 = vmatpush1.msra.mxu0 0.0
    %1900 = vmatprep.subr.mxu0 0.0
    %1901 = vmatpush1.msra.mxu0 0.0
    %1902 = vmatprep.subr.mxu0 0.0
    %1903 = vmatpush1.msra.mxu0 0.0
    %1904 = vmatprep.subr.mxu0 0.0
    %1905 = vmatpush1.msra.mxu0 0.0
    %1906 = vmatprep.subr.mxu0 0.0
    %1907 = vmatpush1.msra.mxu0 0.0
    %1908 = vmatprep.subr.mxu0 0.0
    %1909 = vmatpush1.msra.mxu0 0.0
    %1910 = vmatprep.subr.mxu0 0.0
    %1911 = vmatpush1.msra.mxu0 0.0
    %1912 = vmatprep.subr.mxu0 0.0
    %1913 = vmatpush1.msra.mxu0 0.0
    %1914 = vmatprep.subr.mxu0 0.0
    %1915 = vmatpush1.msra.mxu0 0.0
    %1916 = vmatprep.subr.mxu0 0.0
    %1917 = vmatpush1.msra.mxu0 0.0
    %1918 = vmatprep.subr.mxu0 0.0
    %1919 = vmatpush1.msra.mxu0 0.0
    %1920 = vmatprep.subr.mxu0 0.0
    %1921 = vmatpush1.msra.mxu0 0.0
    %1922 = vmatprep.subr.mxu0 0.0
    %1923 = vmatpush1.msra.mxu0 0.0
    %1924 = vmatprep.subr.mxu0 0.0
    %1925 = vmatpush1.msra.mxu0 0.0
    %1926 = vmatprep.subr.mxu0 0.0
    %1927 = vmatpush1.msra.mxu0 0.0
    %1928 = vmatprep.subr.mxu0 0.0
    %1929 = vmatpush1.msra.mxu0 0.0
    %1930 = vmatprep.subr.mxu0 0.0
    %1931 = vmatpush1.msra.mxu0 0.0
    %1932 = vmatprep.subr.mxu0 0.0
    %1933 = vmatpush1.msra.mxu0 0.0
    %1934 = vmatprep.subr.mxu0 0.0
    %1935 = vmatpush1.msra.mxu0 0.0
    %1936 = vmatprep.mubr.f32.mxu0 0.0
    %1937 = vmatmul.mubr.f32.gmra.mrb[0].mxu0 %v1867
    %v1938 = vpop.f32.mrb[0].mxu0
    %v1939 = vadd.f32 0.0, %v1938
    %v1940 = vpop.f32.mrb[0].mxu0
    %1941 = vmatprep.mubr.f32.mxu0 0.0
    %1942 = vmatmul.mubr.f32.gmra.mrb[0].mxu0 %v1870
    %v1943 = vpop.f32.mrb[0].mxu0
    %v1944 = vadd.f32 0.0, %v1943
    %v1945 = vpop.f32.mrb[0].mxu0
    %1946 = vdwg.mxu0
    %v1948 = vlaneseq
    %v1949 = vshrl.u32 %v1948, 7
    %v1950 = vsub.s32 0, %v1949
    %v1951 = vrot.slane %v95, %v1950
    %v1953 = vadd.f32 %v1939, %v1951
    %v1954 = vadd.f32 %v1944, %v1951
    %v1955 = vadd.f32 %v1714, %v1953
    %v1956 = vadd.f32 %v1715, %v1954
    %v1957 = vld [vmem:[%s10] sm:$0x1]
    %v1958 = vld [vmem:[%s11] sm:$0x1]
    %v1959 = vsel %vm98, %v1955, 0.0
    %1960 = vadd.xlane.f32.xlu0 %v1959
    %v1961 = vpop.xlane.xlu0 %1960
    %v1962 = vsel %vm98, %v1956, 0.0
    %1963 = vadd.xlane.f32.xlu0 %v1962
    %v1964 = vpop.xlane.xlu0 %1963
    %v1965 = vmul.f32 %v1961, %v105
    %v1966 = vmul.f32 %v1964, %v105
    %v1967 = vsub.f32 %v1955, %v1965
    %v1968 = vsub.f32 %v1956, %v1966
    %v1969 = vmul.f32 %v1967, %v1967
    %v1970 = vmul.f32 %v1968, %v1968
    %v1971 = vsel %vm98, %v1969, 0.0
    %1972 = vadd.xlane.f32.xlu0 %v1971
    %v1973 = vpop.xlane.xlu0 %1972
    %v1974 = vsel %vm98, %v1970, 0.0
    %1975 = vadd.xlane.f32.xlu0 %v1974
    %v1976 = vpop.xlane.xlu0 %1975
    %v1977 = vmul.f32 %v1973, %v118
    %v1978 = vmul.f32 %v1976, %v118
    %v1979 = vrsqrt.pop %v1977
    %v1980 = vmul.f32 %v1977, %v1979
    %vm1981 = vcmp.eq.f32.partialorder %v1977, inf
    %v1982 = vsel %vm1981, %v1977, %v1980
    %vm1983 = vcmp.eq.f32.partialorder %v1977, 0.0
    %v1984 = vand.u32 %v1977, 2147483648
    %v1985 = vsel %vm1983, %v1984, %v1982
    %v1986 = vrsqrt.pop %v1978
    %v1987 = vmul.f32 %v1978, %v1986
    %vm1988 = vcmp.eq.f32.partialorder %v1978, inf
    %v1989 = vsel %vm1988, %v1978, %v1987
    %vm1990 = vcmp.eq.f32.partialorder %v1978, 0.0
    %v1991 = vand.u32 %v1978, 2147483648
    %v1992 = vsel %vm1990, %v1991, %v1989
    %v1994 = vlaneseq
    %v1995 = vshrl.u32 %v1994, 7
    %v1996 = vsub.s32 0, %v1995
    %v1997 = vrot.slane %v1957, %v1996
    %v1999 = vmul.f32 %v1997, %v1967
    %v2000 = vmul.f32 %v1997, %v1968
    %v2001 = vadd.f32 %v1985, 1e-06
    %v2002 = vadd.f32 %v1992, 1e-06
    %v2003 = vrcp.pop %v2001
    %v2004 = vmul.f32 %v1999, %v2003
    %v2005 = vrcp.pop %v2002
    %v2006 = vmul.f32 %v2000, %v2005
    %v2008 = vlaneseq
    %v2009 = vshrl.u32 %v2008, 7
    %v2010 = vsub.s32 0, %v2009
    %v2011 = vrot.slane %v1958, %v2010
    %v2013 = vadd.f32 %v2004, %v2011
    %v2014 = vadd.f32 %v2006, %v2011
    %v2016 = vsel %vm98, %v2013, 0
    %v2019 = vsel %vm98, %v2014, 0
    %2021 = vmatprep.subr.mxu0 0.0
    %2022 = vmatpush1.msra.mxu0 %v72
    %2023 = vmatprep.subr.mxu0 0.0
    %2024 = vmatpush1.msra.mxu0 %v73
    %2025 = vmatprep.subr.mxu0 0.0
    %2026 = vmatpush1.msra.mxu0 %v74
    %2027 = vmatprep.subr.mxu0 0.0
    %2028 = vmatpush1.msra.mxu0 %v75
    %2029 = vmatprep.subr.mxu0 0.0
    %2030 = vmatpush1.msra.mxu0 0.0
    %2031 = vmatprep.subr.mxu0 0.0
    %2032 = vmatpush1.msra.mxu0 0.0
    %2033 = vmatprep.subr.mxu0 0.0
    %2034 = vmatpush1.msra.mxu0 0.0
    %2035 = vmatprep.subr.mxu0 0.0
    %2036 = vmatpush1.msra.mxu0 0.0
    %2037 = vmatprep.subr.mxu0 0.0
    %2038 = vmatpush1.msra.mxu0 0.0
    %2039 = vmatprep.subr.mxu0 0.0
    %2040 = vmatpush1.msra.mxu0 0.0
    %2041 = vmatprep.subr.mxu0 0.0
    %2042 = vmatpush1.msra.mxu0 0.0
    %2043 = vmatprep.subr.mxu0 0.0
    %2044 = vmatpush1.msra.mxu0 0.0
    %2045 = vmatprep.subr.mxu0 0.0
    %2046 = vmatpush1.msra.mxu0 0.0
    %2047 = vmatprep.subr.mxu0 0.0
    %2048 = vmatpush1.msra.mxu0 0.0
    %2049 = vmatprep.subr.mxu0 0.0
    %2050 = vmatpush1.msra.mxu0 0.0
    %2051 = vmatprep.subr.mxu0 0.0
    %2052 = vmatpush1.msra.mxu0 0.0
    %2053 = vmatprep.subr.mxu0 0.0
    %2054 = vmatpush1.msra.mxu0 0.0
    %2055 = vmatprep.subr.mxu0 0.0
    %2056 = vmatpush1.msra.mxu0 0.0
    %2057 = vmatprep.subr.mxu0 0.0
    %2058 = vmatpush1.msra.mxu0 0.0
    %2059 = vmatprep.subr.mxu0 0.0
    %2060 = vmatpush1.msra.mxu0 0.0
    %2061 = vmatprep.subr.mxu0 0.0
    %2062 = vmatpush1.msra.mxu0 0.0
    %2063 = vmatprep.subr.mxu0 0.0
    %2064 = vmatpush1.msra.mxu0 0.0
    %2065 = vmatprep.subr.mxu0 0.0
    %2066 = vmatpush1.msra.mxu0 0.0
    %2067 = vmatprep.subr.mxu0 0.0
    %2068 = vmatpush1.msra.mxu0 0.0
    %2069 = vmatprep.subr.mxu0 0.0
    %2070 = vmatpush1.msra.mxu0 0.0
    %2071 = vmatprep.subr.mxu0 0.0
    %2072 = vmatpush1.msra.mxu0 0.0
    %2073 = vmatprep.subr.mxu0 0.0
    %2074 = vmatpush1.msra.mxu0 0.0
    %2075 = vmatprep.subr.mxu0 0.0
    %2076 = vmatpush1.msra.mxu0 0.0
    %2077 = vmatprep.subr.mxu0 0.0
    %2078 = vmatpush1.msra.mxu0 0.0
    %2079 = vmatprep.subr.mxu0 0.0
    %2080 = vmatpush1.msra.mxu0 0.0
    %2081 = vmatprep.subr.mxu0 0.0
    %2082 = vmatpush1.msra.mxu0 0.0
    %2083 = vmatprep.subr.mxu0 0.0
    %2084 = vmatpush1.msra.mxu0 0.0
    %2085 = vmatprep.mubr.f32.mxu0 0.0
    %2086 = vmatmul.mubr.f32.gmra.mrb[0].mxu0 %v2016
    %v2087 = vpop.f32.mrb[0].mxu0
    %v2088 = vadd.f32 0.0, %v2087
    %v2089 = vpop.f32.mrb[0].mxu0
    %2090 = vmatprep.mubr.f32.mxu0 0.0
    %2091 = vmatmul.mubr.f32.gmra.mrb[0].mxu0 %v2019
    %v2092 = vpop.f32.mrb[0].mxu0
    %v2093 = vadd.f32 0.0, %v2092
    %v2094 = vpop.f32.mrb[0].mxu0
    %2095 = vdwg.mxu0
    %v2096 = vadd.f32 %v2088, %v242
    %v2097 = vadd.f32 %v2093, %v242
    %2099 = vrot.lane.b32.xlu0 %v2096, 96
    %v2100 = vpop.permute.xlu0 %2099
    %v2101 = vsel %vm249, %v2096, 0
    %v2103 = vsel %vm249, %v2100, 0
    %2105 = vmatprep.subr.mxu0 0.0
    %2106 = vmatpush1.xpose.msra.mxu0 %v2103
    %2107 = vmatprep.subr.mxu0 0.0
    %2108 = vmatpush1.xpose.msra.mxu0 0.0
    %2109 = vmatprep.subr.mxu0 0.0
    %2110 = vmatpush1.xpose.msra.mxu0 0.0
    %2111 = vmatprep.subr.mxu0 0.0
    %2112 = vmatpush1.xpose.msra.mxu0 0.0
    %2113 = vmatprep.subr.mxu0 0.0
    %2114 = vmatpush1.xpose.msra.mxu0 0.0
    %2115 = vmatprep.subr.mxu0 0.0
    %2116 = vmatpush1.xpose.msra.mxu0 0.0
    %2117 = vmatprep.subr.mxu0 0.0
    %2118 = vmatpush1.xpose.msra.mxu0 0.0
    %2119 = vmatprep.subr.mxu0 0.0
    %2120 = vmatpush1.xpose.msra.mxu0 0.0
    %2121 = vmatprep.subr.mxu0 0.0
    %2122 = vmatpush1.xpose.msra.mxu0 0.0
    %2123 = vmatprep.subr.mxu0 0.0
    %2124 = vmatpush1.xpose.msra.mxu0 0.0
    %2125 = vmatprep.subr.mxu0 0.0
    %2126 = vmatpush1.xpose.msra.mxu0 0.0
    %2127 = vmatprep.subr.mxu0 0.0
    %2128 = vmatpush1.xpose.msra.mxu0 0.0
    %2129 = vmatprep.subr.mxu0 0.0
    %2130 = vmatpush1.xpose.msra.mxu0 0.0
    %2131 = vmatprep.subr.mxu0 0.0
    %2132 = vmatpush1.xpose.msra.mxu0 0.0
    %2133 = vmatprep.subr.mxu0 0.0
    %2134 = vmatpush1.xpose.msra.mxu0 0.0
    %2135 = vmatprep.subr.mxu0 0.0
    %2136 = vmatpush1.xpose.msra.mxu0 0.0
    %2137 = vmatprep.subr.mxu0 0.0
    %2138 = vmatpush1.xpose.msra.mxu0 0.0
    %2139 = vmatprep.subr.mxu0 0.0
    %2140 = vmatpush1.xpose.msra.mxu0 0.0
    %2141 = vmatprep.subr.mxu0 0.0
    %2142 = vmatpush1.xpose.msra.mxu0 0.0
    %2143 = vmatprep.subr.mxu0 0.0
    %2144 = vmatpush1.xpose.msra.mxu0 0.0
    %2145 = vmatprep.subr.mxu0 0.0
    %2146 = vmatpush1.xpose.msra.mxu0 0.0
    %2147 = vmatprep.subr.mxu0 0.0
    %2148 = vmatpush1.xpose.msra.mxu0 0.0
    %2149 = vmatprep.subr.mxu0 0.0
    %2150 = vmatpush1.xpose.msra.mxu0 0.0
    %2151 = vmatprep.subr.mxu0 0.0
    %2152 = vmatpush1.xpose.msra.mxu0 0.0
    %2153 = vmatprep.subr.mxu0 0.0
    %2154 = vmatpush1.xpose.msra.mxu0 0.0
    %2155 = vmatprep.subr.mxu0 0.0
    %2156 = vmatpush1.xpose.msra.mxu0 0.0
    %2157 = vmatprep.subr.mxu0 0.0
    %2158 = vmatpush1.xpose.msra.mxu0 0.0
    %2159 = vmatprep.subr.mxu0 0.0
    %2160 = vmatpush1.xpose.msra.mxu0 0.0
    %2161 = vmatprep.subr.mxu0 0.0
    %2162 = vmatpush1.xpose.msra.mxu0 0.0
    %2163 = vmatprep.subr.mxu0 0.0
    %2164 = vmatpush1.xpose.msra.mxu0 0.0
    %2165 = vmatprep.subr.mxu0 0.0
    %2166 = vmatpush1.xpose.msra.mxu0 0.0
    %2167 = vmatprep.subr.mxu0 0.0
    %2168 = vmatpush1.xpose.msra.mxu0 0.0
    %2169 = vmatprep.mubr.f32.mxu0 0.0
    %2170 = vmatmul.mubr.f32.gmra.mrb[0].mxu0 %v2101
    %v2171 = vpop.f32.mrb[0].mxu0
    %v2172 = vadd.f32 0.0, %v2171
    %v2173 = vpop.f32.mrb[0].mxu0
    %2174 = vdwg.mxu0
    %2176 = vrot.lane.b32.xlu0 %v2097, 96
    %v2177 = vpop.permute.xlu0 %2176
    %v2178 = vsel %vm249, %v2097, 0
    %v2180 = vsel %vm249, %v2177, 0
    %2182 = vmatprep.subr.mxu0 0.0
    %2183 = vmatpush1.xpose.msra.mxu0 %v2180
    %2184 = vmatprep.subr.mxu0 0.0
    %2185 = vmatpush1.xpose.msra.mxu0 0.0
    %2186 = vmatprep.subr.mxu0 0.0
    %2187 = vmatpush1.xpose.msra.mxu0 0.0
    %2188 = vmatprep.subr.mxu0 0.0
    %2189 = vmatpush1.xpose.msra.mxu0 0.0
    %2190 = vmatprep.subr.mxu0 0.0
    %2191 = vmatpush1.xpose.msra.mxu0 0.0
    %2192 = vmatprep.subr.mxu0 0.0
    %2193 = vmatpush1.xpose.msra.mxu0 0.0
    %2194 = vmatprep.subr.mxu0 0.0
    %2195 = vmatpush1.xpose.msra.mxu0 0.0
    %2196 = vmatprep.subr.mxu0 0.0
    %2197 = vmatpush1.xpose.msra.mxu0 0.0
    %2198 = vmatprep.subr.mxu0 0.0
    %2199 = vmatpush1.xpose.msra.mxu0 0.0
    %2200 = vmatprep.subr.mxu0 0.0
    %2201 = vmatpush1.xpose.msra.mxu0 0.0
    %2202 = vmatprep.subr.mxu0 0.0
    %2203 = vmatpush1.xpose.msra.mxu0 0.0
    %2204 = vmatprep.subr.mxu0 0.0
    %2205 = vmatpush1.xpose.msra.mxu0 0.0
    %2206 = vmatprep.subr.mxu0 0.0
    %2207 = vmatpush1.xpose.msra.mxu0 0.0
    %2208 = vmatprep.subr.mxu0 0.0
    %2209 = vmatpush1.xpose.msra.mxu0 0.0
    %2210 = vmatprep.subr.mxu0 0.0
    %2211 = vmatpush1.xpose.msra.mxu0 0.0
    %2212 = vmatprep.subr.mxu0 0.0
    %2213 = vmatpush1.xpose.msra.mxu0 0.0
    %2214 = vmatprep.subr.mxu0 0.0
    %2215 = vmatpush1.xpose.msra.mxu0 0.0
    %2216 = vmatprep.subr.mxu0 0.0
    %2217 = vmatpush1.xpose.msra.mxu0 0.0
    %2218 = vmatprep.subr.mxu0 0.0
    %2219 = vmatpush1.xpose.msra.mxu0 0.0
    %2220 = vmatprep.subr.mxu0 0.0
    %2221 = vmatpush1.xpose.msra.mxu0 0.0
    %2222 = vmatprep.subr.mxu0 0.0
    %2223 = vmatpush1.xpose.msra.mxu0 0.0
    %2224 = vmatprep.subr.mxu0 0.0
    %2225 = vmatpush1.xpose.msra.mxu0 0.0
    %2226 = vmatprep.subr.mxu0 0.0
    %2227 = vmatpush1.xpose.msra.mxu0 0.0
    %2228 = vmatprep.subr.mxu0 0.0
    %2229 = vmatpush1.xpose.msra.mxu0 0.0
    %2230 = vmatprep.subr.mxu0 0.0
    %2231 = vmatpush1.xpose.msra.mxu0 0.0
    %2232 = vmatprep.subr.mxu0 0.0
    %2233 = vmatpush1.xpose.msra.mxu0 0.0
    %2234 = vmatprep.subr.mxu0 0.0
    %2235 = vmatpush1.xpose.msra.mxu0 0.0
    %2236 = vmatprep.subr.mxu0 0.0
    %2237 = vmatpush1.xpose.msra.mxu0 0.0
    %2238 = vmatprep.subr.mxu0 0.0
    %2239 = vmatpush1.xpose.msra.mxu0 0.0
    %2240 = vmatprep.subr.mxu0 0.0
    %2241 = vmatpush1.xpose.msra.mxu0 0.0
    %2242 = vmatprep.subr.mxu0 0.0
    %2243 = vmatpush1.xpose.msra.mxu0 0.0
    %2244 = vmatprep.subr.mxu0 0.0
    %2245 = vmatpush1.xpose.msra.mxu0 0.0
    %2246 = vmatprep.mubr.f32.mxu0 0.0
    %2247 = vmatmul.mubr.f32.gmra.mrb[0].mxu0 %v2178
    %v2248 = vpop.f32.mrb[0].mxu0
    %v2249 = vadd.f32 0.0, %v2248
    %v2250 = vpop.f32.mrb[0].mxu0
    %2251 = vdwg.mxu0
    %v2252 = vmul.f32 %v2172, 0.35355338
    %v2253 = vmul.f32 %v2249, 0.35355338
    %v2254 = vadd.f32 %v2252, %v408
    %v2255 = vadd.f32 %v2253, %v412
    %v2256 = vsel %vm249, %v2254, -inf
    %2257 = vmax.xlane.f32.xlu0 %v2256
    %v2258 = vpop.xlane.xlu0 %2257
    %v2259 = vsel %vm249, %v2255, -inf
    %2260 = vmax.xlane.f32.xlu0 %v2259
    %v2261 = vpop.xlane.xlu0 %2260
    %v2262 = vsub.f32 %v2254, %v2258
    %v2263 = vsub.f32 %v2255, %v2261
    %v2264 = vmul.f32 %v2262, 1.442695
    %v2265 = vpow.pop %v2264
    %v2266 = vmul.f32 %v2263, 1.442695
    %v2267 = vpow.pop %v2266
    %v2268 = vsel %vm249, %v2265, 0.0
    %2269 = vadd.xlane.f32.xlu0 %v2268
    %v2270 = vpop.xlane.xlu0 %2269
    %v2271 = vsel %vm249, %v2267, 0.0
    %2272 = vadd.xlane.f32.xlu0 %v2271
    %v2273 = vpop.xlane.xlu0 %2272
    %v2274 = vrcp.pop %v2270
    %v2275 = vrcp.pop %v2273
    %v2276 = vmul.f32 %v2265, %v2274
    %v2277 = vmul.f32 %v2267, %v2275
    %2278 = vrot.lane.b32.xlu0 %v2096, 64
    %v2279 = vpop.permute.xlu0 %2278
    %v2282 = vsel %vm249, %v2276, 0
    %2284 = vmatprep.subr.mxu0 0.0
    %2285 = vmatpush1.msra.mxu0 %v2279
    %2286 = vmatprep.subr.mxu0 0.0
    %2287 = vmatpush1.msra.mxu0 0.0
    %2288 = vmatprep.subr.mxu0 0.0
    %2289 = vmatpush1.msra.mxu0 0.0
    %2290 = vmatprep.subr.mxu0 0.0
    %2291 = vmatpush1.msra.mxu0 0.0
    %2292 = vmatprep.subr.mxu0 0.0
    %2293 = vmatpush1.msra.mxu0 0.0
    %2294 = vmatprep.subr.mxu0 0.0
    %2295 = vmatpush1.msra.mxu0 0.0
    %2296 = vmatprep.subr.mxu0 0.0
    %2297 = vmatpush1.msra.mxu0 0.0
    %2298 = vmatprep.subr.mxu0 0.0
    %2299 = vmatpush1.msra.mxu0 0.0
    %2300 = vmatprep.subr.mxu0 0.0
    %2301 = vmatpush1.msra.mxu0 0.0
    %2302 = vmatprep.subr.mxu0 0.0
    %2303 = vmatpush1.msra.mxu0 0.0
    %2304 = vmatprep.subr.mxu0 0.0
    %2305 = vmatpush1.msra.mxu0 0.0
    %2306 = vmatprep.subr.mxu0 0.0
    %2307 = vmatpush1.msra.mxu0 0.0
    %2308 = vmatprep.subr.mxu0 0.0
    %2309 = vmatpush1.msra.mxu0 0.0
    %2310 = vmatprep.subr.mxu0 0.0
    %2311 = vmatpush1.msra.mxu0 0.0
    %2312 = vmatprep.subr.mxu0 0.0
    %2313 = vmatpush1.msra.mxu0 0.0
    %2314 = vmatprep.subr.mxu0 0.0
    %2315 = vmatpush1.msra.mxu0 0.0
    %2316 = vmatprep.subr.mxu0 0.0
    %2317 = vmatpush1.msra.mxu0 0.0
    %2318 = vmatprep.subr.mxu0 0.0
    %2319 = vmatpush1.msra.mxu0 0.0
    %2320 = vmatprep.subr.mxu0 0.0
    %2321 = vmatpush1.msra.mxu0 0.0
    %2322 = vmatprep.subr.mxu0 0.0
    %2323 = vmatpush1.msra.mxu0 0.0
    %2324 = vmatprep.subr.mxu0 0.0
    %2325 = vmatpush1.msra.mxu0 0.0
    %2326 = vmatprep.subr.mxu0 0.0
    %2327 = vmatpush1.msra.mxu0 0.0
    %2328 = vmatprep.subr.mxu0 0.0
    %2329 = vmatpush1.msra.mxu0 0.0
    %2330 = vmatprep.subr.mxu0 0.0
    %2331 = vmatpush1.msra.mxu0 0.0
    %2332 = vmatprep.subr.mxu0 0.0
    %2333 = vmatpush1.msra.mxu0 0.0
    %2334 = vmatprep.subr.mxu0 0.0
    %2335 = vmatpush1.msra.mxu0 0.0
    %2336 = vmatprep.subr.mxu0 0.0
    %2337 = vmatpush1.msra.mxu0 0.0
    %2338 = vmatprep.subr.mxu0 0.0
    %2339 = vmatpush1.msra.mxu0 0.0
    %2340 = vmatprep.subr.mxu0 0.0
    %2341 = vmatpush1.msra.mxu0 0.0
    %2342 = vmatprep.subr.mxu0 0.0
    %2343 = vmatpush1.msra.mxu0 0.0
    %2344 = vmatprep.subr.mxu0 0.0
    %2345 = vmatpush1.msra.mxu0 0.0
    %2346 = vmatprep.subr.mxu0 0.0
    %2347 = vmatpush1.msra.mxu0 0.0
    %2348 = vmatprep.mubr.f32.mxu0 0.0
    %2349 = vmatmul.mubr.f32.gmra.mrb[0].mxu0 %v2282
    %v2350 = vpop.f32.mrb[0].mxu0
    %v2351 = vadd.f32 0.0, %v2350
    %v2352 = vpop.f32.mrb[0].mxu0
    %2353 = vdwg.mxu0
    %2354 = vrot.lane.b32.xlu0 %v2097, 64
    %v2355 = vpop.permute.xlu0 %2354
    %v2358 = vsel %vm249, %v2277, 0
    %2360 = vmatprep.subr.mxu0 0.0
    %2361 = vmatpush1.msra.mxu0 %v2355
    %2362 = vmatprep.subr.mxu0 0.0
    %2363 = vmatpush1.msra.mxu0 0.0
    %2364 = vmatprep.subr.mxu0 0.0
    %2365 = vmatpush1.msra.mxu0 0.0
    %2366 = vmatprep.subr.mxu0 0.0
    %2367 = vmatpush1.msra.mxu0 0.0
    %2368 = vmatprep.subr.mxu0 0.0
    %2369 = vmatpush1.msra.mxu0 0.0
    %2370 = vmatprep.subr.mxu0 0.0
    %2371 = vmatpush1.msra.mxu0 0.0
    %2372 = vmatprep.subr.mxu0 0.0
    %2373 = vmatpush1.msra.mxu0 0.0
    %2374 = vmatprep.subr.mxu0 0.0
    %2375 = vmatpush1.msra.mxu0 0.0
    %2376 = vmatprep.subr.mxu0 0.0
    %2377 = vmatpush1.msra.mxu0 0.0
    %2378 = vmatprep.subr.mxu0 0.0
    %2379 = vmatpush1.msra.mxu0 0.0
    %2380 = vmatprep.subr.mxu0 0.0
    %2381 = vmatpush1.msra.mxu0 0.0
    %2382 = vmatprep.subr.mxu0 0.0
    %2383 = vmatpush1.msra.mxu0 0.0
    %2384 = vmatprep.subr.mxu0 0.0
    %2385 = vmatpush1.msra.mxu0 0.0
    %2386 = vmatprep.subr.mxu0 0.0
    %2387 = vmatpush1.msra.mxu0 0.0
    %2388 = vmatprep.subr.mxu0 0.0
    %2389 = vmatpush1.msra.mxu0 0.0
    %2390 = vmatprep.subr.mxu0 0.0
    %2391 = vmatpush1.msra.mxu0 0.0
    %2392 = vmatprep.subr.mxu0 0.0
    %2393 = vmatpush1.msra.mxu0 0.0
    %2394 = vmatprep.subr.mxu0 0.0
    %2395 = vmatpush1.msra.mxu0 0.0
    %2396 = vmatprep.subr.mxu0 0.0
    %2397 = vmatpush1.msra.mxu0 0.0
    %2398 = vmatprep.subr.mxu0 0.0
    %2399 = vmatpush1.msra.mxu0 0.0
    %2400 = vmatprep.subr.mxu0 0.0
    %2401 = vmatpush1.msra.mxu0 0.0
    %2402 = vmatprep.subr.mxu0 0.0
    %2403 = vmatpush1.msra.mxu0 0.0
    %2404 = vmatprep.subr.mxu0 0.0
    %2405 = vmatpush1.msra.mxu0 0.0
    %2406 = vmatprep.subr.mxu0 0.0
    %2407 = vmatpush1.msra.mxu0 0.0
    %2408 = vmatprep.subr.mxu0 0.0
    %2409 = vmatpush1.msra.mxu0 0.0
    %2410 = vmatprep.subr.mxu0 0.0
    %2411 = vmatpush1.msra.mxu0 0.0
    %2412 = vmatprep.subr.mxu0 0.0
    %2413 = vmatpush1.msra.mxu0 0.0
    %2414 = vmatprep.subr.mxu0 0.0
    %2415 = vmatpush1.msra.mxu0 0.0
    %2416 = vmatprep.subr.mxu0 0.0
    %2417 = vmatpush1.msra.mxu0 0.0
    %2418 = vmatprep.subr.mxu0 0.0
    %2419 = vmatpush1.msra.mxu0 0.0
    %2420 = vmatprep.subr.mxu0 0.0
    %2421 = vmatpush1.msra.mxu0 0.0
    %2422 = vmatprep.subr.mxu0 0.0
    %2423 = vmatpush1.msra.mxu0 0.0
    %2424 = vmatprep.mubr.f32.mxu0 0.0
    %2425 = vmatmul.mubr.f32.gmra.mrb[0].mxu0 %v2358
    %v2426 = vpop.f32.mrb[0].mxu0
    %v2427 = vadd.f32 0.0, %v2426
    %v2428 = vpop.f32.mrb[0].mxu0
    %2429 = vdwg.mxu0
    %2430 = vrot.lane.b32.xlu0 %v2096, 120
    %v2431 = vpop.permute.xlu0 %2430
    %2432 = vrot.lane.b32.xlu0 %v2096, 88
    %v2433 = vpop.permute.xlu0 %2432
    %v2434 = vsel %vm249, %v2431, 0
    %v2436 = vsel %vm249, %v2433, 0
    %2438 = vmatprep.subr.mxu0 0.0
    %2439 = vmatpush1.xpose.msra.mxu0 %v2436
    %2440 = vmatprep.subr.mxu0 0.0
    %2441 = vmatpush1.xpose.msra.mxu0 0.0
    %2442 = vmatprep.subr.mxu0 0.0
    %2443 = vmatpush1.xpose.msra.mxu0 0.0
    %2444 = vmatprep.subr.mxu0 0.0
    %2445 = vmatpush1.xpose.msra.mxu0 0.0
    %2446 = vmatprep.subr.mxu0 0.0
    %2447 = vmatpush1.xpose.msra.mxu0 0.0
    %2448 = vmatprep.subr.mxu0 0.0
    %2449 = vmatpush1.xpose.msra.mxu0 0.0
    %2450 = vmatprep.subr.mxu0 0.0
    %2451 = vmatpush1.xpose.msra.mxu0 0.0
    %2452 = vmatprep.subr.mxu0 0.0
    %2453 = vmatpush1.xpose.msra.mxu0 0.0
    %2454 = vmatprep.subr.mxu0 0.0
    %2455 = vmatpush1.xpose.msra.mxu0 0.0
    %2456 = vmatprep.subr.mxu0 0.0
    %2457 = vmatpush1.xpose.msra.mxu0 0.0
    %2458 = vmatprep.subr.mxu0 0.0
    %2459 = vmatpush1.xpose.msra.mxu0 0.0
    %2460 = vmatprep.subr.mxu0 0.0
    %2461 = vmatpush1.xpose.msra.mxu0 0.0
    %2462 = vmatprep.subr.mxu0 0.0
    %2463 = vmatpush1.xpose.msra.mxu0 0.0
    %2464 = vmatprep.subr.mxu0 0.0
    %2465 = vmatpush1.xpose.msra.mxu0 0.0
    %2466 = vmatprep.subr.mxu0 0.0
    %2467 = vmatpush1.xpose.msra.mxu0 0.0
    %2468 = vmatprep.subr.mxu0 0.0
    %2469 = vmatpush1.xpose.msra.mxu0 0.0
    %2470 = vmatprep.subr.mxu0 0.0
    %2471 = vmatpush1.xpose.msra.mxu0 0.0
    %2472 = vmatprep.subr.mxu0 0.0
    %2473 = vmatpush1.xpose.msra.mxu0 0.0
    %2474 = vmatprep.subr.mxu0 0.0
    %2475 = vmatpush1.xpose.msra.mxu0 0.0
    %2476 = vmatprep.subr.mxu0 0.0
    %2477 = vmatpush1.xpose.msra.mxu0 0.0
    %2478 = vmatprep.subr.mxu0 0.0
    %2479 = vmatpush1.xpose.msra.mxu0 0.0
    %2480 = vmatprep.subr.mxu0 0.0
    %2481 = vmatpush1.xpose.msra.mxu0 0.0
    %2482 = vmatprep.subr.mxu0 0.0
    %2483 = vmatpush1.xpose.msra.mxu0 0.0
    %2484 = vmatprep.subr.mxu0 0.0
    %2485 = vmatpush1.xpose.msra.mxu0 0.0
    %2486 = vmatprep.subr.mxu0 0.0
    %2487 = vmatpush1.xpose.msra.mxu0 0.0
    %2488 = vmatprep.subr.mxu0 0.0
    %2489 = vmatpush1.xpose.msra.mxu0 0.0
    %2490 = vmatprep.subr.mxu0 0.0
    %2491 = vmatpush1.xpose.msra.mxu0 0.0
    %2492 = vmatprep.subr.mxu0 0.0
    %2493 = vmatpush1.xpose.msra.mxu0 0.0
    %2494 = vmatprep.subr.mxu0 0.0
    %2495 = vmatpush1.xpose.msra.mxu0 0.0
    %2496 = vmatprep.subr.mxu0 0.0
    %2497 = vmatpush1.xpose.msra.mxu0 0.0
    %2498 = vmatprep.subr.mxu0 0.0
    %2499 = vmatpush1.xpose.msra.mxu0 0.0
    %2500 = vmatprep.subr.mxu0 0.0
    %2501 = vmatpush1.xpose.msra.mxu0 0.0
    %2502 = vmatprep.mubr.f32.mxu0 0.0
    %2503 = vmatmul.mubr.f32.gmra.mrb[0].mxu0 %v2434
    %v2504 = vpop.f32.mrb[0].mxu0
    %v2505 = vadd.f32 0.0, %v2504
    %v2506 = vpop.f32.mrb[0].mxu0
    %2507 = vdwg.mxu0
    %2508 = vrot.lane.b32.xlu0 %v2097, 120
    %v2509 = vpop.permute.xlu0 %2508
    %2510 = vrot.lane.b32.xlu0 %v2097, 88
    %v2511 = vpop.permute.xlu0 %2510
    %v2512 = vsel %vm249, %v2509, 0
    %v2514 = vsel %vm249, %v2511, 0
    %2516 = vmatprep.subr.mxu0 0.0
    %2517 = vmatpush1.xpose.msra.mxu0 %v2514
    %2518 = vmatprep.subr.mxu0 0.0
    %2519 = vmatpush1.xpose.msra.mxu0 0.0
    %2520 = vmatprep.subr.mxu0 0.0
    %2521 = vmatpush1.xpose.msra.mxu0 0.0
    %2522 = vmatprep.subr.mxu0 0.0
    %2523 = vmatpush1.xpose.msra.mxu0 0.0
    %2524 = vmatprep.subr.mxu0 0.0
    %2525 = vmatpush1.xpose.msra.mxu0 0.0
    %2526 = vmatprep.subr.mxu0 0.0
    %2527 = vmatpush1.xpose.msra.mxu0 0.0
    %2528 = vmatprep.subr.mxu0 0.0
    %2529 = vmatpush1.xpose.msra.mxu0 0.0
    %2530 = vmatprep.subr.mxu0 0.0
    %2531 = vmatpush1.xpose.msra.mxu0 0.0
    %2532 = vmatprep.subr.mxu0 0.0
    %2533 = vmatpush1.xpose.msra.mxu0 0.0
    %2534 = vmatprep.subr.mxu0 0.0
    %2535 = vmatpush1.xpose.msra.mxu0 0.0
    %2536 = vmatprep.subr.mxu0 0.0
    %2537 = vmatpush1.xpose.msra.mxu0 0.0
    %2538 = vmatprep.subr.mxu0 0.0
    %2539 = vmatpush1.xpose.msra.mxu0 0.0
    %2540 = vmatprep.subr.mxu0 0.0
    %2541 = vmatpush1.xpose.msra.mxu0 0.0
    %2542 = vmatprep.subr.mxu0 0.0
    %2543 = vmatpush1.xpose.msra.mxu0 0.0
    %2544 = vmatprep.subr.mxu0 0.0
    %2545 = vmatpush1.xpose.msra.mxu0 0.0
    %2546 = vmatprep.subr.mxu0 0.0
    %2547 = vmatpush1.xpose.msra.mxu0 0.0
    %2548 = vmatprep.subr.mxu0 0.0
    %2549 = vmatpush1.xpose.msra.mxu0 0.0
    %2550 = vmatprep.subr.mxu0 0.0
    %2551 = vmatpush1.xpose.msra.mxu0 0.0
    %2552 = vmatprep.subr.mxu0 0.0
    %2553 = vmatpush1.xpose.msra.mxu0 0.0
    %2554 = vmatprep.subr.mxu0 0.0
    %2555 = vmatpush1.xpose.msra.mxu0 0.0
    %2556 = vmatprep.subr.mxu0 0.0
    %2557 = vmatpush1.xpose.msra.mxu0 0.0
    %2558 = vmatprep.subr.mxu0 0.0
    %2559 = vmatpush1.xpose.msra.mxu0 0.0
    %2560 = vmatprep.subr.mxu0 0.0
    %2561 = vmatpush1.xpose.msra.mxu0 0.0
    %2562 = vmatprep.subr.mxu0 0.0
    %2563 = vmatpush1.xpose.msra.mxu0 0.0
    %2564 = vmatprep.subr.mxu0 0.0
    %2565 = vmatpush1.xpose.msra.mxu0 0.0
    %2566 = vmatprep.subr.mxu0 0.0
    %2567 = vmatpush1.xpose.msra.mxu0 0.0
    %2568 = vmatprep.subr.mxu0 0.0
    %2569 = vmatpush1.xpose.msra.mxu0 0.0
    %2570 = vmatprep.subr.mxu0 0.0
    %2571 = vmatpush1.xpose.msra.mxu0 0.0
    %2572 = vmatprep.subr.mxu0 0.0
    %2573 = vmatpush1.xpose.msra.mxu0 0.0
    %2574 = vmatprep.subr.mxu0 0.0
    %2575 = vmatpush1.xpose.msra.mxu0 0.0
    %2576 = vmatprep.subr.mxu0 0.0
    %2577 = vmatpush1.xpose.msra.mxu0 0.0
    %2578 = vmatprep.subr.mxu0 0.0
    %2579 = vmatpush1.xpose.msra.mxu0 0.0
    %2580 = vmatprep.mubr.f32.mxu0 0.0
    %2581 = vmatmul.mubr.f32.gmra.mrb[0].mxu0 %v2512
    %v2582 = vpop.f32.mrb[0].mxu0
    %v2583 = vadd.f32 0.0, %v2582
    %v2584 = vpop.f32.mrb[0].mxu0
    %2585 = vdwg.mxu0
    %v2586 = vmul.f32 %v2505, 0.35355338
    %v2587 = vmul.f32 %v2583, 0.35355338
    %v2588 = vadd.f32 %v2586, %v408
    %v2589 = vadd.f32 %v2587, %v412
    %v2590 = vsel %vm249, %v2588, -inf
    %2591 = vmax.xlane.f32.xlu0 %v2590
    %v2592 = vpop.xlane.xlu0 %2591
    %v2593 = vsel %vm249, %v2589, -inf
    %2594 = vmax.xlane.f32.xlu0 %v2593
    %v2595 = vpop.xlane.xlu0 %2594
    %v2596 = vsub.f32 %v2588, %v2592
    %v2597 = vsub.f32 %v2589, %v2595
    %v2598 = vmul.f32 %v2596, 1.442695
    %v2599 = vpow.pop %v2598
    %v2600 = vmul.f32 %v2597, 1.442695
    %v2601 = vpow.pop %v2600
    %v2602 = vsel %vm249, %v2599, 0.0
    %2603 = vadd.xlane.f32.xlu0 %v2602
    %v2604 = vpop.xlane.xlu0 %2603
    %v2605 = vsel %vm249, %v2601, 0.0
    %2606 = vadd.xlane.f32.xlu0 %v2605
    %v2607 = vpop.xlane.xlu0 %2606
    %v2608 = vrcp.pop %v2604
    %v2609 = vrcp.pop %v2607
    %v2610 = vmul.f32 %v2599, %v2608
    %v2611 = vmul.f32 %v2601, %v2609
    %2612 = vrot.lane.b32.xlu0 %v2096, 56
    %v2613 = vpop.permute.xlu0 %2612
    %v2616 = vsel %vm249, %v2610, 0
    %2618 = vmatprep.subr.mxu0 0.0
    %2619 = vmatpush1.msra.mxu0 %v2613
    %2620 = vmatprep.subr.mxu0 0.0
    %2621 = vmatpush1.msra.mxu0 0.0
    %2622 = vmatprep.subr.mxu0 0.0
    %2623 = vmatpush1.msra.mxu0 0.0
    %2624 = vmatprep.subr.mxu0 0.0
    %2625 = vmatpush1.msra.mxu0 0.0
    %2626 = vmatprep.subr.mxu0 0.0
    %2627 = vmatpush1.msra.mxu0 0.0
    %2628 = vmatprep.subr.mxu0 0.0
    %2629 = vmatpush1.msra.mxu0 0.0
    %2630 = vmatprep.subr.mxu0 0.0
    %2631 = vmatpush1.msra.mxu0 0.0
    %2632 = vmatprep.subr.mxu0 0.0
    %2633 = vmatpush1.msra.mxu0 0.0
    %2634 = vmatprep.subr.mxu0 0.0
    %2635 = vmatpush1.msra.mxu0 0.0
    %2636 = vmatprep.subr.mxu0 0.0
    %2637 = vmatpush1.msra.mxu0 0.0
    %2638 = vmatprep.subr.mxu0 0.0
    %2639 = vmatpush1.msra.mxu0 0.0
    %2640 = vmatprep.subr.mxu0 0.0
    %2641 = vmatpush1.msra.mxu0 0.0
    %2642 = vmatprep.subr.mxu0 0.0
    %2643 = vmatpush1.msra.mxu0 0.0
    %2644 = vmatprep.subr.mxu0 0.0
    %2645 = vmatpush1.msra.mxu0 0.0
    %2646 = vmatprep.subr.mxu0 0.0
    %2647 = vmatpush1.msra.mxu0 0.0
    %2648 = vmatprep.subr.mxu0 0.0
    %2649 = vmatpush1.msra.mxu0 0.0
    %2650 = vmatprep.subr.mxu0 0.0
    %2651 = vmatpush1.msra.mxu0 0.0
    %2652 = vmatprep.subr.mxu0 0.0
    %2653 = vmatpush1.msra.mxu0 0.0
    %2654 = vmatprep.subr.mxu0 0.0
    %2655 = vmatpush1.msra.mxu0 0.0
    %2656 = vmatprep.subr.mxu0 0.0
    %2657 = vmatpush1.msra.mxu0 0.0
    %2658 = vmatprep.subr.mxu0 0.0
    %2659 = vmatpush1.msra.mxu0 0.0
    %2660 = vmatprep.subr.mxu0 0.0
    %2661 = vmatpush1.msra.mxu0 0.0
    %2662 = vmatprep.subr.mxu0 0.0
    %2663 = vmatpush1.msra.mxu0 0.0
    %2664 = vmatprep.subr.mxu0 0.0
    %2665 = vmatpush1.msra.mxu0 0.0
    %2666 = vmatprep.subr.mxu0 0.0
    %2667 = vmatpush1.msra.mxu0 0.0
    %2668 = vmatprep.subr.mxu0 0.0
    %2669 = vmatpush1.msra.mxu0 0.0
    %2670 = vmatprep.subr.mxu0 0.0
    %2671 = vmatpush1.msra.mxu0 0.0
    %2672 = vmatprep.subr.mxu0 0.0
    %2673 = vmatpush1.msra.mxu0 0.0
    %2674 = vmatprep.subr.mxu0 0.0
    %2675 = vmatpush1.msra.mxu0 0.0
    %2676 = vmatprep.subr.mxu0 0.0
    %2677 = vmatpush1.msra.mxu0 0.0
    %2678 = vmatprep.subr.mxu0 0.0
    %2679 = vmatpush1.msra.mxu0 0.0
    %2680 = vmatprep.subr.mxu0 0.0
    %2681 = vmatpush1.msra.mxu0 0.0
    %2682 = vmatprep.mubr.f32.mxu0 0.0
    %2683 = vmatmul.mubr.f32.gmra.mrb[0].mxu0 %v2616
    %v2684 = vpop.f32.mrb[0].mxu0
    %v2685 = vadd.f32 0.0, %v2684
    %v2686 = vpop.f32.mrb[0].mxu0
    %2687 = vdwg.mxu0
    %2688 = vrot.lane.b32.xlu0 %v2097, 56
    %v2689 = vpop.permute.xlu0 %2688
    %v2692 = vsel %vm249, %v2611, 0
    %2694 = vmatprep.subr.mxu0 0.0
    %2695 = vmatpush1.msra.mxu0 %v2689
    %2696 = vmatprep.subr.mxu0 0.0
    %2697 = vmatpush1.msra.mxu0 0.0
    %2698 = vmatprep.subr.mxu0 0.0
    %2699 = vmatpush1.msra.mxu0 0.0
    %2700 = vmatprep.subr.mxu0 0.0
    %2701 = vmatpush1.msra.mxu0 0.0
    %2702 = vmatprep.subr.mxu0 0.0
    %2703 = vmatpush1.msra.mxu0 0.0
    %2704 = vmatprep.subr.mxu0 0.0
    %2705 = vmatpush1.msra.mxu0 0.0
    %2706 = vmatprep.subr.mxu0 0.0
    %2707 = vmatpush1.msra.mxu0 0.0
    %2708 = vmatprep.subr.mxu0 0.0
    %2709 = vmatpush1.msra.mxu0 0.0
    %2710 = vmatprep.subr.mxu0 0.0
    %2711 = vmatpush1.msra.mxu0 0.0
    %2712 = vmatprep.subr.mxu0 0.0
    %2713 = vmatpush1.msra.mxu0 0.0
    %2714 = vmatprep.subr.mxu0 0.0
    %2715 = vmatpush1.msra.mxu0 0.0
    %2716 = vmatprep.subr.mxu0 0.0
    %2717 = vmatpush1.msra.mxu0 0.0
    %2718 = vmatprep.subr.mxu0 0.0
    %2719 = vmatpush1.msra.mxu0 0.0
    %2720 = vmatprep.subr.mxu0 0.0
    %2721 = vmatpush1.msra.mxu0 0.0
    %2722 = vmatprep.subr.mxu0 0.0
    %2723 = vmatpush1.msra.mxu0 0.0
    %2724 = vmatprep.subr.mxu0 0.0
    %2725 = vmatpush1.msra.mxu0 0.0
    %2726 = vmatprep.subr.mxu0 0.0
    %2727 = vmatpush1.msra.mxu0 0.0
    %2728 = vmatprep.subr.mxu0 0.0
    %2729 = vmatpush1.msra.mxu0 0.0
    %2730 = vmatprep.subr.mxu0 0.0
    %2731 = vmatpush1.msra.mxu0 0.0
    %2732 = vmatprep.subr.mxu0 0.0
    %2733 = vmatpush1.msra.mxu0 0.0
    %2734 = vmatprep.subr.mxu0 0.0
    %2735 = vmatpush1.msra.mxu0 0.0
    %2736 = vmatprep.subr.mxu0 0.0
    %2737 = vmatpush1.msra.mxu0 0.0
    %2738 = vmatprep.subr.mxu0 0.0
    %2739 = vmatpush1.msra.mxu0 0.0
    %2740 = vmatprep.subr.mxu0 0.0
    %2741 = vmatpush1.msra.mxu0 0.0
    %2742 = vmatprep.subr.mxu0 0.0
    %2743 = vmatpush1.msra.mxu0 0.0
    %2744 = vmatprep.subr.mxu0 0.0
    %2745 = vmatpush1.msra.mxu0 0.0
    %2746 = vmatprep.subr.mxu0 0.0
    %2747 = vmatpush1.msra.mxu0 0.0
    %2748 = vmatprep.subr.mxu0 0.0
    %2749 = vmatpush1.msra.mxu0 0.0
    %2750 = vmatprep.subr.mxu0 0.0
    %2751 = vmatpush1.msra.mxu0 0.0
    %2752 = vmatprep.subr.mxu0 0.0
    %2753 = vmatpush1.msra.mxu0 0.0
    %2754 = vmatprep.subr.mxu0 0.0
    %2755 = vmatpush1.msra.mxu0 0.0
    %2756 = vmatprep.subr.mxu0 0.0
    %2757 = vmatpush1.msra.mxu0 0.0
    %2758 = vmatprep.mubr.f32.mxu0 0.0
    %2759 = vmatmul.mubr.f32.gmra.mrb[0].mxu0 %v2692
    %v2760 = vpop.f32.mrb[0].mxu0
    %v2761 = vadd.f32 0.0, %v2760
    %v2762 = vpop.f32.mrb[0].mxu0
    %2763 = vdwg.mxu0
    %2764 = vrot.lane.b32.xlu0 %v2096, 112
    %v2765 = vpop.permute.xlu0 %2764
    %2766 = vrot.lane.b32.xlu0 %v2096, 80
    %v2767 = vpop.permute.xlu0 %2766
    %v2768 = vsel %vm249, %v2765, 0
    %v2770 = vsel %vm249, %v2767, 0
    %2772 = vmatprep.subr.mxu0 0.0
    %2773 = vmatpush1.xpose.msra.mxu0 %v2770
    %2774 = vmatprep.subr.mxu0 0.0
    %2775 = vmatpush1.xpose.msra.mxu0 0.0
    %2776 = vmatprep.subr.mxu0 0.0
    %2777 = vmatpush1.xpose.msra.mxu0 0.0
    %2778 = vmatprep.subr.mxu0 0.0
    %2779 = vmatpush1.xpose.msra.mxu0 0.0
    %2780 = vmatprep.subr.mxu0 0.0
    %2781 = vmatpush1.xpose.msra.mxu0 0.0
    %2782 = vmatprep.subr.mxu0 0.0
    %2783 = vmatpush1.xpose.msra.mxu0 0.0
    %2784 = vmatprep.subr.mxu0 0.0
    %2785 = vmatpush1.xpose.msra.mxu0 0.0
    %2786 = vmatprep.subr.mxu0 0.0
    %2787 = vmatpush1.xpose.msra.mxu0 0.0
    %2788 = vmatprep.subr.mxu0 0.0
    %2789 = vmatpush1.xpose.msra.mxu0 0.0
    %2790 = vmatprep.subr.mxu0 0.0
    %2791 = vmatpush1.xpose.msra.mxu0 0.0
    %2792 = vmatprep.subr.mxu0 0.0
    %2793 = vmatpush1.xpose.msra.mxu0 0.0
    %2794 = vmatprep.subr.mxu0 0.0
    %2795 = vmatpush1.xpose.msra.mxu0 0.0
    %2796 = vmatprep.subr.mxu0 0.0
    %2797 = vmatpush1.xpose.msra.mxu0 0.0
    %2798 = vmatprep.subr.mxu0 0.0
    %2799 = vmatpush1.xpose.msra.mxu0 0.0
    %2800 = vmatprep.subr.mxu0 0.0
    %2801 = vmatpush1.xpose.msra.mxu0 0.0
    %2802 = vmatprep.subr.mxu0 0.0
    %2803 = vmatpush1.xpose.msra.mxu0 0.0
    %2804 = vmatprep.subr.mxu0 0.0
    %2805 = vmatpush1.xpose.msra.mxu0 0.0
    %2806 = vmatprep.subr.mxu0 0.0
    %2807 = vmatpush1.xpose.msra.mxu0 0.0
    %2808 = vmatprep.subr.mxu0 0.0
    %2809 = vmatpush1.xpose.msra.mxu0 0.0
    %2810 = vmatprep.subr.mxu0 0.0
    %2811 = vmatpush1.xpose.msra.mxu0 0.0
    %2812 = vmatprep.subr.mxu0 0.0
    %2813 = vmatpush1.xpose.msra.mxu0 0.0
    %2814 = vmatprep.subr.mxu0 0.0
    %2815 = vmatpush1.xpose.msra.mxu0 0.0
    %2816 = vmatprep.subr.mxu0 0.0
    %2817 = vmatpush1.xpose.msra.mxu0 0.0
    %2818 = vmatprep.subr.mxu0 0.0
    %2819 = vmatpush1.xpose.msra.mxu0 0.0
    %2820 = vmatprep.subr.mxu0 0.0
    %2821 = vmatpush1.xpose.msra.mxu0 0.0
    %2822 = vmatprep.subr.mxu0 0.0
    %2823 = vmatpush1.xpose.msra.mxu0 0.0
    %2824 = vmatprep.subr.mxu0 0.0
    %2825 = vmatpush1.xpose.msra.mxu0 0.0
    %2826 = vmatprep.subr.mxu0 0.0
    %2827 = vmatpush1.xpose.msra.mxu0 0.0
    %2828 = vmatprep.subr.mxu0 0.0
    %2829 = vmatpush1.xpose.msra.mxu0 0.0
    %2830 = vmatprep.subr.mxu0 0.0
    %2831 = vmatpush1.xpose.msra.mxu0 0.0
    %2832 = vmatprep.subr.mxu0 0.0
    %2833 = vmatpush1.xpose.msra.mxu0 0.0
    %2834 = vmatprep.subr.mxu0 0.0
    %2835 = vmatpush1.xpose.msra.mxu0 0.0
    %2836 = vmatprep.mubr.f32.mxu0 0.0
    %2837 = vmatmul.mubr.f32.gmra.mrb[0].mxu0 %v2768
    %v2838 = vpop.f32.mrb[0].mxu0
    %v2839 = vadd.f32 0.0, %v2838
    %v2840 = vpop.f32.mrb[0].mxu0
    %2841 = vdwg.mxu0
    %2842 = vrot.lane.b32.xlu0 %v2097, 112
    %v2843 = vpop.permute.xlu0 %2842
    %2844 = vrot.lane.b32.xlu0 %v2097, 80
    %v2845 = vpop.permute.xlu0 %2844
    %v2846 = vsel %vm249, %v2843, 0
    %v2848 = vsel %vm249, %v2845, 0
    %2850 = vmatprep.subr.mxu0 0.0
    %2851 = vmatpush1.xpose.msra.mxu0 %v2848
    %2852 = vmatprep.subr.mxu0 0.0
    %2853 = vmatpush1.xpose.msra.mxu0 0.0
    %2854 = vmatprep.subr.mxu0 0.0
    %2855 = vmatpush1.xpose.msra.mxu0 0.0
    %2856 = vmatprep.subr.mxu0 0.0
    %2857 = vmatpush1.xpose.msra.mxu0 0.0
    %2858 = vmatprep.subr.mxu0 0.0
    %2859 = vmatpush1.xpose.msra.mxu0 0.0
    %2860 = vmatprep.subr.mxu0 0.0
    %2861 = vmatpush1.xpose.msra.mxu0 0.0
    %2862 = vmatprep.subr.mxu0 0.0
    %2863 = vmatpush1.xpose.msra.mxu0 0.0
    %2864 = vmatprep.subr.mxu0 0.0
    %2865 = vmatpush1.xpose.msra.mxu0 0.0
    %2866 = vmatprep.subr.mxu0 0.0
    %2867 = vmatpush1.xpose.msra.mxu0 0.0
    %2868 = vmatprep.subr.mxu0 0.0
    %2869 = vmatpush1.xpose.msra.mxu0 0.0
    %2870 = vmatprep.subr.mxu0 0.0
    %2871 = vmatpush1.xpose.msra.mxu0 0.0
    %2872 = vmatprep.subr.mxu0 0.0
    %2873 = vmatpush1.xpose.msra.mxu0 0.0
    %2874 = vmatprep.subr.mxu0 0.0
    %2875 = vmatpush1.xpose.msra.mxu0 0.0
    %2876 = vmatprep.subr.mxu0 0.0
    %2877 = vmatpush1.xpose.msra.mxu0 0.0
    %2878 = vmatprep.subr.mxu0 0.0
    %2879 = vmatpush1.xpose.msra.mxu0 0.0
    %2880 = vmatprep.subr.mxu0 0.0
    %2881 = vmatpush1.xpose.msra.mxu0 0.0
    %2882 = vmatprep.subr.mxu0 0.0
    %2883 = vmatpush1.xpose.msra.mxu0 0.0
    %2884 = vmatprep.subr.mxu0 0.0
    %2885 = vmatpush1.xpose.msra.mxu0 0.0
    %2886 = vmatprep.subr.mxu0 0.0
    %2887 = vmatpush1.xpose.msra.mxu0 0.0
    %2888 = vmatprep.subr.mxu0 0.0
    %2889 = vmatpush1.xpose.msra.mxu0 0.0
    %2890 = vmatprep.subr.mxu0 0.0
    %2891 = vmatpush1.xpose.msra.mxu0 0.0
    %2892 = vmatprep.subr.mxu0 0.0
    %2893 = vmatpush1.xpose.msra.mxu0 0.0
    %2894 = vmatprep.subr.mxu0 0.0
    %2895 = vmatpush1.xpose.msra.mxu0 0.0
    %2896 = vmatprep.subr.mxu0 0.0
    %2897 = vmatpush1.xpose.msra.mxu0 0.0
    %2898 = vmatprep.subr.mxu0 0.0
    %2899 = vmatpush1.xpose.msra.mxu0 0.0
    %2900 = vmatprep.subr.mxu0 0.0
    %2901 = vmatpush1.xpose.msra.mxu0 0.0
    %2902 = vmatprep.subr.mxu0 0.0
    %2903 = vmatpush1.xpose.msra.mxu0 0.0
    %2904 = vmatprep.subr.mxu0 0.0
    %2905 = vmatpush1.xpose.msra.mxu0 0.0
    %2906 = vmatprep.subr.mxu0 0.0
    %2907 = vmatpush1.xpose.msra.mxu0 0.0
    %2908 = vmatprep.subr.mxu0 0.0
    %2909 = vmatpush1.xpose.msra.mxu0 0.0
    %2910 = vmatprep.subr.mxu0 0.0
    %2911 = vmatpush1.xpose.msra.mxu0 0.0
    %2912 = vmatprep.subr.mxu0 0.0
    %2913 = vmatpush1.xpose.msra.mxu0 0.0
    %2914 = vmatprep.mubr.f32.mxu0 0.0
    %2915 = vmatmul.mubr.f32.gmra.mrb[0].mxu0 %v2846
    %v2916 = vpop.f32.mrb[0].mxu0
    %v2917 = vadd.f32 0.0, %v2916
    %v2918 = vpop.f32.mrb[0].mxu0
    %2919 = vdwg.mxu0
    %v2920 = vmul.f32 %v2839, 0.35355338
    %v2921 = vmul.f32 %v2917, 0.35355338
    %v2922 = vadd.f32 %v2920, %v408
    %v2923 = vadd.f32 %v2921, %v412
    %v2924 = vsel %vm249, %v2922, -inf
    %2925 = vmax.xlane.f32.xlu0 %v2924
    %v2926 = vpop.xlane.xlu0 %2925
    %v2927 = vsel %vm249, %v2923, -inf
    %2928 = vmax.xlane.f32.xlu0 %v2927
    %v2929 = vpop.xlane.xlu0 %2928
    %v2930 = vsub.f32 %v2922, %v2926
    %v2931 = vsub.f32 %v2923, %v2929
    %v2932 = vmul.f32 %v2930, 1.442695
    %v2933 = vpow.pop %v2932
    %v2934 = vmul.f32 %v2931, 1.442695
    %v2935 = vpow.pop %v2934
    %v2936 = vsel %vm249, %v2933, 0.0
    %2937 = vadd.xlane.f32.xlu0 %v2936
    %v2938 = vpop.xlane.xlu0 %2937
    %v2939 = vsel %vm249, %v2935, 0.0
    %2940 = vadd.xlane.f32.xlu0 %v2939
    %v2941 = vpop.xlane.xlu0 %2940
    %v2942 = vrcp.pop %v2938
    %v2943 = vrcp.pop %v2941
    %v2944 = vmul.f32 %v2933, %v2942
    %v2945 = vmul.f32 %v2935, %v2943
    %2946 = vrot.lane.b32.xlu0 %v2096, 48
    %v2947 = vpop.permute.xlu0 %2946
    %v2950 = vsel %vm249, %v2944, 0
    %2952 = vmatprep.subr.mxu0 0.0
    %2953 = vmatpush1.msra.mxu0 %v2947
    %2954 = vmatprep.subr.mxu0 0.0
    %2955 = vmatpush1.msra.mxu0 0.0
    %2956 = vmatprep.subr.mxu0 0.0
    %2957 = vmatpush1.msra.mxu0 0.0
    %2958 = vmatprep.subr.mxu0 0.0
    %2959 = vmatpush1.msra.mxu0 0.0
    %2960 = vmatprep.subr.mxu0 0.0
    %2961 = vmatpush1.msra.mxu0 0.0
    %2962 = vmatprep.subr.mxu0 0.0
    %2963 = vmatpush1.msra.mxu0 0.0
    %2964 = vmatprep.subr.mxu0 0.0
    %2965 = vmatpush1.msra.mxu0 0.0
    %2966 = vmatprep.subr.mxu0 0.0
    %2967 = vmatpush1.msra.mxu0 0.0
    %2968 = vmatprep.subr.mxu0 0.0
    %2969 = vmatpush1.msra.mxu0 0.0
    %2970 = vmatprep.subr.mxu0 0.0
    %2971 = vmatpush1.msra.mxu0 0.0
    %2972 = vmatprep.subr.mxu0 0.0
    %2973 = vmatpush1.msra.mxu0 0.0
    %2974 = vmatprep.subr.mxu0 0.0
    %2975 = vmatpush1.msra.mxu0 0.0
    %2976 = vmatprep.subr.mxu0 0.0
    %2977 = vmatpush1.msra.mxu0 0.0
    %2978 = vmatprep.subr.mxu0 0.0
    %2979 = vmatpush1.msra.mxu0 0.0
    %2980 = vmatprep.subr.mxu0 0.0
    %2981 = vmatpush1.msra.mxu0 0.0
    %2982 = vmatprep.subr.mxu0 0.0
    %2983 = vmatpush1.msra.mxu0 0.0
    %2984 = vmatprep.subr.mxu0 0.0
    %2985 = vmatpush1.msra.mxu0 0.0
    %2986 = vmatprep.subr.mxu0 0.0
    %2987 = vmatpush1.msra.mxu0 0.0
    %2988 = vmatprep.subr.mxu0 0.0
    %2989 = vmatpush1.msra.mxu0 0.0
    %2990 = vmatprep.subr.mxu0 0.0
    %2991 = vmatpush1.msra.mxu0 0.0
    %2992 = vmatprep.subr.mxu0 0.0
    %2993 = vmatpush1.msra.mxu0 0.0
    %2994 = vmatprep.subr.mxu0 0.0
    %2995 = vmatpush1.msra.mxu0 0.0
    %2996 = vmatprep.subr.mxu0 0.0
    %2997 = vmatpush1.msra.mxu0 0.0
    %2998 = vmatprep.subr.mxu0 0.0
    %2999 = vmatpush1.msra.mxu0 0.0
    %3000 = vmatprep.subr.mxu0 0.0
    %3001 = vmatpush1.msra.mxu0 0.0
    %3002 = vmatprep.subr.mxu0 0.0
    %3003 = vmatpush1.msra.mxu0 0.0
    %3004 = vmatprep.subr.mxu0 0.0
    %3005 = vmatpush1.msra.mxu0 0.0
    %3006 = vmatprep.subr.mxu0 0.0
    %3007 = vmatpush1.msra.mxu0 0.0
    %3008 = vmatprep.subr.mxu0 0.0
    %3009 = vmatpush1.msra.mxu0 0.0
    %3010 = vmatprep.subr.mxu0 0.0
    %3011 = vmatpush1.msra.mxu0 0.0
    %3012 = vmatprep.subr.mxu0 0.0
    %3013 = vmatpush1.msra.mxu0 0.0
    %3014 = vmatprep.subr.mxu0 0.0
    %3015 = vmatpush1.msra.mxu0 0.0
    %3016 = vmatprep.mubr.f32.mxu0 0.0
    %3017 = vmatmul.mubr.f32.gmra.mrb[0].mxu0 %v2950
    %v3018 = vpop.f32.mrb[0].mxu0
    %v3019 = vadd.f32 0.0, %v3018
    %v3020 = vpop.f32.mrb[0].mxu0
    %3021 = vdwg.mxu0
    %3022 = vrot.lane.b32.xlu0 %v2097, 48
    %v3023 = vpop.permute.xlu0 %3022
    %v3026 = vsel %vm249, %v2945, 0
    %3028 = vmatprep.subr.mxu0 0.0
    %3029 = vmatpush1.msra.mxu0 %v3023
    %3030 = vmatprep.subr.mxu0 0.0
    %3031 = vmatpush1.msra.mxu0 0.0
    %3032 = vmatprep.subr.mxu0 0.0
    %3033 = vmatpush1.msra.mxu0 0.0
    %3034 = vmatprep.subr.mxu0 0.0
    %3035 = vmatpush1.msra.mxu0 0.0
    %3036 = vmatprep.subr.mxu0 0.0
    %3037 = vmatpush1.msra.mxu0 0.0
    %3038 = vmatprep.subr.mxu0 0.0
    %3039 = vmatpush1.msra.mxu0 0.0
    %3040 = vmatprep.subr.mxu0 0.0
    %3041 = vmatpush1.msra.mxu0 0.0
    %3042 = vmatprep.subr.mxu0 0.0
    %3043 = vmatpush1.msra.mxu0 0.0
    %3044 = vmatprep.subr.mxu0 0.0
    %3045 = vmatpush1.msra.mxu0 0.0
    %3046 = vmatprep.subr.mxu0 0.0
    %3047 = vmatpush1.msra.mxu0 0.0
    %3048 = vmatprep.subr.mxu0 0.0
    %3049 = vmatpush1.msra.mxu0 0.0
    %3050 = vmatprep.subr.mxu0 0.0
    %3051 = vmatpush1.msra.mxu0 0.0
    %3052 = vmatprep.subr.mxu0 0.0
    %3053 = vmatpush1.msra.mxu0 0.0
    %3054 = vmatprep.subr.mxu0 0.0
    %3055 = vmatpush1.msra.mxu0 0.0
    %3056 = vmatprep.subr.mxu0 0.0
    %3057 = vmatpush1.msra.mxu0 0.0
    %3058 = vmatprep.subr.mxu0 0.0
    %3059 = vmatpush1.msra.mxu0 0.0
    %3060 = vmatprep.subr.mxu0 0.0
    %3061 = vmatpush1.msra.mxu0 0.0
    %3062 = vmatprep.subr.mxu0 0.0
    %3063 = vmatpush1.msra.mxu0 0.0
    %3064 = vmatprep.subr.mxu0 0.0
    %3065 = vmatpush1.msra.mxu0 0.0
    %3066 = vmatprep.subr.mxu0 0.0
    %3067 = vmatpush1.msra.mxu0 0.0
    %3068 = vmatprep.subr.mxu0 0.0
    %3069 = vmatpush1.msra.mxu0 0.0
    %3070 = vmatprep.subr.mxu0 0.0
    %3071 = vmatpush1.msra.mxu0 0.0
    %3072 = vmatprep.subr.mxu0 0.0
    %3073 = vmatpush1.msra.mxu0 0.0
    %3074 = vmatprep.subr.mxu0 0.0
    %3075 = vmatpush1.msra.mxu0 0.0
    %3076 = vmatprep.subr.mxu0 0.0
    %3077 = vmatpush1.msra.mxu0 0.0
    %3078 = vmatprep.subr.mxu0 0.0
    %3079 = vmatpush1.msra.mxu0 0.0
    %3080 = vmatprep.subr.mxu0 0.0
    %3081 = vmatpush1.msra.mxu0 0.0
    %3082 = vmatprep.subr.mxu0 0.0
    %3083 = vmatpush1.msra.mxu0 0.0
    %3084 = vmatprep.subr.mxu0 0.0
    %3085 = vmatpush1.msra.mxu0 0.0
    %3086 = vmatprep.subr.mxu0 0.0
    %3087 = vmatpush1.msra.mxu0 0.0
    %3088 = vmatprep.subr.mxu0 0.0
    %3089 = vmatpush1.msra.mxu0 0.0
    %3090 = vmatprep.subr.mxu0 0.0
    %3091 = vmatpush1.msra.mxu0 0.0
    %3092 = vmatprep.mubr.f32.mxu0 0.0
    %3093 = vmatmul.mubr.f32.gmra.mrb[0].mxu0 %v3026
    %v3094 = vpop.f32.mrb[0].mxu0
    %v3095 = vadd.f32 0.0, %v3094
    %v3096 = vpop.f32.mrb[0].mxu0
    %3097 = vdwg.mxu0
    %3098 = vrot.lane.b32.xlu0 %v2096, 104
    %v3099 = vpop.permute.xlu0 %3098
    %3100 = vrot.lane.b32.xlu0 %v2096, 72
    %v3101 = vpop.permute.xlu0 %3100
    %v3102 = vsel %vm249, %v3099, 0
    %v3104 = vsel %vm249, %v3101, 0
    %3106 = vmatprep.subr.mxu0 0.0
    %3107 = vmatpush1.xpose.msra.mxu0 %v3104
    %3108 = vmatprep.subr.mxu0 0.0
    %3109 = vmatpush1.xpose.msra.mxu0 0.0
    %3110 = vmatprep.subr.mxu0 0.0
    %3111 = vmatpush1.xpose.msra.mxu0 0.0
    %3112 = vmatprep.subr.mxu0 0.0
    %3113 = vmatpush1.xpose.msra.mxu0 0.0
    %3114 = vmatprep.subr.mxu0 0.0
    %3115 = vmatpush1.xpose.msra.mxu0 0.0
    %3116 = vmatprep.subr.mxu0 0.0
    %3117 = vmatpush1.xpose.msra.mxu0 0.0
    %3118 = vmatprep.subr.mxu0 0.0
    %3119 = vmatpush1.xpose.msra.mxu0 0.0
    %3120 = vmatprep.subr.mxu0 0.0
    %3121 = vmatpush1.xpose.msra.mxu0 0.0
    %3122 = vmatprep.subr.mxu0 0.0
    %3123 = vmatpush1.xpose.msra.mxu0 0.0
    %3124 = vmatprep.subr.mxu0 0.0
    %3125 = vmatpush1.xpose.msra.mxu0 0.0
    %3126 = vmatprep.subr.mxu0 0.0
    %3127 = vmatpush1.xpose.msra.mxu0 0.0
    %3128 = vmatprep.subr.mxu0 0.0
    %3129 = vmatpush1.xpose.msra.mxu0 0.0
    %3130 = vmatprep.subr.mxu0 0.0
    %3131 = vmatpush1.xpose.msra.mxu0 0.0
    %3132 = vmatprep.subr.mxu0 0.0
    %3133 = vmatpush1.xpose.msra.mxu0 0.0
    %3134 = vmatprep.subr.mxu0 0.0
    %3135 = vmatpush1.xpose.msra.mxu0 0.0
    %3136 = vmatprep.subr.mxu0 0.0
    %3137 = vmatpush1.xpose.msra.mxu0 0.0
    %3138 = vmatprep.subr.mxu0 0.0
    %3139 = vmatpush1.xpose.msra.mxu0 0.0
    %3140 = vmatprep.subr.mxu0 0.0
    %3141 = vmatpush1.xpose.msra.mxu0 0.0
    %3142 = vmatprep.subr.mxu0 0.0
    %3143 = vmatpush1.xpose.msra.mxu0 0.0
    %3144 = vmatprep.subr.mxu0 0.0
    %3145 = vmatpush1.xpose.msra.mxu0 0.0
    %3146 = vmatprep.subr.mxu0 0.0
    %3147 = vmatpush1.xpose.msra.mxu0 0.0
    %3148 = vmatprep.subr.mxu0 0.0
    %3149 = vmatpush1.xpose.msra.mxu0 0.0
    %3150 = vmatprep.subr.mxu0 0.0
    %3151 = vmatpush1.xpose.msra.mxu0 0.0
    %3152 = vmatprep.subr.mxu0 0.0
    %3153 = vmatpush1.xpose.msra.mxu0 0.0
    %3154 = vmatprep.subr.mxu0 0.0
    %3155 = vmatpush1.xpose.msra.mxu0 0.0
    %3156 = vmatprep.subr.mxu0 0.0
    %3157 = vmatpush1.xpose.msra.mxu0 0.0
    %3158 = vmatprep.subr.mxu0 0.0
    %3159 = vmatpush1.xpose.msra.mxu0 0.0
    %3160 = vmatprep.subr.mxu0 0.0
    %3161 = vmatpush1.xpose.msra.mxu0 0.0
    %3162 = vmatprep.subr.mxu0 0.0
    %3163 = vmatpush1.xpose.msra.mxu0 0.0
    %3164 = vmatprep.subr.mxu0 0.0
    %3165 = vmatpush1.xpose.msra.mxu0 0.0
    %3166 = vmatprep.subr.mxu0 0.0
    %3167 = vmatpush1.xpose.msra.mxu0 0.0
    %3168 = vmatprep.subr.mxu0 0.0
    %3169 = vmatpush1.xpose.msra.mxu0 0.0
    %3170 = vmatprep.mubr.f32.mxu0 0.0
    %3171 = vmatmul.mubr.f32.gmra.mrb[0].mxu0 %v3102
    %v3172 = vpop.f32.mrb[0].mxu0
    %v3173 = vadd.f32 0.0, %v3172
    %v3174 = vpop.f32.mrb[0].mxu0
    %3175 = vdwg.mxu0
    %3176 = vrot.lane.b32.xlu0 %v2097, 104
    %v3177 = vpop.permute.xlu0 %3176
    %3178 = vrot.lane.b32.xlu0 %v2097, 72
    %v3179 = vpop.permute.xlu0 %3178
    %v3180 = vsel %vm249, %v3177, 0
    %v3182 = vsel %vm249, %v3179, 0
    %3184 = vmatprep.subr.mxu0 0.0
    %3185 = vmatpush1.xpose.msra.mxu0 %v3182
    %3186 = vmatprep.subr.mxu0 0.0
    %3187 = vmatpush1.xpose.msra.mxu0 0.0
    %3188 = vmatprep.subr.mxu0 0.0
    %3189 = vmatpush1.xpose.msra.mxu0 0.0
    %3190 = vmatprep.subr.mxu0 0.0
    %3191 = vmatpush1.xpose.msra.mxu0 0.0
    %3192 = vmatprep.subr.mxu0 0.0
    %3193 = vmatpush1.xpose.msra.mxu0 0.0
    %3194 = vmatprep.subr.mxu0 0.0
    %3195 = vmatpush1.xpose.msra.mxu0 0.0
    %3196 = vmatprep.subr.mxu0 0.0
    %3197 = vmatpush1.xpose.msra.mxu0 0.0
    %3198 = vmatprep.subr.mxu0 0.0
    %3199 = vmatpush1.xpose.msra.mxu0 0.0
    %3200 = vmatprep.subr.mxu0 0.0
    %3201 = vmatpush1.xpose.msra.mxu0 0.0
    %3202 = vmatprep.subr.mxu0 0.0
    %3203 = vmatpush1.xpose.msra.mxu0 0.0
    %3204 = vmatprep.subr.mxu0 0.0
    %3205 = vmatpush1.xpose.msra.mxu0 0.0
    %3206 = vmatprep.subr.mxu0 0.0
    %3207 = vmatpush1.xpose.msra.mxu0 0.0
    %3208 = vmatprep.subr.mxu0 0.0
    %3209 = vmatpush1.xpose.msra.mxu0 0.0
    %3210 = vmatprep.subr.mxu0 0.0
    %3211 = vmatpush1.xpose.msra.mxu0 0.0
    %3212 = vmatprep.subr.mxu0 0.0
    %3213 = vmatpush1.xpose.msra.mxu0 0.0
    %3214 = vmatprep.subr.mxu0 0.0
    %3215 = vmatpush1.xpose.msra.mxu0 0.0
    %3216 = vmatprep.subr.mxu0 0.0
    %3217 = vmatpush1.xpose.msra.mxu0 0.0
    %3218 = vmatprep.subr.mxu0 0.0
    %3219 = vmatpush1.xpose.msra.mxu0 0.0
    %3220 = vmatprep.subr.mxu0 0.0
    %3221 = vmatpush1.xpose.msra.mxu0 0.0
    %3222 = vmatprep.subr.mxu0 0.0
    %3223 = vmatpush1.xpose.msra.mxu0 0.0
    %3224 = vmatprep.subr.mxu0 0.0
    %3225 = vmatpush1.xpose.msra.mxu0 0.0
    %3226 = vmatprep.subr.mxu0 0.0
    %3227 = vmatpush1.xpose.msra.mxu0 0.0
    %3228 = vmatprep.subr.mxu0 0.0
    %3229 = vmatpush1.xpose.msra.mxu0 0.0
    %3230 = vmatprep.subr.mxu0 0.0
    %3231 = vmatpush1.xpose.msra.mxu0 0.0
    %3232 = vmatprep.subr.mxu0 0.0
    %3233 = vmatpush1.xpose.msra.mxu0 0.0
    %3234 = vmatprep.subr.mxu0 0.0
    %3235 = vmatpush1.xpose.msra.mxu0 0.0
    %3236 = vmatprep.subr.mxu0 0.0
    %3237 = vmatpush1.xpose.msra.mxu0 0.0
    %3238 = vmatprep.subr.mxu0 0.0
    %3239 = vmatpush1.xpose.msra.mxu0 0.0
    %3240 = vmatprep.subr.mxu0 0.0
    %3241 = vmatpush1.xpose.msra.mxu0 0.0
    %3242 = vmatprep.subr.mxu0 0.0
    %3243 = vmatpush1.xpose.msra.mxu0 0.0
    %3244 = vmatprep.subr.mxu0 0.0
    %3245 = vmatpush1.xpose.msra.mxu0 0.0
    %3246 = vmatprep.subr.mxu0 0.0
    %3247 = vmatpush1.xpose.msra.mxu0 0.0
    %3248 = vmatprep.mubr.f32.mxu0 0.0
    %3249 = vmatmul.mubr.f32.gmra.mrb[0].mxu0 %v3180
    %v3250 = vpop.f32.mrb[0].mxu0
    %v3251 = vadd.f32 0.0, %v3250
    %v3252 = vpop.f32.mrb[0].mxu0
    %3253 = vdwg.mxu0
    %v3254 = vmul.f32 %v3173, 0.35355338
    %v3255 = vmul.f32 %v3251, 0.35355338
    %v3256 = vadd.f32 %v3254, %v408
    %v3257 = vadd.f32 %v3255, %v412
    %v3258 = vsel %vm249, %v3256, -inf
    %3259 = vmax.xlane.f32.xlu0 %v3258
    %v3260 = vpop.xlane.xlu0 %3259
    %v3261 = vsel %vm249, %v3257, -inf
    %3262 = vmax.xlane.f32.xlu0 %v3261
    %v3263 = vpop.xlane.xlu0 %3262
    %v3264 = vsub.f32 %v3256, %v3260
    %v3265 = vsub.f32 %v3257, %v3263
    %v3266 = vmul.f32 %v3264, 1.442695
    %v3267 = vpow.pop %v3266
    %v3268 = vmul.f32 %v3265, 1.442695
    %v3269 = vpow.pop %v3268
    %v3270 = vsel %vm249, %v3267, 0.0
    %3271 = vadd.xlane.f32.xlu0 %v3270
    %v3272 = vpop.xlane.xlu0 %3271
    %v3273 = vsel %vm249, %v3269, 0.0
    %3274 = vadd.xlane.f32.xlu0 %v3273
    %v3275 = vpop.xlane.xlu0 %3274
    %v3276 = vrcp.pop %v3272
    %v3277 = vrcp.pop %v3275
    %v3278 = vmul.f32 %v3267, %v3276
    %v3279 = vmul.f32 %v3269, %v3277
    %3280 = vrot.lane.b32.xlu0 %v2096, 40
    %v3281 = vpop.permute.xlu0 %3280
    %v3284 = vsel %vm249, %v3278, 0
    %3286 = vmatprep.subr.mxu0 0.0
    %3287 = vmatpush1.msra.mxu0 %v3281
    %3288 = vmatprep.subr.mxu0 0.0
    %3289 = vmatpush1.msra.mxu0 0.0
    %3290 = vmatprep.subr.mxu0 0.0
    %3291 = vmatpush1.msra.mxu0 0.0
    %3292 = vmatprep.subr.mxu0 0.0
    %3293 = vmatpush1.msra.mxu0 0.0
    %3294 = vmatprep.subr.mxu0 0.0
    %3295 = vmatpush1.msra.mxu0 0.0
    %3296 = vmatprep.subr.mxu0 0.0
    %3297 = vmatpush1.msra.mxu0 0.0
    %3298 = vmatprep.subr.mxu0 0.0
    %3299 = vmatpush1.msra.mxu0 0.0
    %3300 = vmatprep.subr.mxu0 0.0
    %3301 = vmatpush1.msra.mxu0 0.0
    %3302 = vmatprep.subr.mxu0 0.0
    %3303 = vmatpush1.msra.mxu0 0.0
    %3304 = vmatprep.subr.mxu0 0.0
    %3305 = vmatpush1.msra.mxu0 0.0
    %3306 = vmatprep.subr.mxu0 0.0
    %3307 = vmatpush1.msra.mxu0 0.0
    %3308 = vmatprep.subr.mxu0 0.0
    %3309 = vmatpush1.msra.mxu0 0.0
    %3310 = vmatprep.subr.mxu0 0.0
    %3311 = vmatpush1.msra.mxu0 0.0
    %3312 = vmatprep.subr.mxu0 0.0
    %3313 = vmatpush1.msra.mxu0 0.0
    %3314 = vmatprep.subr.mxu0 0.0
    %3315 = vmatpush1.msra.mxu0 0.0
    %3316 = vmatprep.subr.mxu0 0.0
    %3317 = vmatpush1.msra.mxu0 0.0
    %3318 = vmatprep.subr.mxu0 0.0
    %3319 = vmatpush1.msra.mxu0 0.0
    %3320 = vmatprep.subr.mxu0 0.0
    %3321 = vmatpush1.msra.mxu0 0.0
    %3322 = vmatprep.subr.mxu0 0.0
    %3323 = vmatpush1.msra.mxu0 0.0
    %3324 = vmatprep.subr.mxu0 0.0
    %3325 = vmatpush1.msra.mxu0 0.0
    %3326 = vmatprep.subr.mxu0 0.0
    %3327 = vmatpush1.msra.mxu0 0.0
    %3328 = vmatprep.subr.mxu0 0.0
    %3329 = vmatpush1.msra.mxu0 0.0
    %3330 = vmatprep.subr.mxu0 0.0
    %3331 = vmatpush1.msra.mxu0 0.0
    %3332 = vmatprep.subr.mxu0 0.0
    %3333 = vmatpush1.msra.mxu0 0.0
    %3334 = vmatprep.subr.mxu0 0.0
    %3335 = vmatpush1.msra.mxu0 0.0
    %3336 = vmatprep.subr.mxu0 0.0
    %3337 = vmatpush1.msra.mxu0 0.0
    %3338 = vmatprep.subr.mxu0 0.0
    %3339 = vmatpush1.msra.mxu0 0.0
    %3340 = vmatprep.subr.mxu0 0.0
    %3341 = vmatpush1.msra.mxu0 0.0
    %3342 = vmatprep.subr.mxu0 0.0
    %3343 = vmatpush1.msra.mxu0 0.0
    %3344 = vmatprep.subr.mxu0 0.0
    %3345 = vmatpush1.msra.mxu0 0.0
    %3346 = vmatprep.subr.mxu0 0.0
    %3347 = vmatpush1.msra.mxu0 0.0
    %3348 = vmatprep.subr.mxu0 0.0
    %3349 = vmatpush1.msra.mxu0 0.0
    %3350 = vmatprep.mubr.f32.mxu0 0.0
    %3351 = vmatmul.mubr.f32.gmra.mrb[0].mxu0 %v3284
    %v3352 = vpop.f32.mrb[0].mxu0
    %v3353 = vadd.f32 0.0, %v3352
    %v3354 = vpop.f32.mrb[0].mxu0
    %3355 = vdwg.mxu0
    %3356 = vrot.lane.b32.xlu0 %v2097, 40
    %v3357 = vpop.permute.xlu0 %3356
    %v3360 = vsel %vm249, %v3279, 0
    %3362 = vmatprep.subr.mxu0 0.0
    %3363 = vmatpush1.msra.mxu0 %v3357
    %3364 = vmatprep.subr.mxu0 0.0
    %3365 = vmatpush1.msra.mxu0 0.0
    %3366 = vmatprep.subr.mxu0 0.0
    %3367 = vmatpush1.msra.mxu0 0.0
    %3368 = vmatprep.subr.mxu0 0.0
    %3369 = vmatpush1.msra.mxu0 0.0
    %3370 = vmatprep.subr.mxu0 0.0
    %3371 = vmatpush1.msra.mxu0 0.0
    %3372 = vmatprep.subr.mxu0 0.0
    %3373 = vmatpush1.msra.mxu0 0.0
    %3374 = vmatprep.subr.mxu0 0.0
    %3375 = vmatpush1.msra.mxu0 0.0
    %3376 = vmatprep.subr.mxu0 0.0
    %3377 = vmatpush1.msra.mxu0 0.0
    %3378 = vmatprep.subr.mxu0 0.0
    %3379 = vmatpush1.msra.mxu0 0.0
    %3380 = vmatprep.subr.mxu0 0.0
    %3381 = vmatpush1.msra.mxu0 0.0
    %3382 = vmatprep.subr.mxu0 0.0
    %3383 = vmatpush1.msra.mxu0 0.0
    %3384 = vmatprep.subr.mxu0 0.0
    %3385 = vmatpush1.msra.mxu0 0.0
    %3386 = vmatprep.subr.mxu0 0.0
    %3387 = vmatpush1.msra.mxu0 0.0
    %3388 = vmatprep.subr.mxu0 0.0
    %3389 = vmatpush1.msra.mxu0 0.0
    %3390 = vmatprep.subr.mxu0 0.0
    %3391 = vmatpush1.msra.mxu0 0.0
    %3392 = vmatprep.subr.mxu0 0.0
    %3393 = vmatpush1.msra.mxu0 0.0
    %3394 = vmatprep.subr.mxu0 0.0
    %3395 = vmatpush1.msra.mxu0 0.0
    %3396 = vmatprep.subr.mxu0 0.0
    %3397 = vmatpush1.msra.mxu0 0.0
    %3398 = vmatprep.subr.mxu0 0.0
    %3399 = vmatpush1.msra.mxu0 0.0
    %3400 = vmatprep.subr.mxu0 0.0
    %3401 = vmatpush1.msra.mxu0 0.0
    %3402 = vmatprep.subr.mxu0 0.0
    %3403 = vmatpush1.msra.mxu0 0.0
    %3404 = vmatprep.subr.mxu0 0.0
    %3405 = vmatpush1.msra.mxu0 0.0
    %3406 = vmatprep.subr.mxu0 0.0
    %3407 = vmatpush1.msra.mxu0 0.0
    %3408 = vmatprep.subr.mxu0 0.0
    %3409 = vmatpush1.msra.mxu0 0.0
    %3410 = vmatprep.subr.mxu0 0.0
    %3411 = vmatpush1.msra.mxu0 0.0
    %3412 = vmatprep.subr.mxu0 0.0
    %3413 = vmatpush1.msra.mxu0 0.0
    %3414 = vmatprep.subr.mxu0 0.0
    %3415 = vmatpush1.msra.mxu0 0.0
    %3416 = vmatprep.subr.mxu0 0.0
    %3417 = vmatpush1.msra.mxu0 0.0
    %3418 = vmatprep.subr.mxu0 0.0
    %3419 = vmatpush1.msra.mxu0 0.0
    %3420 = vmatprep.subr.mxu0 0.0
    %3421 = vmatpush1.msra.mxu0 0.0
    %3422 = vmatprep.subr.mxu0 0.0
    %3423 = vmatpush1.msra.mxu0 0.0
    %3424 = vmatprep.subr.mxu0 0.0
    %3425 = vmatpush1.msra.mxu0 0.0
    %3426 = vmatprep.mubr.f32.mxu0 0.0
    %3427 = vmatmul.mubr.f32.gmra.mrb[0].mxu0 %v3360
    %v3428 = vpop.f32.mrb[0].mxu0
    %v3429 = vadd.f32 0.0, %v3428
    %v3430 = vpop.f32.mrb[0].mxu0
    %3431 = vdwg.mxu0
    %3434 = vrot.lane.b32.xlu0 %v2685, 8
    %v3435 = vpop.permute.xlu0 %3434
    %3436 = vrot.lane.b32.xlu0 %v2761, 8
    %v3437 = vpop.permute.xlu0 %3436
    %3442 = vrot.lane.b32.xlu0 %v3019, 16
    %v3443 = vpop.permute.xlu0 %3442
    %3444 = vrot.lane.b32.xlu0 %v3095, 16
    %v3445 = vpop.permute.xlu0 %3444
    %3450 = vrot.lane.b32.xlu0 %v3353, 24
    %v3451 = vpop.permute.xlu0 %3450
    %3452 = vrot.lane.b32.xlu0 %v3429, 24
    %v3453 = vpop.permute.xlu0 %3452
    %v3456 = vsel %vm249, %v2351, %v3435
    %v3457 = vsel %vm249, %v2427, %v3437
    %v3458 = vsel %vm1619, %v3456, %v3443
    %v3459 = vsel %vm1619, %v3457, %v3445
    %v3460 = vsel %vm1622, %v3458, %v3451
    %v3461 = vsel %vm1622, %v3459, %v3453
    %v3463 = vsel %vm98, %v3460, 0
    %v3466 = vsel %vm98, %v3461, 0
    %3468 = vmatprep.subr.mxu0 0.0
    %3469 = vmatpush1.msra.mxu0 %v77
    %3470 = vmatprep.subr.mxu0 0.0
    %3471 = vmatpush1.msra.mxu0 %v78
    %3472 = vmatprep.subr.mxu0 0.0
    %3473 = vmatpush1.msra.mxu0 %v79
    %3474 = vmatprep.subr.mxu0 0.0
    %3475 = vmatpush1.msra.mxu0 %v80
    %3476 = vmatprep.subr.mxu0 0.0
    %3477 = vmatpush1.msra.mxu0 0.0
    %3478 = vmatprep.subr.mxu0 0.0
    %3479 = vmatpush1.msra.mxu0 0.0
    %3480 = vmatprep.subr.mxu0 0.0
    %3481 = vmatpush1.msra.mxu0 0.0
    %3482 = vmatprep.subr.mxu0 0.0
    %3483 = vmatpush1.msra.mxu0 0.0
    %3484 = vmatprep.subr.mxu0 0.0
    %3485 = vmatpush1.msra.mxu0 0.0
    %3486 = vmatprep.subr.mxu0 0.0
    %3487 = vmatpush1.msra.mxu0 0.0
    %3488 = vmatprep.subr.mxu0 0.0
    %3489 = vmatpush1.msra.mxu0 0.0
    %3490 = vmatprep.subr.mxu0 0.0
    %3491 = vmatpush1.msra.mxu0 0.0
    %3492 = vmatprep.subr.mxu0 0.0
    %3493 = vmatpush1.msra.mxu0 0.0
    %3494 = vmatprep.subr.mxu0 0.0
    %3495 = vmatpush1.msra.mxu0 0.0
    %3496 = vmatprep.subr.mxu0 0.0
    %3497 = vmatpush1.msra.mxu0 0.0
    %3498 = vmatprep.subr.mxu0 0.0
    %3499 = vmatpush1.msra.mxu0 0.0
    %3500 = vmatprep.subr.mxu0 0.0
    %3501 = vmatpush1.msra.mxu0 0.0
    %3502 = vmatprep.subr.mxu0 0.0
    %3503 = vmatpush1.msra.mxu0 0.0
    %3504 = vmatprep.subr.mxu0 0.0
    %3505 = vmatpush1.msra.mxu0 0.0
    %3506 = vmatprep.subr.mxu0 0.0
    %3507 = vmatpush1.msra.mxu0 0.0
    %3508 = vmatprep.subr.mxu0 0.0
    %3509 = vmatpush1.msra.mxu0 0.0
    %3510 = vmatprep.subr.mxu0 0.0
    %3511 = vmatpush1.msra.mxu0 0.0
    %3512 = vmatprep.subr.mxu0 0.0
    %3513 = vmatpush1.msra.mxu0 0.0
    %3514 = vmatprep.subr.mxu0 0.0
    %3515 = vmatpush1.msra.mxu0 0.0
    %3516 = vmatprep.subr.mxu0 0.0
    %3517 = vmatpush1.msra.mxu0 0.0
    %3518 = vmatprep.subr.mxu0 0.0
    %3519 = vmatpush1.msra.mxu0 0.0
    %3520 = vmatprep.subr.mxu0 0.0
    %3521 = vmatpush1.msra.mxu0 0.0
    %3522 = vmatprep.subr.mxu0 0.0
    %3523 = vmatpush1.msra.mxu0 0.0
    %3524 = vmatprep.subr.mxu0 0.0
    %3525 = vmatpush1.msra.mxu0 0.0
    %3526 = vmatprep.subr.mxu0 0.0
    %3527 = vmatpush1.msra.mxu0 0.0
    %3528 = vmatprep.subr.mxu0 0.0
    %3529 = vmatpush1.msra.mxu0 0.0
    %3530 = vmatprep.subr.mxu0 0.0
    %3531 = vmatpush1.msra.mxu0 0.0
    %3532 = vmatprep.mubr.f32.mxu0 0.0
    %3533 = vmatmul.mubr.f32.gmra.mrb[0].mxu0 %v3463
    %v3534 = vpop.f32.mrb[0].mxu0
    %v3535 = vadd.f32 0.0, %v3534
    %v3536 = vpop.f32.mrb[0].mxu0
    %3537 = vmatprep.mubr.f32.mxu0 0.0
    %3538 = vmatmul.mubr.f32.gmra.mrb[0].mxu0 %v3466
    %v3539 = vpop.f32.mrb[0].mxu0
    %v3540 = vadd.f32 0.0, %v3539
    %v3541 = vpop.f32.mrb[0].mxu0
    %3542 = vdwg.mxu0
    %v3543 = vadd.f32 %v3535, %v1710
    %v3544 = vadd.f32 %v3540, %v1710
    %v3545 = vadd.f32 %v1955, %v3543
    %v3546 = vadd.f32 %v1956, %v3544
    %v3547 = vld [vmem:[%s12] sm:$0x1]
    %v3548 = vld [vmem:[%s13] sm:$0x1]
    %v3549 = vsel %vm98, %v3545, 0.0
    %3550 = vadd.xlane.f32.xlu0 %v3549
    %v3551 = vpop.xlane.xlu0 %3550
    %v3552 = vsel %vm98, %v3546, 0.0
    %3553 = vadd.xlane.f32.xlu0 %v3552
    %v3554 = vpop.xlane.xlu0 %3553
    %v3555 = vmul.f32 %v3551, %v105
    %v3556 = vmul.f32 %v3554, %v105
    %v3557 = vsub.f32 %v3545, %v3555
    %v3558 = vsub.f32 %v3546, %v3556
    %v3559 = vmul.f32 %v3557, %v3557
    %v3560 = vmul.f32 %v3558, %v3558
    %v3561 = vsel %vm98, %v3559, 0.0
    %3562 = vadd.xlane.f32.xlu0 %v3561
    %v3563 = vpop.xlane.xlu0 %3562
    %v3564 = vsel %vm98, %v3560, 0.0
    %3565 = vadd.xlane.f32.xlu0 %v3564
    %v3566 = vpop.xlane.xlu0 %3565
    %v3567 = vmul.f32 %v3563, %v118
    %v3568 = vmul.f32 %v3566, %v118
    %v3569 = vrsqrt.pop %v3567
    %v3570 = vmul.f32 %v3567, %v3569
    %vm3571 = vcmp.eq.f32.partialorder %v3567, inf
    %v3572 = vsel %vm3571, %v3567, %v3570
    %vm3573 = vcmp.eq.f32.partialorder %v3567, 0.0
    %v3574 = vand.u32 %v3567, 2147483648
    %v3575 = vsel %vm3573, %v3574, %v3572
    %v3576 = vrsqrt.pop %v3568
    %v3577 = vmul.f32 %v3568, %v3576
    %vm3578 = vcmp.eq.f32.partialorder %v3568, inf
    %v3579 = vsel %vm3578, %v3568, %v3577
    %vm3580 = vcmp.eq.f32.partialorder %v3568, 0.0
    %v3581 = vand.u32 %v3568, 2147483648
    %v3582 = vsel %vm3580, %v3581, %v3579
    %v3584 = vlaneseq
    %v3585 = vshrl.u32 %v3584, 7
    %v3586 = vsub.s32 0, %v3585
    %v3587 = vrot.slane %v3547, %v3586
    %v3589 = vmul.f32 %v3587, %v3557
    %v3590 = vmul.f32 %v3587, %v3558
    %v3591 = vadd.f32 %v3575, 1e-06
    %v3592 = vadd.f32 %v3582, 1e-06
    %v3593 = vrcp.pop %v3591
    %v3594 = vmul.f32 %v3589, %v3593
    %v3595 = vrcp.pop %v3592
    %v3596 = vmul.f32 %v3590, %v3595
    %v3598 = vlaneseq
    %v3599 = vshrl.u32 %v3598, 7
    %v3600 = vsub.s32 0, %v3599
    %v3601 = vrot.slane %v3548, %v3600
    %v3603 = vadd.f32 %v3594, %v3601
    %v3604 = vadd.f32 %v3596, %v3601
    %v3606 = vsel %vm98, %v3603, 0
    %v3609 = vsel %vm98, %v3604, 0
    %3611 = vmatprep.subr.mxu0 0.0
    %3612 = vmatpush1.msra.mxu0 %v82
    %3613 = vmatprep.subr.mxu0 0.0
    %3614 = vmatpush1.msra.mxu0 %v83
    %3615 = vmatprep.subr.mxu0 0.0
    %3616 = vmatpush1.msra.mxu0 %v84
    %3617 = vmatprep.subr.mxu0 0.0
    %3618 = vmatpush1.msra.mxu0 %v85
    %3619 = vmatprep.subr.mxu0 0.0
    %3620 = vmatpush1.msra.mxu0 0.0
    %3621 = vmatprep.subr.mxu0 0.0
    %3622 = vmatpush1.msra.mxu0 0.0
    %3623 = vmatprep.subr.mxu0 0.0
    %3624 = vmatpush1.msra.mxu0 0.0
    %3625 = vmatprep.subr.mxu0 0.0
    %3626 = vmatpush1.msra.mxu0 0.0
    %3627 = vmatprep.subr.mxu0 0.0
    %3628 = vmatpush1.msra.mxu0 0.0
    %3629 = vmatprep.subr.mxu0 0.0
    %3630 = vmatpush1.msra.mxu0 0.0
    %3631 = vmatprep.subr.mxu0 0.0
    %3632 = vmatpush1.msra.mxu0 0.0
    %3633 = vmatprep.subr.mxu0 0.0
    %3634 = vmatpush1.msra.mxu0 0.0
    %3635 = vmatprep.subr.mxu0 0.0
    %3636 = vmatpush1.msra.mxu0 0.0
    %3637 = vmatprep.subr.mxu0 0.0
    %3638 = vmatpush1.msra.mxu0 0.0
    %3639 = vmatprep.subr.mxu0 0.0
    %3640 = vmatpush1.msra.mxu0 0.0
    %3641 = vmatprep.subr.mxu0 0.0
    %3642 = vmatpush1.msra.mxu0 0.0
    %3643 = vmatprep.subr.mxu0 0.0
    %3644 = vmatpush1.msra.mxu0 0.0
    %3645 = vmatprep.subr.mxu0 0.0
    %3646 = vmatpush1.msra.mxu0 0.0
    %3647 = vmatprep.subr.mxu0 0.0
    %3648 = vmatpush1.msra.mxu0 0.0
    %3649 = vmatprep.subr.mxu0 0.0
    %3650 = vmatpush1.msra.mxu0 0.0
    %3651 = vmatprep.subr.mxu0 0.0
    %3652 = vmatpush1.msra.mxu0 0.0
    %3653 = vmatprep.subr.mxu0 0.0
    %3654 = vmatpush1.msra.mxu0 0.0
    %3655 = vmatprep.subr.mxu0 0.0
    %3656 = vmatpush1.msra.mxu0 0.0
    %3657 = vmatprep.subr.mxu0 0.0
    %3658 = vmatpush1.msra.mxu0 0.0
    %3659 = vmatprep.subr.mxu0 0.0
    %3660 = vmatpush1.msra.mxu0 0.0
    %3661 = vmatprep.subr.mxu0 0.0
    %3662 = vmatpush1.msra.mxu0 0.0
    %3663 = vmatprep.subr.mxu0 0.0
    %3664 = vmatpush1.msra.mxu0 0.0
    %3665 = vmatprep.subr.mxu0 0.0
    %3666 = vmatpush1.msra.mxu0 0.0
    %3667 = vmatprep.subr.mxu0 0.0
    %3668 = vmatpush1.msra.mxu0 0.0
    %3669 = vmatprep.subr.mxu0 0.0
    %3670 = vmatpush1.msra.mxu0 0.0
    %3671 = vmatprep.subr.mxu0 0.0
    %3672 = vmatpush1.msra.mxu0 0.0
    %3673 = vmatprep.subr.mxu0 0.0
    %3674 = vmatpush1.msra.mxu0 0.0
    %3675 = vmatprep.mubr.f32.mxu0 0.0
    %3676 = vmatmul.mubr.f32.gmra.mrb[0].mxu0 %v3606
    %v3677 = vpop.f32.mrb[0].mxu0
    %v3678 = vadd.f32 0.0, %v3677
    %v3679 = vpop.f32.mrb[0].mxu0
    %3680 = vmatprep.mubr.f32.mxu0 0.0
    %3681 = vmatmul.mubr.f32.gmra.mrb[0].mxu0 %v3609
    %v3682 = vpop.f32.mrb[0].mxu0
    %v3683 = vadd.f32 0.0, %v3682
    %v3684 = vpop.f32.mrb[0].mxu0
    %3685 = vdwg.mxu0
    %v3686 = vadd.f32 %v3678, %v1859
    %v3687 = vadd.f32 %v3683, %v1859
    %v3688 = vmax.f32 %v3686, 0.0
    %v3689 = vmax.f32 %v3687, 0.0
    %v3691 = vsel %vm1865, %v3688, 0
    %v3694 = vsel %vm1865, %v3689, 0
    %3696 = vmatprep.subr.mxu0 0.0
    %3697 = vmatpush1.msra.mxu0 %v87
    %3698 = vmatprep.subr.mxu0 0.0
    %3699 = vmatpush1.msra.mxu0 %v88
    %3700 = vmatprep.subr.mxu0 0.0
    %3701 = vmatpush1.msra.mxu0 %v89
    %3702 = vmatprep.subr.mxu0 0.0
    %3703 = vmatpush1.msra.mxu0 %v90
    %3704 = vmatprep.subr.mxu0 0.0
    %3705 = vmatpush1.msra.mxu0 %v91
    %3706 = vmatprep.subr.mxu0 0.0
    %3707 = vmatpush1.msra.mxu0 %v92
    %3708 = vmatprep.subr.mxu0 0.0
    %3709 = vmatpush1.msra.mxu0 %v93
    %3710 = vmatprep.subr.mxu0 0.0
    %3711 = vmatpush1.msra.mxu0 %v94
    %3712 = vmatprep.subr.mxu0 0.0
    %3713 = vmatpush1.msra.mxu0 0.0
    %3714 = vmatprep.subr.mxu0 0.0
    %3715 = vmatpush1.msra.mxu0 0.0
    %3716 = vmatprep.subr.mxu0 0.0
    %3717 = vmatpush1.msra.mxu0 0.0
    %3718 = vmatprep.subr.mxu0 0.0
    %3719 = vmatpush1.msra.mxu0 0.0
    %3720 = vmatprep.subr.mxu0 0.0
    %3721 = vmatpush1.msra.mxu0 0.0
    %3722 = vmatprep.subr.mxu0 0.0
    %3723 = vmatpush1.msra.mxu0 0.0
    %3724 = vmatprep.subr.mxu0 0.0
    %3725 = vmatpush1.msra.mxu0 0.0
    %3726 = vmatprep.subr.mxu0 0.0
    %3727 = vmatpush1.msra.mxu0 0.0
    %3728 = vmatprep.subr.mxu0 0.0
    %3729 = vmatpush1.msra.mxu0 0.0
    %3730 = vmatprep.subr.mxu0 0.0
    %3731 = vmatpush1.msra.mxu0 0.0
    %3732 = vmatprep.subr.mxu0 0.0
    %3733 = vmatpush1.msra.mxu0 0.0
    %3734 = vmatprep.subr.mxu0 0.0
    %3735 = vmatpush1.msra.mxu0 0.0
    %3736 = vmatprep.subr.mxu0 0.0
    %3737 = vmatpush1.msra.mxu0 0.0
    %3738 = vmatprep.subr.mxu0 0.0
    %3739 = vmatpush1.msra.mxu0 0.0
    %3740 = vmatprep.subr.mxu0 0.0
    %3741 = vmatpush1.msra.mxu0 0.0
    %3742 = vmatprep.subr.mxu0 0.0
    %3743 = vmatpush1.msra.mxu0 0.0
    %3744 = vmatprep.subr.mxu0 0.0
    %3745 = vmatpush1.msra.mxu0 0.0
    %3746 = vmatprep.subr.mxu0 0.0
    %3747 = vmatpush1.msra.mxu0 0.0
    %3748 = vmatprep.subr.mxu0 0.0
    %3749 = vmatpush1.msra.mxu0 0.0
    %3750 = vmatprep.subr.mxu0 0.0
    %3751 = vmatpush1.msra.mxu0 0.0
    %3752 = vmatprep.subr.mxu0 0.0
    %3753 = vmatpush1.msra.mxu0 0.0
    %3754 = vmatprep.subr.mxu0 0.0
    %3755 = vmatpush1.msra.mxu0 0.0
    %3756 = vmatprep.subr.mxu0 0.0
    %3757 = vmatpush1.msra.mxu0 0.0
    %3758 = vmatprep.subr.mxu0 0.0
    %3759 = vmatpush1.msra.mxu0 0.0
    %3760 = vmatprep.mubr.f32.mxu0 0.0
    %3761 = vmatmul.mubr.f32.gmra.mrb[0].mxu0 %v3691
    %v3762 = vpop.f32.mrb[0].mxu0
    %v3763 = vadd.f32 0.0, %v3762
    %v3764 = vpop.f32.mrb[0].mxu0
    %3765 = vmatprep.mubr.f32.mxu0 0.0
    %3766 = vmatmul.mubr.f32.gmra.mrb[0].mxu0 %v3694
    %v3767 = vpop.f32.mrb[0].mxu0
    %v3768 = vadd.f32 0.0, %v3767
    %v3769 = vpop.f32.mrb[0].mxu0
    %3770 = vdwg.mxu0
    %v3771 = vadd.f32 %v3763, %v1951
    %v3772 = vadd.f32 %v3768, %v1951
    %v3773 = vadd.f32 %v3545, %v3771
    %v3774 = vadd.f32 %v3546, %v3772
    %v3775 = vld [vmem:[%s14] sm:$0x1]
    %v3776 = vld [vmem:[%s15] sm:$0x1]
    %v3777 = vsel %vm98, %v3773, 0.0
    %3778 = vadd.xlane.f32.xlu0 %v3777
    %v3779 = vpop.xlane.xlu0 %3778
    %v3780 = vsel %vm98, %v3774, 0.0
    %3781 = vadd.xlane.f32.xlu0 %v3780
    %v3782 = vpop.xlane.xlu0 %3781
    %v3783 = vmul.f32 %v3779, %v105
    %v3784 = vmul.f32 %v3782, %v105
    %v3785 = vsub.f32 %v3773, %v3783
    %v3786 = vsub.f32 %v3774, %v3784
    %v3787 = vmul.f32 %v3785, %v3785
    %v3788 = vmul.f32 %v3786, %v3786
    %v3789 = vsel %vm98, %v3787, 0.0
    %3790 = vadd.xlane.f32.xlu0 %v3789
    %v3791 = vpop.xlane.xlu0 %3790
    %v3792 = vsel %vm98, %v3788, 0.0
    %3793 = vadd.xlane.f32.xlu0 %v3792
    %v3794 = vpop.xlane.xlu0 %3793
    %v3795 = vmul.f32 %v3791, %v118
    %v3796 = vmul.f32 %v3794, %v118
    %v3797 = vrsqrt.pop %v3795
    %v3798 = vmul.f32 %v3795, %v3797
    %vm3799 = vcmp.eq.f32.partialorder %v3795, inf
    %v3800 = vsel %vm3799, %v3795, %v3798
    %vm3801 = vcmp.eq.f32.partialorder %v3795, 0.0
    %v3802 = vand.u32 %v3795, 2147483648
    %v3803 = vsel %vm3801, %v3802, %v3800
    %v3804 = vrsqrt.pop %v3796
    %v3805 = vmul.f32 %v3796, %v3804
    %vm3806 = vcmp.eq.f32.partialorder %v3796, inf
    %v3807 = vsel %vm3806, %v3796, %v3805
    %vm3808 = vcmp.eq.f32.partialorder %v3796, 0.0
    %v3809 = vand.u32 %v3796, 2147483648
    %v3810 = vsel %vm3808, %v3809, %v3807
    %v3812 = vlaneseq
    %v3813 = vshrl.u32 %v3812, 7
    %v3814 = vsub.s32 0, %v3813
    %v3815 = vrot.slane %v3775, %v3814
    %v3817 = vmul.f32 %v3815, %v3785
    %v3818 = vmul.f32 %v3815, %v3786
    %v3819 = vadd.f32 %v3803, 1e-06
    %v3820 = vadd.f32 %v3810, 1e-06
    %v3821 = vrcp.pop %v3819
    %v3822 = vmul.f32 %v3817, %v3821
    %v3823 = vrcp.pop %v3820
    %v3824 = vmul.f32 %v3818, %v3823
    %v3826 = vlaneseq
    %v3827 = vshrl.u32 %v3826, 7
    %v3828 = vsub.s32 0, %v3827
    %v3829 = vrot.slane %v3776, %v3828
    %v3831 = vadd.f32 %v3822, %v3829
    %v3832 = vadd.f32 %v3824, %v3829
    %3833 = vst.msk [vmem:[#allocation5] sm:$0xff] %vm98, %v3831
    %3834 = vst.msk [vmem:[#allocation5 + $0x8] sm:$0xff] %vm98, %v3832
    // Predicated region
    $region70: #{encoder_forward.1} parent=1 // pred_check
      _
    $region71: #{encoder_forward.1} parent=1 // pred_check_branch
      %3836 = sbr.rel (0) target = $region73
    $region72: #{encoder_forward.1} parent=1 // pred_region
      %s3838 = ssub.s32 256, 256
      %3839 = vsyncadd [#allocation4], %s3838
      %s3840 = sshll.u32 [#allocation5], 4
      %s3841 = int_to_ptr.vmem [resolvable:$true] %s3840
      %3846 = dma.vmem_to_hbm [thread:$0]  %s3841, 256, %s16, [#allocation4], 128, 128, 8
    $region73: #{encoder_forward.1} parent=1 // pred_fallthru
      _
    // Predicated region
    $region74: #{encoder_forward.1} parent=1 // pred_check
      _
    $region75: #{encoder_forward.1} parent=1 // pred_check_branch
      %3848 = sbr.rel (0) target = $region77
    $region76: #{encoder_forward.1} parent=1 // pred_region
      %3849 = dma.done [#allocation4], 256
    $region77: #{encoder_forward.1} parent=1 // pred_fallthru
      _
    %3850 = vsyncpa [#allocation3], 1
    %3851 = vsyncpa [#allocation4], 1

</llo_original>
